<compile_context>
chip_gen: v6e
topology: v6e:2x2x1
jax: 0.10.0
libtpu: 0.0.40
codegen_flags: <defaults>
</compile_context>

<pallas_src>
import functools
import math

import jax
import jax.numpy as jnp
from jax.experimental import pallas as pl
from jax.experimental.pallas import tpu as pltpu

# ----------------------------- configuration --------------------------------
BATCH = 8
DIM_REPR = 32        # dim_repr
DIM_MATRIX = 8       # dim_matrix
EXPM = True          # `expm` constructor flag of SpiralMLayer / MLayer

_TAYLOR_ORDER = 8    # degree-8 Taylor, Paterson-Stockmeyer (3 serial matmuls)
_DEFAULT_SCALE_SQ = 2
_OUT_LANES = 128     # lane-dense output slab width


# ------------------------------ fused kernel --------------------------------
def _spiral_fused_kernel(xrep_ref, w_ref, b2_ref, out_ref, *, use_expm, scale_sq):
    n = BATCH * DIM_MATRIX                                     # 64

    xr = xrep_ref[...]                                         # (64, 2)  x replicated per row-block
    # static, sublane-aligned slices of the packed weight slab (one DMA)
    w0 = w_ref[0 * n:1 * n, :]                                 # (64, 64) block-diag
    w1 = w_ref[1 * n:2 * n, :]
    bc = w_ref[2 * n:3 * n, :]
    w2 = w_ref[3 * n:4 * n, :]
    sel = w_ref[4 * n:4 * n + BATCH, :]                        # (8, 64) block-row sum matrix

    # fused lin1 + MLayer projection, built directly in block-diag form.
    # Exact zeros off the 8x8 diagonal blocks by construction.
    bd = xr[:, 0:1] * w0 + xr[:, 1:2] * w1 + bc                # (64, 64)

    r_idx = jax.lax.broadcasted_iota(jnp.int32, (n, n), 0)
    c_idx = jax.lax.broadcasted_iota(jnp.int32, (n, n), 1)
    eye = (r_idx == c_idx).astype(jnp.float32)                 # block-diag identity

    if use_expm:
        # expm(blockdiag(M_b)) == blockdiag(expm(M_b)): scaling-and-squaring with a
        # degree-8 Taylor polynomial (Paterson-Stockmeyer). s chosen host-side so
        # ||M/2^s||_1 <= 0.5 -> truncation error ~5e-9.
        a = bd * (1.0 / (2.0 ** scale_sq))
        a_bf = a.astype(jnp.bfloat16)
        # serial matmul 1 (bf16 operands, f32 accumulate)
        a2 = jnp.dot(a_bf, a_bf, preferred_element_type=jnp.float32)
        a2_bf = a2.astype(jnp.bfloat16)
        # serial matmul 2: [a3 | a4] in one full-lane-width (64,128) MXU op
        rhs_bf = jnp.concatenate([a, a2], axis=1).astype(jnp.bfloat16)
        a34 = jnp.dot(a2_bf, rhs_bf, preferred_element_type=jnp.float32)
        a3 = a34[:, 0:n]
        a4 = a34[:, n:2 * n]
        c = [1.0 / math.factorial(k) for k in range(_TAYLOR_ORDER + 1)]
        p_lo = c[0] * eye + c[1] * a + c[2] * a2 + c[3] * a3
        q = c[4] * eye + c[5] * a + c[6] * a2 + c[7] * a3 + c[8] * a4
        # serial matmul 3 (small correction term -> bf16 is plenty)
        t = p_lo + jnp.dot(a4.astype(jnp.bfloat16), q.astype(jnp.bfloat16),
                           preferred_element_type=jnp.float32)
        # serial matmuls 4..3+s: undo the scaling on the full-f32 MXU path
        # (squaring amplifies rounding, so keep it at HIGHEST).
        for _ in range(scale_sq):
            t = jnp.dot(t, t, preferred_element_type=jnp.float32,
                        precision=jax.lax.Precision.HIGHEST)
        e = t
    else:
        e = bd

    # per-row partial reductions; off-block entries of e are exact zeros so the
    # block-row sums never mix batches.
    rs = jnp.concatenate(
        [jnp.sum(e * w2, axis=1, keepdims=True),      # lin2 partial sums
         jnp.sum(e * e, axis=1, keepdims=True)],      # ||.||_F^2 partial sums
        axis=1)                                       # (64, 2)
    red = jnp.dot(sel, rs, preferred_element_type=jnp.float32,
                  precision=jax.lax.Precision.HIGHEST)          # (8, 2)
    y = jax.nn.sigmoid(red[:, 0:1] + b2_ref[0, 0])              # (8, 1)
    l2 = red[:, 1:2]                                            # (8, 1)

    # single lane-dense output slab: col 0 = y, col 1 = l2, rest 0
    col = jax.lax.broadcasted_iota(jnp.int32, (BATCH, _OUT_LANES), 1)
    out_ref[...] = (jnp.where(col == 0, y, 0.0) +
                    jnp.where(col == 1, l2, 0.0))


# ----------------------------- host-side wrapper -----------------------------
def _choose_scale_sq(x, fused, default=_DEFAULT_SCALE_SQ):
    """Pick s so ||M/2^s||_1 <= 0.5 (degree-8 Taylor trunc err < 1e-8).

    Uses the folded weights and the concrete input; falls back to `default`
    when x is a tracer (e.g. under jit)."""
    try:
        m = jnp.asarray(x, jnp.float32) @ fused['wc'] + fused['bc']   # (B, D*D)
        m = m.reshape(-1, DIM_MATRIX, DIM_MATRIX)
        one_norm = float(jnp.max(jnp.sum(jnp.abs(m), axis=1)))        # max column sum
        if not math.isfinite(one_norm) or one_norm <= 0.5:
            return 0 if math.isfinite(one_norm) else default
        return max(0, min(12, int(math.ceil(math.log2(one_norm / 0.5)))))
    except Exception:   # tracer / abstract value -> static fallback
        return default


def spiral_mlayer_forward(x, fused, *, use_expm=EXPM, scale_sq=None):
    assert x.shape == (BATCH, 2)
    if scale_sq is None:
        scale_sq = _choose_scale_sq(x, fused) if use_expm else 0
    # replicate x rows per matrix-row block (layout plumbing only; replaces the
    # old head-of-chain selT matmul inside the kernel).
    x_rep = jnp.repeat(x.astype(jnp.float32), DIM_MATRIX, axis=0)     # (B*D, 2)

    kernel = functools.partial(_spiral_fused_kernel,
                               use_expm=use_expm, scale_sq=int(scale_sq))
    vmem = pl.BlockSpec(memory_space=pltpu.MemorySpace.VMEM)
    smem = pl.BlockSpec(memory_space=pltpu.MemorySpace.SMEM)
    out = pl.pallas_call(
        kernel,
        out_shape=jax.ShapeDtypeStruct((BATCH, _OUT_LANES), jnp.float32),
        in_specs=[vmem,   # x_rep   (B*D, 2)
                  vmem,   # wstack  (4*B*D + B, B*D)  packed block-diag weights + sel
                  smem],  # b2      (1, 1) scalar
        out_specs=vmem,
    )(x_rep, fused['wstack'], fused['b2'])
    y = out[:, 0:1]          # (B, 1) sigmoid(lin2(flatten(expm(M))))
    l2 = out[:, 1]           # (B,)   ||expm(M)||_F ** 2
    return y, l2


# ------------------------- deterministic parameters --------------------------
def init_params(key):
    k1, k2, k3, k4, k5 = jax.random.split(key, 5)
    r, d = DIM_REPR, DIM_MATRIX
    # lin1: Linear(2, dim_repr)   (stored transposed: (in, out))
    lim1 = 1.0 / jnp.sqrt(2.0)
    w1 = jax.random.uniform(k1, (2, r), jnp.float32, -lim1, lim1)
    b1 = jax.random.uniform(k2, (1, r), jnp.float32, -lim1, lim1)
    # MLayer: matrices (dim_repr, d, d) uniform init, bias (d, d)
    m_w = jax.random.uniform(k3, (r, d, d), jnp.float32, -0.1, 0.1)
    m_b = jnp.zeros((d, d), jnp.float32)
    # lin2: Linear(d*d, 1)
    lim2 = 1.0 / jnp.sqrt(float(d * d))
    w2 = jax.random.uniform(k4, (d * d, 1), jnp.float32, -lim2, lim2)
    b2 = jax.random.uniform(k5, (1, 1), jnp.float32, -lim2, lim2)
    return {
        'w1': w1, 'b1': b1,
        'm_w_flat': m_w.reshape(r, d * d),
        'm_b_flat': m_b.reshape(1, d * d),
        'w2_flat': w2,
        'b2': b2,
    }


def prepare_fused_params(params):
    """One-time host-side folding / block-diag packing (exact, no approximation)."""
    d, bsz = DIM_MATRIX, BATCH
    # fold lin1 into the MLayer contraction:  m_flat = x @ Wc + bc
    wc = params['w1'] @ params['m_w_flat']                       # (2, D*D)
    bc = params['b1'] @ params['m_w_flat'] + params['m_b_flat']  # (1, D*D)
    w0 = wc[0].reshape(d, d)
    w1m = wc[1].reshape(d, d)
    bcm = bc[0].reshape(d, d)
    w2m = params['w2_flat'].reshape(d, d)
    eye_b = jnp.eye(bsz, dtype=jnp.float32)
    sel = jnp.kron(eye_b, jnp.ones((1, d), jnp.float32))         # (B, B*D)
    # one stacked operand -> single input DMA; all row offsets multiples of 64
    wstack = jnp.concatenate([
        jnp.kron(eye_b, w0),        # rows   0: 64
        jnp.kron(eye_b, w1m),       # rows  64:128
        jnp.kron(eye_b, bcm),       # rows 128:192
        jnp.kron(eye_b, w2m),       # rows 192:256
        sel,                        # rows 256:264
    ], axis=0).astype(jnp.float32)                               # (264, 64)
    return {
        'wstack': wstack,
        'b2': params['b2'],          # (1, 1) -> SMEM
        'wc': wc, 'bc': bc,          # only for host-side norm-based choice of s
    }


# ------------------------------ JAX reference --------------------------------
def reference_forward(x, params, *, use_expm=EXPM):
    b = x.shape[0]
    d = DIM_MATRIX
    h = x @ params['w1'] + params['b1'][0]
    m = (h @ params['m_w_flat'] + params['m_b_flat'][0]).reshape(b, d, d)
    if use_expm:
        m = jax.scipy.linalg.expm(m)
    l2 = jnp.sum(m * m, axis=(1, 2))
    y = jax.nn.sigmoid(m.reshape(b, d * d) @ params['w2_flat'] + params['b2'][0])
    return y, l2


# ---------------------------------- main -------------------------------------
if __name__ == "__main__":
    key = jax.random.PRNGKey(0)
    kx, kp = jax.random.split(key)
    x = jax.random.normal(kx, (BATCH, 2), jnp.float32)
    params = init_params(kp)
    fused = prepare_fused_params(params)

    y, l2 = spiral_mlayer_forward(x, fused, use_expm=EXPM)
    y = jax.block_until_ready(y)
    l2 = jax.block_until_ready(l2)

    y_ref, l2_ref = reference_forward(x, params, use_expm=EXPM)
    assert y.shape == (BATCH, 1) and l2.shape == (BATCH,)
    assert jnp.allclose(y, y_ref, rtol=2e-3, atol=2e-3), "sigmoid head mismatch"
    assert jnp.allclose(l2, l2_ref, rtol=2e-3, atol=2e-3), "l2 norms mismatch"

    print("KERNEL_OK")
</pallas_src>

<mosaic_0001>
module attributes {stable_mosaic.version = 11 : i64} {
  func.func @_spiral_fused_kernel(%arg0: memref<64x2xf32, #tpu.memory_space<vmem>>, %arg1: memref<264x64xf32, #tpu.memory_space<vmem>>, %arg2: memref<1x1xf32, #tpu.memory_space<smem>>, %arg3: memref<8x128xf32, #tpu.memory_space<vmem>>) attributes {dimension_semantics = [], scalar_prefetch = 0 : i64, scratch_operands = 0 : i64, tpu.core_type = #tpu.core_type<tc>} {
    %c0 = arith.constant 0 : index
    %c0_0 = arith.constant 0 : index
    %0 = vector.load %arg0[%c0, %c0_0] : memref<64x2xf32, #tpu.memory_space<vmem>>, vector<64x2xf32>
    %c0_1 = arith.constant 0 : index
    %c0_2 = arith.constant 0 : index
    %1 = vector.load %arg1[%c0_1, %c0_2] : memref<264x64xf32, #tpu.memory_space<vmem>>, vector<64x64xf32>
    %c64 = arith.constant 64 : index
    %c0_3 = arith.constant 0 : index
    %2 = vector.load %arg1[%c64, %c0_3] : memref<264x64xf32, #tpu.memory_space<vmem>>, vector<64x64xf32>
    %c128 = arith.constant 128 : index
    %c0_4 = arith.constant 0 : index
    %3 = vector.load %arg1[%c128, %c0_4] : memref<264x64xf32, #tpu.memory_space<vmem>>, vector<64x64xf32>
    %c192 = arith.constant 192 : index
    %c0_5 = arith.constant 0 : index
    %4 = vector.load %arg1[%c192, %c0_5] : memref<264x64xf32, #tpu.memory_space<vmem>>, vector<64x64xf32>
    %c256 = arith.constant 256 : index
    %c0_6 = arith.constant 0 : index
    %5 = vector.load %arg1[%c256, %c0_6] : memref<264x64xf32, #tpu.memory_space<vmem>>, vector<8x64xf32>
    %6 = vector.extract_strided_slice %0 {offsets = [0, 0], sizes = [64, 1], strides = [1, 1]} : vector<64x2xf32> to vector<64x1xf32>
    %7 = vector.broadcast %6 : vector<64x1xf32> to vector<64x64xf32>
    %8 = arith.mulf %7, %1 : vector<64x64xf32>
    %9 = vector.extract_strided_slice %0 {offsets = [0, 1], sizes = [64, 1], strides = [1, 1]} : vector<64x2xf32> to vector<64x1xf32>
    %10 = vector.broadcast %9 : vector<64x1xf32> to vector<64x64xf32>
    %11 = arith.mulf %10, %2 : vector<64x64xf32>
    %12 = arith.addf %8, %11 : vector<64x64xf32>
    %13 = arith.addf %12, %3 : vector<64x64xf32>
    %14 = tpu.iota {dimensions = array<i32: 0>} : vector<64x64xi32>
    %15 = tpu.iota {dimensions = array<i32: 1>} : vector<64x64xi32>
    %16 = arith.cmpi eq, %14, %15 : vector<64x64xi32>
    %17 = arith.extui %16 : vector<64x64xi1> to vector<64x64xi32>
    %18 = arith.sitofp %17 : vector<64x64xi32> to vector<64x64xf32>
    %cst = arith.constant 1.250000e-01 : f32
    %19 = vector.broadcast %cst : f32 to vector<64x64xf32>
    %20 = arith.mulf %13, %19 : vector<64x64xf32>
    %21 = arith.truncf %20 : vector<64x64xf32> to vector<64x64xbf16>
    %cst_7 = arith.constant dense<0.000000e+00> : vector<64x64xf32>
    %22 = tpu.matmul %21, %21, %cst_7 {dimension_numbers = #tpu.dot_dimension_numbers<[1], [0], [0], [1], [0, 0, 1, 1], [], []>} : vector<64x64xbf16>, vector<64x64xbf16>, vector<64x64xf32> -> vector<64x64xf32>
    %23 = arith.truncf %22 : vector<64x64xf32> to vector<64x64xbf16>
    %24 = tpu.concatenate %20, %22 in 1 : vector<64x64xf32>, vector<64x64xf32> -> vector<64x128xf32>
    %25 = arith.truncf %24 : vector<64x128xf32> to vector<64x128xbf16>
    %cst_8 = arith.constant dense<0.000000e+00> : vector<64x128xf32>
    %26 = tpu.matmul %23, %25, %cst_8 {dimension_numbers = #tpu.dot_dimension_numbers<[1], [0], [0], [1], [0, 0, 1, 1], [], []>} : vector<64x64xbf16>, vector<64x128xbf16>, vector<64x128xf32> -> vector<64x128xf32>
    %27 = vector.extract_strided_slice %26 {offsets = [0, 0], sizes = [64, 64], strides = [1, 1]} : vector<64x128xf32> to vector<64x64xf32>
    %28 = vector.extract_strided_slice %26 {offsets = [0, 64], sizes = [64, 64], strides = [1, 1]} : vector<64x128xf32> to vector<64x64xf32>
    %cst_9 = arith.constant 1.000000e+00 : f32
    %29 = vector.broadcast %cst_9 : f32 to vector<64x64xf32>
    %30 = arith.mulf %29, %18 : vector<64x64xf32>
    %cst_10 = arith.constant 1.000000e+00 : f32
    %31 = vector.broadcast %cst_10 : f32 to vector<64x64xf32>
    %32 = arith.mulf %31, %20 : vector<64x64xf32>
    %33 = arith.addf %30, %32 : vector<64x64xf32>
    %cst_11 = arith.constant 5.000000e-01 : f32
    %34 = vector.broadcast %cst_11 : f32 to vector<64x64xf32>
    %35 = arith.mulf %34, %22 : vector<64x64xf32>
    %36 = arith.addf %33, %35 : vector<64x64xf32>
    %cst_12 = arith.constant 0.166666672 : f32
    %37 = vector.broadcast %cst_12 : f32 to vector<64x64xf32>
    %38 = arith.mulf %37, %27 : vector<64x64xf32>
    %39 = arith.addf %36, %38 : vector<64x64xf32>
    %cst_13 = arith.constant 0.0416666679 : f32
    %40 = vector.broadcast %cst_13 : f32 to vector<64x64xf32>
    %41 = arith.mulf %40, %18 : vector<64x64xf32>
    %cst_14 = arith.constant 0.00833333377 : f32
    %42 = vector.broadcast %cst_14 : f32 to vector<64x64xf32>
    %43 = arith.mulf %42, %20 : vector<64x64xf32>
    %44 = arith.addf %41, %43 : vector<64x64xf32>
    %cst_15 = arith.constant 0.00138888892 : f32
    %45 = vector.broadcast %cst_15 : f32 to vector<64x64xf32>
    %46 = arith.mulf %45, %22 : vector<64x64xf32>
    %47 = arith.addf %44, %46 : vector<64x64xf32>
    %cst_16 = arith.constant 1.98412701E-4 : f32
    %48 = vector.broadcast %cst_16 : f32 to vector<64x64xf32>
    %49 = arith.mulf %48, %27 : vector<64x64xf32>
    %50 = arith.addf %47, %49 : vector<64x64xf32>
    %cst_17 = arith.constant 2.48015876E-5 : f32
    %51 = vector.broadcast %cst_17 : f32 to vector<64x64xf32>
    %52 = arith.mulf %51, %28 : vector<64x64xf32>
    %53 = arith.addf %50, %52 : vector<64x64xf32>
    %54 = arith.truncf %28 : vector<64x64xf32> to vector<64x64xbf16>
    %55 = arith.truncf %53 : vector<64x64xf32> to vector<64x64xbf16>
    %cst_18 = arith.constant dense<0.000000e+00> : vector<64x64xf32>
    %56 = tpu.matmul %54, %55, %cst_18 {dimension_numbers = #tpu.dot_dimension_numbers<[1], [0], [0], [1], [0, 0, 1, 1], [], []>} : vector<64x64xbf16>, vector<64x64xbf16>, vector<64x64xf32> -> vector<64x64xf32>
    %57 = arith.addf %39, %56 : vector<64x64xf32>
    %cst_19 = arith.constant dense<0.000000e+00> : vector<64x64xf32>
    %58 = tpu.matmul %57, %57, %cst_19 {dimension_numbers = #tpu.dot_dimension_numbers<[1], [0], [0], [1], [0, 0, 1, 1], [], []>, precision = #tpu.contract_precision<fp32>} : vector<64x64xf32>, vector<64x64xf32>, vector<64x64xf32> -> vector<64x64xf32>
    %cst_20 = arith.constant dense<0.000000e+00> : vector<64x64xf32>
    %59 = tpu.matmul %58, %58, %cst_20 {dimension_numbers = #tpu.dot_dimension_numbers<[1], [0], [0], [1], [0, 0, 1, 1], [], []>, precision = #tpu.contract_precision<fp32>} : vector<64x64xf32>, vector<64x64xf32>, vector<64x64xf32> -> vector<64x64xf32>
    %cst_21 = arith.constant dense<0.000000e+00> : vector<64x64xf32>
    %60 = tpu.matmul %59, %59, %cst_21 {dimension_numbers = #tpu.dot_dimension_numbers<[1], [0], [0], [1], [0, 0, 1, 1], [], []>, precision = #tpu.contract_precision<fp32>} : vector<64x64xf32>, vector<64x64xf32>, vector<64x64xf32> -> vector<64x64xf32>
    %61 = arith.mulf %60, %4 : vector<64x64xf32>
    %cst_22 = arith.constant dense<0.000000e+00> : vector<64xf32>
    %62 = vector.multi_reduction <add>, %61, %cst_22 [1] : vector<64x64xf32> to vector<64xf32>
    %63 = vector.shape_cast %62 : vector<64xf32> to vector<64x1xf32>
    %64 = arith.mulf %60, %60 : vector<64x64xf32>
    %cst_23 = arith.constant dense<0.000000e+00> : vector<64xf32>
    %65 = vector.multi_reduction <add>, %64, %cst_23 [1] : vector<64x64xf32> to vector<64xf32>
    %66 = vector.shape_cast %65 : vector<64xf32> to vector<64x1xf32>
    %67 = tpu.concatenate %63, %66 in 1 : vector<64x1xf32>, vector<64x1xf32> -> vector<64x2xf32>
    %cst_24 = arith.constant dense<0.000000e+00> : vector<8x2xf32>
    %68 = tpu.matmul %5, %67, %cst_24 {dimension_numbers = #tpu.dot_dimension_numbers<[1], [0], [0], [1], [0, 0, 1, 1], [], []>, precision = #tpu.contract_precision<fp32>} : vector<8x64xf32>, vector<64x2xf32>, vector<8x2xf32> -> vector<8x2xf32>
    %69 = vector.extract_strided_slice %68 {offsets = [0, 0], sizes = [8, 1], strides = [1, 1]} : vector<8x2xf32> to vector<8x1xf32>
    %c0_25 = arith.constant 0 : index
    %c0_26 = arith.constant 0 : index
    %70 = memref.load %arg2[%c0_25, %c0_26] : memref<1x1xf32, #tpu.memory_space<smem>>
    %71 = vector.broadcast %70 : f32 to vector<8x1xf32>
    %72 = arith.addf %69, %71 : vector<8x1xf32>
    %73 = arith.negf %72 : vector<8x1xf32>
    %74 = math.exp %73 : vector<8x1xf32>
    %cst_27 = arith.constant 1.000000e+00 : f32
    %75 = vector.broadcast %cst_27 : f32 to vector<8x1xf32>
    %76 = arith.addf %75, %74 : vector<8x1xf32>
    %77 = arith.divf %75, %76 : vector<8x1xf32>
    %78 = vector.extract_strided_slice %68 {offsets = [0, 1], sizes = [8, 1], strides = [1, 1]} : vector<8x2xf32> to vector<8x1xf32>
    %79 = tpu.iota {dimensions = array<i32: 1>} : vector<8x128xi32>
    %c0_i32 = arith.constant 0 : i32
    %80 = vector.broadcast %c0_i32 : i32 to vector<8x128xi32>
    %81 = arith.cmpi eq, %79, %80 : vector<8x128xi32>
    %cst_28 = arith.constant 0.000000e+00 : f32
    %82 = vector.shape_cast %77 : vector<8x1xf32> to vector<8x1xf32>
    %83 = vector.broadcast %82 : vector<8x1xf32> to vector<8x128xf32>
    %84 = vector.broadcast %cst_28 : f32 to vector<8x128xf32>
    %85 = arith.select %81, %83, %84 : vector<8x128xi1>, vector<8x128xf32>
    %c1_i32 = arith.constant 1 : i32
    %86 = vector.broadcast %c1_i32 : i32 to vector<8x128xi32>
    %87 = arith.cmpi eq, %79, %86 : vector<8x128xi32>
    %cst_29 = arith.constant 0.000000e+00 : f32
    %88 = vector.shape_cast %78 : vector<8x1xf32> to vector<8x1xf32>
    %89 = vector.broadcast %88 : vector<8x1xf32> to vector<8x128xf32>
    %90 = vector.broadcast %cst_29 : f32 to vector<8x128xf32>
    %91 = arith.select %87, %89, %90 : vector<8x128xi1>, vector<8x128xf32>
    %92 = arith.addf %85, %91 : vector<8x128xf32>
    %c0_30 = arith.constant 0 : index
    %c0_31 = arith.constant 0 : index
    %93 = vector.load %arg3[%c0_30, %c0_31] : memref<8x128xf32, #tpu.memory_space<vmem>>, vector<8x128xf32>
    tpu.vector_store %arg3[%c0_30, %c0_31], %92 {strides = array<i32>} : memref<8x128xf32, #tpu.memory_space<vmem>>, vector<8x128xf32>,
    return
  }
}

</mosaic_0001>

<llo_original>
// kernel: tpu_custom_call.1
$region0: #{tpu_custom_call.1}
  #allocation0 [shape = 'u32[]', space=smem, size = 0x4, offset = 0x4, fixed_abs, tag = 'smem constant byte address 0x4 - core index']
  #allocation1 [shape = 'u32[144,128]{1,0:T(1,128)}', space=vmem, size = 0x12000, scoped, tag = 'internal scratch']
  #allocation2 [shape = 'f32[1,1]{1,0:T(1,128)S(6)}', space=smem, size = 0x200, scoped, tag = 'scoped memory for tpu_custom_call.1']
  %s0 = inlined_call_operand.vmem [shape: f32[64,2], index: 0, kind: input, shape index: {}]
  %s1 = inlined_call_operand.vmem [shape: f32[264,64], index: 1, kind: input, shape index: {}]
  %s2 = inlined_call_operand.<no memory space> [shape: f32[1,1], index: 2, kind: input, shape index: {}]
  %s3 = inlined_call_operand.hbm [shape: f32[8,128], index: 3, kind: output, shape index: {}]
  %s4 = sld [smem:[#allocation0]]
  $region22: #{tpu_custom_call.1} parent=0
    _
  %s6 = ssub.s32 1, %s4
  %s7 = scalar_select 0, %s6, %s4
  %8 = sst [smem:[#allocation2]] %s2
  $region1: #{tpu_custom_call.1} parent=0
    #allocation3 [shape = 'u8[4096]{0}', space=vmem, size = 0x1000, scoped, tag = 'output window, operand 0, single buffered']
    #allocation4 [shape = 's32[1]{0}', space=sflag, size = 0x4, scoped, tag = 'scoped memory for tpu_custom_call.1']
    %9 = vsyncpa [#allocation4], 0
    // Predicated region
    $region2: #{tpu_custom_call.1} parent=1 // pred_check
      _
    $region3: #{tpu_custom_call.1} parent=1 // pred_check_branch
      %11 = sbr.rel (0) target = $region5
    $region4: #{tpu_custom_call.1} parent=1 // pred_region
      _
    $region5: #{tpu_custom_call.1} parent=1 // pred_fallthru
      _
    // Predicated region
    $region6: #{tpu_custom_call.1} parent=1 // pred_check
      _
    $region7: #{tpu_custom_call.1} parent=1 // pred_check_branch
      %13 = sbr.rel (0) target = $region9
    $region8: #{tpu_custom_call.1} parent=1 // pred_region
      _
    $region9: #{tpu_custom_call.1} parent=1 // pred_fallthru
      _
    // Predicated region
    $region10: #{tpu_custom_call.1} parent=1 // pred_check
      _
    $region11: #{tpu_custom_call.1} parent=1 // pred_check_branch
      %15 = sbr.rel (0) target = $region13
    $region12: #{tpu_custom_call.1} parent=1 // pred_region
      _
    $region13: #{tpu_custom_call.1} parent=1 // pred_fallthru
      _
    %v17 = vld [vmem:[%s0] sm:$0xff]
    %v18 = vld [vmem:[%s0 + $0x8] sm:$0xff]
    %v19 = vld [vmem:[%s0 + $0x10] sm:$0xff]
    %v20 = vld [vmem:[%s0 + $0x18] sm:$0xff]
    %v21 = vld [vmem:[%s0 + $0x20] sm:$0xff]
    %v22 = vld [vmem:[%s0 + $0x28] sm:$0xff]
    %v23 = vld [vmem:[%s0 + $0x30] sm:$0xff]
    %v24 = vld [vmem:[%s0 + $0x38] sm:$0xff]
    %v25 = vld [vmem:[%s1] sm:$0xff]
    %v26 = vld [vmem:[%s1 + $0x8] sm:$0xff]
    %v27 = vld [vmem:[%s1 + $0x10] sm:$0xff]
    %v28 = vld [vmem:[%s1 + $0x18] sm:$0xff]
    %v29 = vld [vmem:[%s1 + $0x20] sm:$0xff]
    %v30 = vld [vmem:[%s1 + $0x28] sm:$0xff]
    %v31 = vld [vmem:[%s1 + $0x30] sm:$0xff]
    %v32 = vld [vmem:[%s1 + $0x38] sm:$0xff]
    %v33 = vld [vmem:[%s1 + $0x40] sm:$0xff]
    %v34 = vld [vmem:[%s1 + $0x48] sm:$0xff]
    %v35 = vld [vmem:[%s1 + $0x50] sm:$0xff]
    %v36 = vld [vmem:[%s1 + $0x58] sm:$0xff]
    %v37 = vld [vmem:[%s1 + $0x60] sm:$0xff]
    %v38 = vld [vmem:[%s1 + $0x68] sm:$0xff]
    %v39 = vld [vmem:[%s1 + $0x70] sm:$0xff]
    %v40 = vld [vmem:[%s1 + $0x78] sm:$0xff]
    %v41 = vld [vmem:[%s1 + $0x80] sm:$0xff]
    %v42 = vld [vmem:[%s1 + $0x88] sm:$0xff]
    %v43 = vld [vmem:[%s1 + $0x90] sm:$0xff]
    %v44 = vld [vmem:[%s1 + $0x98] sm:$0xff]
    %v45 = vld [vmem:[%s1 + $0xa0] sm:$0xff]
    %v46 = vld [vmem:[%s1 + $0xa8] sm:$0xff]
    %v47 = vld [vmem:[%s1 + $0xb0] sm:$0xff]
    %v48 = vld [vmem:[%s1 + $0xb8] sm:$0xff]
    %v49 = vld [vmem:[%s1 + $0xc0] sm:$0xff]
    %v50 = vld [vmem:[%s1 + $0xc8] sm:$0xff]
    %v51 = vld [vmem:[%s1 + $0xd0] sm:$0xff]
    %v52 = vld [vmem:[%s1 + $0xd8] sm:$0xff]
    %v53 = vld [vmem:[%s1 + $0xe0] sm:$0xff]
    %v54 = vld [vmem:[%s1 + $0xe8] sm:$0xff]
    %v55 = vld [vmem:[%s1 + $0xf0] sm:$0xff]
    %v56 = vld [vmem:[%s1 + $0xf8] sm:$0xff]
    %v57 = vld [vmem:[%s1 + $0x100] sm:$0xff]
    %59 = vset.pattern.permute.xlu0 0
    %60 = vperm.xlu0 %59, %v17
    %v61 = vpop.permute.xlu0 %60
    %64 = vset.pattern.permute.xlu0 0
    %65 = vperm.xlu0 %64, %v18
    %v66 = vpop.permute.xlu0 %65
    %69 = vset.pattern.permute.xlu0 0
    %70 = vperm.xlu0 %69, %v19
    %v71 = vpop.permute.xlu0 %70
    %74 = vset.pattern.permute.xlu0 0
    %75 = vperm.xlu0 %74, %v20
    %v76 = vpop.permute.xlu0 %75
    %79 = vset.pattern.permute.xlu0 0
    %80 = vperm.xlu0 %79, %v21
    %v81 = vpop.permute.xlu0 %80
    %84 = vset.pattern.permute.xlu0 0
    %85 = vperm.xlu0 %84, %v22
    %v86 = vpop.permute.xlu0 %85
    %89 = vset.pattern.permute.xlu0 0
    %90 = vperm.xlu0 %89, %v23
    %v91 = vpop.permute.xlu0 %90
    %94 = vset.pattern.permute.xlu0 0
    %95 = vperm.xlu0 %94, %v24
    %v96 = vpop.permute.xlu0 %95
    %v98 = vmul.f32 %v61, %v25
    %v99 = vmul.f32 %v66, %v26
    %v100 = vmul.f32 %v71, %v27
    %v101 = vmul.f32 %v76, %v28
    %v102 = vmul.f32 %v81, %v29
    %v103 = vmul.f32 %v86, %v30
    %v104 = vmul.f32 %v91, %v31
    %v105 = vmul.f32 %v96, %v32
    %106 = vset.pattern.permute.xlu0 1
    %107 = vperm.xlu0 %106, %v17
    %v108 = vpop.permute.xlu0 %107
    %110 = vset.pattern.permute.xlu0 1
    %111 = vperm.xlu0 %110, %v18
    %v112 = vpop.permute.xlu0 %111
    %114 = vset.pattern.permute.xlu0 1
    %115 = vperm.xlu0 %114, %v19
    %v116 = vpop.permute.xlu0 %115
    %118 = vset.pattern.permute.xlu0 1
    %119 = vperm.xlu0 %118, %v20
    %v120 = vpop.permute.xlu0 %119
    %122 = vset.pattern.permute.xlu0 1
    %123 = vperm.xlu0 %122, %v21
    %v124 = vpop.permute.xlu0 %123
    %126 = vset.pattern.permute.xlu0 1
    %127 = vperm.xlu0 %126, %v22
    %v128 = vpop.permute.xlu0 %127
    %130 = vset.pattern.permute.xlu0 1
    %131 = vperm.xlu0 %130, %v23
    %v132 = vpop.permute.xlu0 %131
    %134 = vset.pattern.permute.xlu0 1
    %135 = vperm.xlu0 %134, %v24
    %v136 = vpop.permute.xlu0 %135
    %v138 = vmul.f32 %v108, %v33
    %v139 = vmul.f32 %v112, %v34
    %v140 = vmul.f32 %v116, %v35
    %v141 = vmul.f32 %v120, %v36
    %v142 = vmul.f32 %v124, %v37
    %v143 = vmul.f32 %v128, %v38
    %v144 = vmul.f32 %v132, %v39
    %v145 = vmul.f32 %v136, %v40
    %v146 = vadd.f32 %v98, %v138
    %v147 = vadd.f32 %v99, %v139
    %v148 = vadd.f32 %v100, %v140
    %v149 = vadd.f32 %v101, %v141
    %v150 = vadd.f32 %v102, %v142
    %v151 = vadd.f32 %v103, %v143
    %v152 = vadd.f32 %v104, %v144
    %v153 = vadd.f32 %v105, %v145
    %v154 = vadd.f32 %v146, %v41
    %v155 = vadd.f32 %v147, %v42
    %v156 = vadd.f32 %v148, %v43
    %v157 = vadd.f32 %v149, %v44
    %v158 = vadd.f32 %v150, %v45
    %v159 = vadd.f32 %v151, %v46
    %v160 = vadd.f32 %v152, %v47
    %v161 = vadd.f32 %v153, %v48
    %v162 = vlaneseq
    %v163 = vshrl.u32 %v162, 7
    %v164 = vadd.s32 %v163, 8
    %v165 = vadd.s32 %v163, 16
    %v166 = vadd.s32 %v163, 24
    %v167 = vadd.s32 %v163, 32
    %v168 = vadd.s32 %v163, 40
    %v169 = vadd.s32 %v163, 48
    %v170 = vadd.s32 %v163, 56
    %v171 = vlaneseq
    %v172 = vand.u32 %v171, 127
    %vm173 = vcmp.eq.s32.totalorder %v163, %v172
    %vm174 = vcmp.eq.s32.totalorder %v164, %v172
    %vm175 = vcmp.eq.s32.totalorder %v165, %v172
    %vm176 = vcmp.eq.s32.totalorder %v166, %v172
    %vm177 = vcmp.eq.s32.totalorder %v167, %v172
    %vm178 = vcmp.eq.s32.totalorder %v168, %v172
    %vm179 = vcmp.eq.s32.totalorder %v169, %v172
    %vm180 = vcmp.eq.s32.totalorder %v170, %v172
    %v181 = vsel %vm173, 1, 0
    %v182 = vsel %vm174, 1, 0
    %v183 = vsel %vm175, 1, 0
    %v184 = vsel %vm176, 1, 0
    %v185 = vsel %vm177, 1, 0
    %v186 = vsel %vm178, 1, 0
    %v187 = vsel %vm179, 1, 0
    %v188 = vsel %vm180, 1, 0
    %v189 = vcvt.s32.f32 %v181
    %v190 = vcvt.s32.f32 %v182
    %v191 = vcvt.s32.f32 %v183
    %v192 = vcvt.s32.f32 %v184
    %v193 = vcvt.s32.f32 %v185
    %v194 = vcvt.s32.f32 %v186
    %v195 = vcvt.s32.f32 %v187
    %v196 = vcvt.s32.f32 %v188
    %v197 = vmul.f32 %v154, 0.125
    %v198 = vmul.f32 %v155, 0.125
    %v199 = vmul.f32 %v156, 0.125
    %v200 = vmul.f32 %v157, 0.125
    %v201 = vmul.f32 %v158, 0.125
    %v202 = vmul.f32 %v159, 0.125
    %v203 = vmul.f32 %v160, 0.125
    %v204 = vmul.f32 %v161, 0.125
    %v205 = vpack.c.bf16 %v198, %v197
    %v206 = vpack.c.bf16 %v200, %v199
    %v207 = vpack.c.bf16 %v202, %v201
    %v208 = vpack.c.bf16 %v204, %v203
    %vm209 = vcmask 523264
    %v211 = vsel %vm209, %v205, 0
    %v214 = vsel %vm209, %v206, 0
    %v217 = vsel %vm209, %v207, 0
    %v220 = vsel %vm209, %v208, 0
    %222 = vmatprep.subr.bf16.mxu0 0
    %223 = vmatpush1.bf16.msra.mxu0 0
    %224 = vmatprep.subr.bf16.mxu0 0
    %225 = vmatpush1.bf16.msra.mxu0 0
    %226 = vmatprep.subr.bf16.mxu0 0
    %227 = vmatpush1.bf16.msra.mxu0 0
    %228 = vmatprep.subr.bf16.mxu0 0
    %229 = vmatpush1.bf16.msra.mxu0 0
    %230 = vmatprep.subr.bf16.mxu0 0
    %231 = vmatpush1.bf16.msra.mxu0 %v208
    %232 = vmatprep.subr.bf16.mxu0 0
    %233 = vmatpush1.bf16.msra.mxu0 %v207
    %234 = vmatprep.subr.bf16.mxu0 0
    %235 = vmatpush1.bf16.msra.mxu0 %v206
    %236 = vmatprep.subr.bf16.mxu0 0
    %237 = vmatpush1.bf16.msra.mxu0 %v205
    %238 = vmatprep.subr.bf16.mxu0 0
    %239 = vmatpush2.bf16.msra.mxu0 0
    %240 = vmatprep.subr.bf16.mxu0 0
    %241 = vmatpush2.bf16.msra.mxu0 0
    %242 = vmatprep.subr.bf16.mxu0 0
    %243 = vmatpush2.bf16.msra.mxu0 0
    %244 = vmatprep.subr.bf16.mxu0 0
    %245 = vmatpush2.bf16.msra.mxu0 0
    %246 = vmatprep.subr.bf16.mxu0 0
    %247 = vmatpush2.bf16.msra.mxu0 0
    %248 = vmatprep.subr.bf16.mxu0 0
    %249 = vmatpush2.bf16.msra.mxu0 0
    %250 = vmatprep.subr.bf16.mxu0 0
    %251 = vmatpush2.bf16.msra.mxu0 0
    %252 = vmatprep.subr.bf16.mxu0 0
    %253 = vmatpush2.bf16.msra.mxu0 0
    %254 = vmatprep.mubr.bf16.mxu0 0
    %255 = vmatmul.mubr.bf16.gmra.mxu0 %v211
    %v256 = vpop.f32.mrf.mxu0
    %v257 = vadd.f32 0.0, %v256
    %v258 = vpop.f32.mrf.mxu0
    %v259 = vpop.f32.mrf.mxu0
    %v260 = vadd.f32 0.0, %v259
    %v261 = vpop.f32.mrf.mxu0
    %262 = vmatprep.mubr.bf16.mxu0 0
    %263 = vmatmul.mubr.bf16.gmra.mxu0 %v214
    %v264 = vpop.f32.mrf.mxu0
    %v265 = vadd.f32 0.0, %v264
    %v266 = vpop.f32.mrf.mxu0
    %v267 = vpop.f32.mrf.mxu0
    %v268 = vadd.f32 0.0, %v267
    %v269 = vpop.f32.mrf.mxu0
    %270 = vmatprep.mubr.bf16.mxu0 0
    %271 = vmatmul.mubr.bf16.gmra.mxu0 %v217
    %v272 = vpop.f32.mrf.mxu0
    %v273 = vadd.f32 0.0, %v272
    %v274 = vpop.f32.mrf.mxu0
    %v275 = vpop.f32.mrf.mxu0
    %v276 = vadd.f32 0.0, %v275
    %v277 = vpop.f32.mrf.mxu0
    %278 = vmatprep.mubr.bf16.mxu0 0
    %279 = vmatmul.mubr.bf16.gmra.mxu0 %v220
    %v280 = vpop.f32.mrf.mxu0
    %v281 = vadd.f32 0.0, %v280
    %v282 = vpop.f32.mrf.mxu0
    %v283 = vpop.f32.mrf.mxu0
    %v284 = vadd.f32 0.0, %v283
    %v285 = vpop.f32.mrf.mxu0
    %286 = vdwg.mxu0
    %v287 = vpack.c.bf16 %v260, %v257
    %v288 = vpack.c.bf16 %v268, %v265
    %v289 = vpack.c.bf16 %v276, %v273
    %v290 = vpack.c.bf16 %v284, %v281
    %299 = vrot.lane.b32.xlu0 %v257, 64
    %v300 = vpop.permute.xlu0 %299
    %301 = vrot.lane.b32.xlu0 %v260, 64
    %v302 = vpop.permute.xlu0 %301
    %303 = vrot.lane.b32.xlu0 %v265, 64
    %v304 = vpop.permute.xlu0 %303
    %305 = vrot.lane.b32.xlu0 %v268, 64
    %v306 = vpop.permute.xlu0 %305
    %307 = vrot.lane.b32.xlu0 %v273, 64
    %v308 = vpop.permute.xlu0 %307
    %309 = vrot.lane.b32.xlu0 %v276, 64
    %v310 = vpop.permute.xlu0 %309
    %311 = vrot.lane.b32.xlu0 %v281, 64
    %v312 = vpop.permute.xlu0 %311
    %313 = vrot.lane.b32.xlu0 %v284, 64
    %v314 = vpop.permute.xlu0 %313
    %v323 = vsel %vm209, %v197, %v300
    %v324 = vsel %vm209, %v198, %v302
    %v325 = vsel %vm209, %v199, %v304
    %v326 = vsel %vm209, %v200, %v306
    %v327 = vsel %vm209, %v201, %v308
    %v328 = vsel %vm209, %v202, %v310
    %v329 = vsel %vm209, %v203, %v312
    %v330 = vsel %vm209, %v204, %v314
    %v331 = vpack.c.bf16 %v324, %v323
    %v332 = vpack.c.bf16 %v326, %v325
    %v333 = vpack.c.bf16 %v328, %v327
    %v334 = vpack.c.bf16 %v330, %v329
    %v336 = vsel %vm209, %v287, 0
    %v339 = vsel %vm209, %v288, 0
    %v342 = vsel %vm209, %v289, 0
    %v345 = vsel %vm209, %v290, 0
    %347 = vmatprep.subr.bf16.mxu0 0
    %348 = vmatpush1.bf16.msra.mxu0 0
    %349 = vmatprep.subr.bf16.mxu0 0
    %350 = vmatpush1.bf16.msra.mxu0 0
    %351 = vmatprep.subr.bf16.mxu0 0
    %352 = vmatpush1.bf16.msra.mxu0 0
    %353 = vmatprep.subr.bf16.mxu0 0
    %354 = vmatpush1.bf16.msra.mxu0 0
    %355 = vmatprep.subr.bf16.mxu0 0
    %356 = vmatpush1.bf16.msra.mxu0 %v334
    %357 = vmatprep.subr.bf16.mxu0 0
    %358 = vmatpush1.bf16.msra.mxu0 %v333
    %359 = vmatprep.subr.bf16.mxu0 0
    %360 = vmatpush1.bf16.msra.mxu0 %v332
    %361 = vmatprep.subr.bf16.mxu0 0
    %362 = vmatpush1.bf16.msra.mxu0 %v331
    %363 = vmatprep.subr.bf16.mxu0 0
    %364 = vmatpush2.bf16.msra.mxu0 0
    %365 = vmatprep.subr.bf16.mxu0 0
    %366 = vmatpush2.bf16.msra.mxu0 0
    %367 = vmatprep.subr.bf16.mxu0 0
    %368 = vmatpush2.bf16.msra.mxu0 0
    %369 = vmatprep.subr.bf16.mxu0 0
    %370 = vmatpush2.bf16.msra.mxu0 0
    %371 = vmatprep.subr.bf16.mxu0 0
    %372 = vmatpush2.bf16.msra.mxu0 0
    %373 = vmatprep.subr.bf16.mxu0 0
    %374 = vmatpush2.bf16.msra.mxu0 0
    %375 = vmatprep.subr.bf16.mxu0 0
    %376 = vmatpush2.bf16.msra.mxu0 0
    %377 = vmatprep.subr.bf16.mxu0 0
    %378 = vmatpush2.bf16.msra.mxu0 0
    %379 = vmatprep.mubr.bf16.mxu0 0
    %380 = vmatmul.mubr.bf16.gmra.mxu0 %v336
    %v381 = vpop.f32.mrf.mxu0
    %v382 = vadd.f32 0.0, %v381
    %v383 = vpop.f32.mrf.mxu0
    %v384 = vpop.f32.mrf.mxu0
    %v385 = vadd.f32 0.0, %v384
    %v386 = vpop.f32.mrf.mxu0
    %387 = vmatprep.mubr.bf16.mxu0 0
    %388 = vmatmul.mubr.bf16.gmra.mxu0 %v339
    %v389 = vpop.f32.mrf.mxu0
    %v390 = vadd.f32 0.0, %v389
    %v391 = vpop.f32.mrf.mxu0
    %v392 = vpop.f32.mrf.mxu0
    %v393 = vadd.f32 0.0, %v392
    %v394 = vpop.f32.mrf.mxu0
    %395 = vmatprep.mubr.bf16.mxu0 0
    %396 = vmatmul.mubr.bf16.gmra.mxu0 %v342
    %v397 = vpop.f32.mrf.mxu0
    %v398 = vadd.f32 0.0, %v397
    %v399 = vpop.f32.mrf.mxu0
    %v400 = vpop.f32.mrf.mxu0
    %v401 = vadd.f32 0.0, %v400
    %v402 = vpop.f32.mrf.mxu0
    %403 = vmatprep.mubr.bf16.mxu0 0
    %404 = vmatmul.mubr.bf16.gmra.mxu0 %v345
    %v405 = vpop.f32.mrf.mxu0
    %v406 = vadd.f32 0.0, %v405
    %v407 = vpop.f32.mrf.mxu0
    %v408 = vpop.f32.mrf.mxu0
    %v409 = vadd.f32 0.0, %v408
    %v410 = vpop.f32.mrf.mxu0
    %411 = vdwg.mxu0
    %v412 = vadd.f32 %v189, %v197
    %v413 = vadd.f32 %v190, %v198
    %v414 = vadd.f32 %v191, %v199
    %v415 = vadd.f32 %v192, %v200
    %v416 = vadd.f32 %v193, %v201
    %v417 = vadd.f32 %v194, %v202
    %v418 = vadd.f32 %v195, %v203
    %v419 = vadd.f32 %v196, %v204
    %v420 = vmul.f32 %v257, 0.5
    %v421 = vmul.f32 %v260, 0.5
    %v422 = vmul.f32 %v265, 0.5
    %v423 = vmul.f32 %v268, 0.5
    %v424 = vmul.f32 %v273, 0.5
    %v425 = vmul.f32 %v276, 0.5
    %v426 = vmul.f32 %v281, 0.5
    %v427 = vmul.f32 %v284, 0.5
    %v428 = vadd.f32 %v412, %v420
    %v429 = vadd.f32 %v413, %v421
    %v430 = vadd.f32 %v414, %v422
    %v431 = vadd.f32 %v415, %v423
    %v432 = vadd.f32 %v416, %v424
    %v433 = vadd.f32 %v417, %v425
    %v434 = vadd.f32 %v418, %v426
    %v435 = vadd.f32 %v419, %v427
    %v436 = vmul.f32 %v382, 0.16666667
    %v437 = vmul.f32 %v385, 0.16666667
    %v438 = vmul.f32 %v390, 0.16666667
    %v439 = vmul.f32 %v393, 0.16666667
    %v440 = vmul.f32 %v398, 0.16666667
    %v441 = vmul.f32 %v401, 0.16666667
    %v442 = vmul.f32 %v406, 0.16666667
    %v443 = vmul.f32 %v409, 0.16666667
    %v444 = vadd.f32 %v428, %v436
    %v445 = vadd.f32 %v429, %v437
    %v446 = vadd.f32 %v430, %v438
    %v447 = vadd.f32 %v431, %v439
    %v448 = vadd.f32 %v432, %v440
    %v449 = vadd.f32 %v433, %v441
    %v450 = vadd.f32 %v434, %v442
    %v451 = vadd.f32 %v435, %v443
    %v452 = vmul.f32 %v189, 0.041666668
    %v453 = vmul.f32 %v190, 0.041666668
    %v454 = vmul.f32 %v191, 0.041666668
    %v455 = vmul.f32 %v192, 0.041666668
    %v456 = vmul.f32 %v193, 0.041666668
    %v457 = vmul.f32 %v194, 0.041666668
    %v458 = vmul.f32 %v195, 0.041666668
    %v459 = vmul.f32 %v196, 0.041666668
    %v460 = vmul.f32 %v197, 0.008333334
    %v461 = vmul.f32 %v198, 0.008333334
    %v462 = vmul.f32 %v199, 0.008333334
    %v463 = vmul.f32 %v200, 0.008333334
    %v464 = vmul.f32 %v201, 0.008333334
    %v465 = vmul.f32 %v202, 0.008333334
    %v466 = vmul.f32 %v203, 0.008333334
    %v467 = vmul.f32 %v204, 0.008333334
    %v468 = vadd.f32 %v452, %v460
    %v469 = vadd.f32 %v453, %v461
    %v470 = vadd.f32 %v454, %v462
    %v471 = vadd.f32 %v455, %v463
    %v472 = vadd.f32 %v456, %v464
    %v473 = vadd.f32 %v457, %v465
    %v474 = vadd.f32 %v458, %v466
    %v475 = vadd.f32 %v459, %v467
    %v476 = vmul.f32 %v257, 0.0013888889
    %v477 = vmul.f32 %v260, 0.0013888889
    %v478 = vmul.f32 %v265, 0.0013888889
    %v479 = vmul.f32 %v268, 0.0013888889
    %v480 = vmul.f32 %v273, 0.0013888889
    %v481 = vmul.f32 %v276, 0.0013888889
    %v482 = vmul.f32 %v281, 0.0013888889
    %v483 = vmul.f32 %v284, 0.0013888889
    %v484 = vadd.f32 %v468, %v476
    %v485 = vadd.f32 %v469, %v477
    %v486 = vadd.f32 %v470, %v478
    %v487 = vadd.f32 %v471, %v479
    %v488 = vadd.f32 %v472, %v480
    %v489 = vadd.f32 %v473, %v481
    %v490 = vadd.f32 %v474, %v482
    %v491 = vadd.f32 %v475, %v483
    %v492 = vmul.f32 %v382, 0.0001984127
    %v493 = vmul.f32 %v385, 0.0001984127
    %v494 = vmul.f32 %v390, 0.0001984127
    %v495 = vmul.f32 %v393, 0.0001984127
    %v496 = vmul.f32 %v398, 0.0001984127
    %v497 = vmul.f32 %v401, 0.0001984127
    %v498 = vmul.f32 %v406, 0.0001984127
    %v499 = vmul.f32 %v409, 0.0001984127
    %v500 = vadd.f32 %v484, %v492
    %v501 = vadd.f32 %v485, %v493
    %v502 = vadd.f32 %v486, %v494
    %v503 = vadd.f32 %v487, %v495
    %v504 = vadd.f32 %v488, %v496
    %v505 = vadd.f32 %v489, %v497
    %v506 = vadd.f32 %v490, %v498
    %v507 = vadd.f32 %v491, %v499
    %v508 = vmul.f32 %v382, 2.4801588e-05
    %v509 = vmul.f32 %v385, 2.4801588e-05
    %v510 = vmul.f32 %v390, 2.4801588e-05
    %v511 = vmul.f32 %v393, 2.4801588e-05
    %v512 = vmul.f32 %v398, 2.4801588e-05
    %v513 = vmul.f32 %v401, 2.4801588e-05
    %v514 = vmul.f32 %v406, 2.4801588e-05
    %v515 = vmul.f32 %v409, 2.4801588e-05
    %524 = vrot.lane.b32.xlu0 %v508, 64
    %v525 = vpop.permute.xlu0 %524
    %526 = vrot.lane.b32.xlu0 %v509, 64
    %v527 = vpop.permute.xlu0 %526
    %528 = vrot.lane.b32.xlu0 %v510, 64
    %v529 = vpop.permute.xlu0 %528
    %530 = vrot.lane.b32.xlu0 %v511, 64
    %v531 = vpop.permute.xlu0 %530
    %532 = vrot.lane.b32.xlu0 %v512, 64
    %v533 = vpop.permute.xlu0 %532
    %534 = vrot.lane.b32.xlu0 %v513, 64
    %v535 = vpop.permute.xlu0 %534
    %536 = vrot.lane.b32.xlu0 %v514, 64
    %v537 = vpop.permute.xlu0 %536
    %538 = vrot.lane.b32.xlu0 %v515, 64
    %v539 = vpop.permute.xlu0 %538
    %v548 = vadd.f32 %v500, %v525
    %v549 = vadd.f32 %v501, %v527
    %v550 = vadd.f32 %v502, %v529
    %v551 = vadd.f32 %v503, %v531
    %v552 = vadd.f32 %v504, %v533
    %v553 = vadd.f32 %v505, %v535
    %v554 = vadd.f32 %v506, %v537
    %v555 = vadd.f32 %v507, %v539
    %v556 = vpack.c.bf16 %v385, %v382
    %v557 = vpack.c.bf16 %v393, %v390
    %v558 = vpack.c.bf16 %v401, %v398
    %v559 = vpack.c.bf16 %v409, %v406
    %v560 = vpack.c.bf16 %v549, %v548
    %v561 = vpack.c.bf16 %v551, %v550
    %v562 = vpack.c.bf16 %v553, %v552
    %v563 = vpack.c.bf16 %v555, %v554
    %568 = vrot.lane.b32.xlu0 %v556, 64
    %v569 = vpop.permute.xlu0 %568
    %570 = vrot.lane.b32.xlu0 %v557, 64
    %v571 = vpop.permute.xlu0 %570
    %572 = vrot.lane.b32.xlu0 %v558, 64
    %v573 = vpop.permute.xlu0 %572
    %574 = vrot.lane.b32.xlu0 %v559, 64
    %v575 = vpop.permute.xlu0 %574
    %v577 = vsel %vm209, %v569, 0
    %v580 = vsel %vm209, %v571, 0
    %v583 = vsel %vm209, %v573, 0
    %v586 = vsel %vm209, %v575, 0
    %588 = vmatprep.subr.bf16.mxu0 0
    %589 = vmatpush1.bf16.msra.mxu0 0
    %590 = vmatprep.subr.bf16.mxu0 0
    %591 = vmatpush1.bf16.msra.mxu0 0
    %592 = vmatprep.subr.bf16.mxu0 0
    %593 = vmatpush1.bf16.msra.mxu0 0
    %594 = vmatprep.subr.bf16.mxu0 0
    %595 = vmatpush1.bf16.msra.mxu0 0
    %596 = vmatprep.subr.bf16.mxu0 0
    %597 = vmatpush1.bf16.msra.mxu0 %v563
    %598 = vmatprep.subr.bf16.mxu0 0
    %599 = vmatpush1.bf16.msra.mxu0 %v562
    %600 = vmatprep.subr.bf16.mxu0 0
    %601 = vmatpush1.bf16.msra.mxu0 %v561
    %602 = vmatprep.subr.bf16.mxu0 0
    %603 = vmatpush1.bf16.msra.mxu0 %v560
    %604 = vmatprep.subr.bf16.mxu0 0
    %605 = vmatpush2.bf16.msra.mxu0 0
    %606 = vmatprep.subr.bf16.mxu0 0
    %607 = vmatpush2.bf16.msra.mxu0 0
    %608 = vmatprep.subr.bf16.mxu0 0
    %609 = vmatpush2.bf16.msra.mxu0 0
    %610 = vmatprep.subr.bf16.mxu0 0
    %611 = vmatpush2.bf16.msra.mxu0 0
    %612 = vmatprep.subr.bf16.mxu0 0
    %613 = vmatpush2.bf16.msra.mxu0 0
    %614 = vmatprep.subr.bf16.mxu0 0
    %615 = vmatpush2.bf16.msra.mxu0 0
    %616 = vmatprep.subr.bf16.mxu0 0
    %617 = vmatpush2.bf16.msra.mxu0 0
    %618 = vmatprep.subr.bf16.mxu0 0
    %619 = vmatpush2.bf16.msra.mxu0 0
    %620 = vmatprep.mubr.bf16.mxu0 0
    %621 = vmatmul.mubr.bf16.gmra.mxu0 %v577
    %v622 = vpop.f32.mrf.mxu0
    %v623 = vadd.f32 0.0, %v622
    %v624 = vpop.f32.mrf.mxu0
    %v625 = vpop.f32.mrf.mxu0
    %v626 = vadd.f32 0.0, %v625
    %v627 = vpop.f32.mrf.mxu0
    %628 = vmatprep.mubr.bf16.mxu0 0
    %629 = vmatmul.mubr.bf16.gmra.mxu0 %v580
    %v630 = vpop.f32.mrf.mxu0
    %v631 = vadd.f32 0.0, %v630
    %v632 = vpop.f32.mrf.mxu0
    %v633 = vpop.f32.mrf.mxu0
    %v634 = vadd.f32 0.0, %v633
    %v635 = vpop.f32.mrf.mxu0
    %636 = vmatprep.mubr.bf16.mxu0 0
    %637 = vmatmul.mubr.bf16.gmra.mxu0 %v583
    %v638 = vpop.f32.mrf.mxu0
    %v639 = vadd.f32 0.0, %v638
    %v640 = vpop.f32.mrf.mxu0
    %v641 = vpop.f32.mrf.mxu0
    %v642 = vadd.f32 0.0, %v641
    %v643 = vpop.f32.mrf.mxu0
    %644 = vmatprep.mubr.bf16.mxu0 0
    %645 = vmatmul.mubr.bf16.gmra.mxu0 %v586
    %v646 = vpop.f32.mrf.mxu0
    %v647 = vadd.f32 0.0, %v646
    %v648 = vpop.f32.mrf.mxu0
    %v649 = vpop.f32.mrf.mxu0
    %v650 = vadd.f32 0.0, %v649
    %v651 = vpop.f32.mrf.mxu0
    %652 = vdwg.mxu0
    %v653 = vadd.f32 %v444, %v623
    %v654 = vadd.f32 %v445, %v626
    %v655 = vadd.f32 %v446, %v631
    %v656 = vadd.f32 %v447, %v634
    %v657 = vadd.f32 %v448, %v639
    %v658 = vadd.f32 %v449, %v642
    %v659 = vadd.f32 %v450, %v647
    %v660 = vadd.f32 %v451, %v650
    %v662 = vsel %vm209, %v653, 0
    %v665 = vsel %vm209, %v654, 0
    %v668 = vsel %vm209, %v655, 0
    %v671 = vsel %vm209, %v656, 0
    %v674 = vsel %vm209, %v657, 0
    %v677 = vsel %vm209, %v658, 0
    %v680 = vsel %vm209, %v659, 0
    %v683 = vsel %vm209, %v660, 0
    %685 = vmatprep.subr.mxu0 0.0
    %686 = vmatpush1.msra.mxu0 0.0
    %687 = vmatprep.subr.mxu0 0.0
    %688 = vmatpush1.msra.mxu0 0.0
    %689 = vmatprep.subr.mxu0 0.0
    %690 = vmatpush1.msra.mxu0 0.0
    %691 = vmatprep.subr.mxu0 0.0
    %692 = vmatpush1.msra.mxu0 0.0
    %693 = vmatprep.subr.mxu0 0.0
    %694 = vmatpush1.msra.mxu0 0.0
    %695 = vmatprep.subr.mxu0 0.0
    %696 = vmatpush1.msra.mxu0 0.0
    %697 = vmatprep.subr.mxu0 0.0
    %698 = vmatpush1.msra.mxu0 0.0
    %699 = vmatprep.subr.mxu0 0.0
    %700 = vmatpush1.msra.mxu0 0.0
    %701 = vmatprep.subr.mxu0 0.0
    %v702 = vand.u32 %v660, 4294901760
    %703 = vmatpush1.msra.mxu0 %v702
    %704 = vmatprep.subr.mxu0 0.0
    %v705 = vand.u32 %v659, 4294901760
    %706 = vmatpush1.msra.mxu0 %v705
    %707 = vmatprep.subr.mxu0 0.0
    %v708 = vand.u32 %v658, 4294901760
    %709 = vmatpush1.msra.mxu0 %v708
    %710 = vmatprep.subr.mxu0 0.0
    %v711 = vand.u32 %v657, 4294901760
    %712 = vmatpush1.msra.mxu0 %v711
    %713 = vmatprep.subr.mxu0 0.0
    %v714 = vand.u32 %v656, 4294901760
    %715 = vmatpush1.msra.mxu0 %v714
    %716 = vmatprep.subr.mxu0 0.0
    %v717 = vand.u32 %v655, 4294901760
    %718 = vmatpush1.msra.mxu0 %v717
    %719 = vmatprep.subr.mxu0 0.0
    %v720 = vand.u32 %v654, 4294901760
    %721 = vmatpush1.msra.mxu0 %v720
    %722 = vmatprep.subr.mxu0 0.0
    %v723 = vand.u32 %v653, 4294901760
    %724 = vmatpush1.msra.mxu0 %v723
    %725 = vmatprep.subr.mxu0 0.0
    %726 = vmatpush2.msra.mxu0 0.0
    %727 = vmatprep.subr.mxu0 0.0
    %728 = vmatpush2.msra.mxu0 0.0
    %729 = vmatprep.subr.mxu0 0.0
    %730 = vmatpush2.msra.mxu0 0.0
    %731 = vmatprep.subr.mxu0 0.0
    %732 = vmatpush2.msra.mxu0 0.0
    %733 = vmatprep.subr.mxu0 0.0
    %734 = vmatpush2.msra.mxu0 0.0
    %735 = vmatprep.subr.mxu0 0.0
    %736 = vmatpush2.msra.mxu0 0.0
    %737 = vmatprep.subr.mxu0 0.0
    %738 = vmatpush2.msra.mxu0 0.0
    %739 = vmatprep.subr.mxu0 0.0
    %740 = vmatpush2.msra.mxu0 0.0
    %741 = vmatprep.subr.mxu0 0.0
    %742 = vmatpush2.msra.mxu0 0.0
    %743 = vmatprep.subr.mxu0 0.0
    %744 = vmatpush2.msra.mxu0 0.0
    %745 = vmatprep.subr.mxu0 0.0
    %746 = vmatpush2.msra.mxu0 0.0
    %747 = vmatprep.subr.mxu0 0.0
    %748 = vmatpush2.msra.mxu0 0.0
    %749 = vmatprep.subr.mxu0 0.0
    %750 = vmatpush2.msra.mxu0 0.0
    %751 = vmatprep.subr.mxu0 0.0
    %752 = vmatpush2.msra.mxu0 0.0
    %753 = vmatprep.subr.mxu0 0.0
    %754 = vmatpush2.msra.mxu0 0.0
    %755 = vmatprep.subr.mxu0 0.0
    %756 = vmatpush2.msra.mxu0 0.0
    %757 = vmatprep.mubr.f32.mxu0 0.0
    %v758 = vand.u32 %v662, 4294901760
    %v759 = vsub.f32 %v662, %v758
    %v760 = vand.u32 %v759, 4294901760
    %v761 = vsub.f32 %v759, %v760
    %v762 = vand.u32 %v761, 4294901760
    %763 = vmatmul.mubr.f32.gmra.mxu0 %v762
    %v764 = vpop.f32.mrf.mxu0
    %v765 = vadd.f32 0.0, %v764
    %v766 = vpop.f32.mrf.mxu0
    %767 = vmatprep.mubr.f32.mxu0 0.0
    %v768 = vand.u32 %v665, 4294901760
    %v769 = vsub.f32 %v665, %v768
    %v770 = vand.u32 %v769, 4294901760
    %v771 = vsub.f32 %v769, %v770
    %v772 = vand.u32 %v771, 4294901760
    %773 = vmatmul.mubr.f32.gmra.mxu0 %v772
    %v774 = vpop.f32.mrf.mxu0
    %v775 = vadd.f32 0.0, %v774
    %v776 = vpop.f32.mrf.mxu0
    %777 = vmatprep.mubr.f32.mxu0 0.0
    %v778 = vand.u32 %v668, 4294901760
    %v779 = vsub.f32 %v668, %v778
    %v780 = vand.u32 %v779, 4294901760
    %v781 = vsub.f32 %v779, %v780
    %v782 = vand.u32 %v781, 4294901760
    %783 = vmatmul.mubr.f32.gmra.mxu0 %v782
    %v784 = vpop.f32.mrf.mxu0
    %v785 = vadd.f32 0.0, %v784
    %v786 = vpop.f32.mrf.mxu0
    %787 = vmatprep.mubr.f32.mxu0 0.0
    %v788 = vand.u32 %v671, 4294901760
    %v789 = vsub.f32 %v671, %v788
    %v790 = vand.u32 %v789, 4294901760
    %v791 = vsub.f32 %v789, %v790
    %v792 = vand.u32 %v791, 4294901760
    %793 = vmatmul.mubr.f32.gmra.mxu0 %v792
    %v794 = vpop.f32.mrf.mxu0
    %v795 = vadd.f32 0.0, %v794
    %v796 = vpop.f32.mrf.mxu0
    %797 = vmatprep.mubr.f32.mxu0 0.0
    %v798 = vand.u32 %v674, 4294901760
    %v799 = vsub.f32 %v674, %v798
    %v800 = vand.u32 %v799, 4294901760
    %v801 = vsub.f32 %v799, %v800
    %v802 = vand.u32 %v801, 4294901760
    %803 = vmatmul.mubr.f32.gmra.mxu0 %v802
    %v804 = vpop.f32.mrf.mxu0
    %v805 = vadd.f32 0.0, %v804
    %v806 = vpop.f32.mrf.mxu0
    %807 = vmatprep.mubr.f32.mxu0 0.0
    %v808 = vand.u32 %v677, 4294901760
    %v809 = vsub.f32 %v677, %v808
    %v810 = vand.u32 %v809, 4294901760
    %v811 = vsub.f32 %v809, %v810
    %v812 = vand.u32 %v811, 4294901760
    %813 = vmatmul.mubr.f32.gmra.mxu0 %v812
    %v814 = vpop.f32.mrf.mxu0
    %v815 = vadd.f32 0.0, %v814
    %v816 = vpop.f32.mrf.mxu0
    %817 = vmatprep.mubr.f32.mxu0 0.0
    %v818 = vand.u32 %v680, 4294901760
    %v819 = vsub.f32 %v680, %v818
    %v820 = vand.u32 %v819, 4294901760
    %v821 = vsub.f32 %v819, %v820
    %v822 = vand.u32 %v821, 4294901760
    %823 = vmatmul.mubr.f32.gmra.mxu0 %v822
    %v824 = vpop.f32.mrf.mxu0
    %v825 = vadd.f32 0.0, %v824
    %v826 = vpop.f32.mrf.mxu0
    %827 = vmatprep.mubr.f32.mxu0 0.0
    %v828 = vand.u32 %v683, 4294901760
    %v829 = vsub.f32 %v683, %v828
    %v830 = vand.u32 %v829, 4294901760
    %v831 = vsub.f32 %v829, %v830
    %v832 = vand.u32 %v831, 4294901760
    %833 = vmatmul.mubr.f32.gmra.mxu0 %v832
    %v834 = vpop.f32.mrf.mxu0
    %v835 = vadd.f32 0.0, %v834
    %v836 = vpop.f32.mrf.mxu0
    %837 = vdwg.mxu0
    %838 = vmatprep.subr.mxu0 0.0
    %839 = vmatpush1.msra.mxu0 0.0
    %840 = vmatprep.subr.mxu0 0.0
    %841 = vmatpush1.msra.mxu0 0.0
    %842 = vmatprep.subr.mxu0 0.0
    %843 = vmatpush1.msra.mxu0 0.0
    %844 = vmatprep.subr.mxu0 0.0
    %845 = vmatpush1.msra.mxu0 0.0
    %846 = vmatprep.subr.mxu0 0.0
    %847 = vmatpush1.msra.mxu0 0.0
    %848 = vmatprep.subr.mxu0 0.0
    %849 = vmatpush1.msra.mxu0 0.0
    %850 = vmatprep.subr.mxu0 0.0
    %851 = vmatpush1.msra.mxu0 0.0
    %852 = vmatprep.subr.mxu0 0.0
    %853 = vmatpush1.msra.mxu0 0.0
    %854 = vmatprep.subr.mxu0 0.0
    %v855 = vand.u32 %v660, 4294901760
    %v856 = vsub.f32 %v660, %v855
    %v857 = vand.u32 %v856, 4294901760
    %v858 = vsub.f32 %v856, %v857
    %v859 = vand.u32 %v858, 4294901760
    %860 = vmatpush1.msra.mxu0 %v859
    %861 = vmatprep.subr.mxu0 0.0
    %v862 = vand.u32 %v659, 4294901760
    %v863 = vsub.f32 %v659, %v862
    %v864 = vand.u32 %v863, 4294901760
    %v865 = vsub.f32 %v863, %v864
    %v866 = vand.u32 %v865, 4294901760
    %867 = vmatpush1.msra.mxu0 %v866
    %868 = vmatprep.subr.mxu0 0.0
    %v869 = vand.u32 %v658, 4294901760
    %v870 = vsub.f32 %v658, %v869
    %v871 = vand.u32 %v870, 4294901760
    %v872 = vsub.f32 %v870, %v871
    %v873 = vand.u32 %v872, 4294901760
    %874 = vmatpush1.msra.mxu0 %v873
    %875 = vmatprep.subr.mxu0 0.0
    %v876 = vand.u32 %v657, 4294901760
    %v877 = vsub.f32 %v657, %v876
    %v878 = vand.u32 %v877, 4294901760
    %v879 = vsub.f32 %v877, %v878
    %v880 = vand.u32 %v879, 4294901760
    %881 = vmatpush1.msra.mxu0 %v880
    %882 = vmatprep.subr.mxu0 0.0
    %v883 = vand.u32 %v656, 4294901760
    %v884 = vsub.f32 %v656, %v883
    %v885 = vand.u32 %v884, 4294901760
    %v886 = vsub.f32 %v884, %v885
    %v887 = vand.u32 %v886, 4294901760
    %888 = vmatpush1.msra.mxu0 %v887
    %889 = vmatprep.subr.mxu0 0.0
    %v890 = vand.u32 %v655, 4294901760
    %v891 = vsub.f32 %v655, %v890
    %v892 = vand.u32 %v891, 4294901760
    %v893 = vsub.f32 %v891, %v892
    %v894 = vand.u32 %v893, 4294901760
    %895 = vmatpush1.msra.mxu0 %v894
    %896 = vmatprep.subr.mxu0 0.0
    %v897 = vand.u32 %v654, 4294901760
    %v898 = vsub.f32 %v654, %v897
    %v899 = vand.u32 %v898, 4294901760
    %v900 = vsub.f32 %v898, %v899
    %v901 = vand.u32 %v900, 4294901760
    %902 = vmatpush1.msra.mxu0 %v901
    %903 = vmatprep.subr.mxu0 0.0
    %v904 = vand.u32 %v653, 4294901760
    %v905 = vsub.f32 %v653, %v904
    %v906 = vand.u32 %v905, 4294901760
    %v907 = vsub.f32 %v905, %v906
    %v908 = vand.u32 %v907, 4294901760
    %909 = vmatpush1.msra.mxu0 %v908
    %910 = vmatprep.subr.mxu0 0.0
    %911 = vmatpush2.msra.mxu0 0.0
    %912 = vmatprep.subr.mxu0 0.0
    %913 = vmatpush2.msra.mxu0 0.0
    %914 = vmatprep.subr.mxu0 0.0
    %915 = vmatpush2.msra.mxu0 0.0
    %916 = vmatprep.subr.mxu0 0.0
    %917 = vmatpush2.msra.mxu0 0.0
    %918 = vmatprep.subr.mxu0 0.0
    %919 = vmatpush2.msra.mxu0 0.0
    %920 = vmatprep.subr.mxu0 0.0
    %921 = vmatpush2.msra.mxu0 0.0
    %922 = vmatprep.subr.mxu0 0.0
    %923 = vmatpush2.msra.mxu0 0.0
    %924 = vmatprep.subr.mxu0 0.0
    %925 = vmatpush2.msra.mxu0 0.0
    %926 = vmatprep.subr.mxu0 0.0
    %927 = vmatpush2.msra.mxu0 0.0
    %928 = vmatprep.subr.mxu0 0.0
    %929 = vmatpush2.msra.mxu0 0.0
    %930 = vmatprep.subr.mxu0 0.0
    %931 = vmatpush2.msra.mxu0 0.0
    %932 = vmatprep.subr.mxu0 0.0
    %933 = vmatpush2.msra.mxu0 0.0
    %934 = vmatprep.subr.mxu0 0.0
    %935 = vmatpush2.msra.mxu0 0.0
    %936 = vmatprep.subr.mxu0 0.0
    %937 = vmatpush2.msra.mxu0 0.0
    %938 = vmatprep.subr.mxu0 0.0
    %939 = vmatpush2.msra.mxu0 0.0
    %940 = vmatprep.subr.mxu0 0.0
    %941 = vmatpush2.msra.mxu0 0.0
    %942 = vmatprep.mubr.f32.mxu0 0.0
    %v943 = vand.u32 %v662, 4294901760
    %944 = vmatmul.mubr.f32.gmra.mxu0 %v943
    %v945 = vpop.f32.mrf.mxu0
    %v946 = vadd.f32 %v765, %v945
    %v947 = vpop.f32.mrf.mxu0
    %948 = vmatprep.mubr.f32.mxu0 0.0
    %v949 = vand.u32 %v665, 4294901760
    %950 = vmatmul.mubr.f32.gmra.mxu0 %v949
    %v951 = vpop.f32.mrf.mxu0
    %v952 = vadd.f32 %v775, %v951
    %v953 = vpop.f32.mrf.mxu0
    %954 = vmatprep.mubr.f32.mxu0 0.0
    %v955 = vand.u32 %v668, 4294901760
    %956 = vmatmul.mubr.f32.gmra.mxu0 %v955
    %v957 = vpop.f32.mrf.mxu0
    %v958 = vadd.f32 %v785, %v957
    %v959 = vpop.f32.mrf.mxu0
    %960 = vmatprep.mubr.f32.mxu0 0.0
    %v961 = vand.u32 %v671, 4294901760
    %962 = vmatmul.mubr.f32.gmra.mxu0 %v961
    %v963 = vpop.f32.mrf.mxu0
    %v964 = vadd.f32 %v795, %v963
    %v965 = vpop.f32.mrf.mxu0
    %966 = vmatprep.mubr.f32.mxu0 0.0
    %v967 = vand.u32 %v674, 4294901760
    %968 = vmatmul.mubr.f32.gmra.mxu0 %v967
    %v969 = vpop.f32.mrf.mxu0
    %v970 = vadd.f32 %v805, %v969
    %v971 = vpop.f32.mrf.mxu0
    %972 = vmatprep.mubr.f32.mxu0 0.0
    %v973 = vand.u32 %v677, 4294901760
    %974 = vmatmul.mubr.f32.gmra.mxu0 %v973
    %v975 = vpop.f32.mrf.mxu0
    %v976 = vadd.f32 %v815, %v975
    %v977 = vpop.f32.mrf.mxu0
    %978 = vmatprep.mubr.f32.mxu0 0.0
    %v979 = vand.u32 %v680, 4294901760
    %980 = vmatmul.mubr.f32.gmra.mxu0 %v979
    %v981 = vpop.f32.mrf.mxu0
    %v982 = vadd.f32 %v825, %v981
    %v983 = vpop.f32.mrf.mxu0
    %984 = vmatprep.mubr.f32.mxu0 0.0
    %v985 = vand.u32 %v683, 4294901760
    %986 = vmatmul.mubr.f32.gmra.mxu0 %v985
    %v987 = vpop.f32.mrf.mxu0
    %v988 = vadd.f32 %v835, %v987
    %v989 = vpop.f32.mrf.mxu0
    %990 = vdwg.mxu0
    %991 = vmatprep.subr.mxu0 0.0
    %992 = vmatpush1.msra.mxu0 0.0
    %993 = vmatprep.subr.mxu0 0.0
    %994 = vmatpush1.msra.mxu0 0.0
    %995 = vmatprep.subr.mxu0 0.0
    %996 = vmatpush1.msra.mxu0 0.0
    %997 = vmatprep.subr.mxu0 0.0
    %998 = vmatpush1.msra.mxu0 0.0
    %999 = vmatprep.subr.mxu0 0.0
    %1000 = vmatpush1.msra.mxu0 0.0
    %1001 = vmatprep.subr.mxu0 0.0
    %1002 = vmatpush1.msra.mxu0 0.0
    %1003 = vmatprep.subr.mxu0 0.0
    %1004 = vmatpush1.msra.mxu0 0.0
    %1005 = vmatprep.subr.mxu0 0.0
    %1006 = vmatpush1.msra.mxu0 0.0
    %1007 = vmatprep.subr.mxu0 0.0
    %v1008 = vand.u32 %v660, 4294901760
    %v1009 = vsub.f32 %v660, %v1008
    %1010 = vmatpush1.msra.mxu0 %v1009
    %1011 = vmatprep.subr.mxu0 0.0
    %v1012 = vand.u32 %v659, 4294901760
    %v1013 = vsub.f32 %v659, %v1012
    %1014 = vmatpush1.msra.mxu0 %v1013
    %1015 = vmatprep.subr.mxu0 0.0
    %v1016 = vand.u32 %v658, 4294901760
    %v1017 = vsub.f32 %v658, %v1016
    %1018 = vmatpush1.msra.mxu0 %v1017
    %1019 = vmatprep.subr.mxu0 0.0
    %v1020 = vand.u32 %v657, 4294901760
    %v1021 = vsub.f32 %v657, %v1020
    %1022 = vmatpush1.msra.mxu0 %v1021
    %1023 = vmatprep.subr.mxu0 0.0
    %v1024 = vand.u32 %v656, 4294901760
    %v1025 = vsub.f32 %v656, %v1024
    %1026 = vmatpush1.msra.mxu0 %v1025
    %1027 = vmatprep.subr.mxu0 0.0
    %v1028 = vand.u32 %v655, 4294901760
    %v1029 = vsub.f32 %v655, %v1028
    %1030 = vmatpush1.msra.mxu0 %v1029
    %1031 = vmatprep.subr.mxu0 0.0
    %v1032 = vand.u32 %v654, 4294901760
    %v1033 = vsub.f32 %v654, %v1032
    %1034 = vmatpush1.msra.mxu0 %v1033
    %1035 = vmatprep.subr.mxu0 0.0
    %v1036 = vand.u32 %v653, 4294901760
    %v1037 = vsub.f32 %v653, %v1036
    %1038 = vmatpush1.msra.mxu0 %v1037
    %1039 = vmatprep.subr.mxu0 0.0
    %1040 = vmatpush2.msra.mxu0 0.0
    %1041 = vmatprep.subr.mxu0 0.0
    %1042 = vmatpush2.msra.mxu0 0.0
    %1043 = vmatprep.subr.mxu0 0.0
    %1044 = vmatpush2.msra.mxu0 0.0
    %1045 = vmatprep.subr.mxu0 0.0
    %1046 = vmatpush2.msra.mxu0 0.0
    %1047 = vmatprep.subr.mxu0 0.0
    %1048 = vmatpush2.msra.mxu0 0.0
    %1049 = vmatprep.subr.mxu0 0.0
    %1050 = vmatpush2.msra.mxu0 0.0
    %1051 = vmatprep.subr.mxu0 0.0
    %1052 = vmatpush2.msra.mxu0 0.0
    %1053 = vmatprep.subr.mxu0 0.0
    %1054 = vmatpush2.msra.mxu0 0.0
    %1055 = vmatprep.subr.mxu0 0.0
    %1056 = vmatpush2.msra.mxu0 0.0
    %1057 = vmatprep.subr.mxu0 0.0
    %1058 = vmatpush2.msra.mxu0 0.0
    %1059 = vmatprep.subr.mxu0 0.0
    %1060 = vmatpush2.msra.mxu0 0.0
    %1061 = vmatprep.subr.mxu0 0.0
    %1062 = vmatpush2.msra.mxu0 0.0
    %1063 = vmatprep.subr.mxu0 0.0
    %1064 = vmatpush2.msra.mxu0 0.0
    %1065 = vmatprep.subr.mxu0 0.0
    %1066 = vmatpush2.msra.mxu0 0.0
    %1067 = vmatprep.subr.mxu0 0.0
    %1068 = vmatpush2.msra.mxu0 0.0
    %1069 = vmatprep.subr.mxu0 0.0
    %1070 = vmatpush2.msra.mxu0 0.0
    %1071 = vmatprep.mubr.f32.mxu0 0.0
    %v1072 = vand.u32 %v662, 4294901760
    %v1073 = vsub.f32 %v662, %v1072
    %1074 = vmatmul.mubr.f32.gmra.mxu0 %v1073
    %v1075 = vpop.f32.mrf.mxu0
    %v1076 = vadd.f32 %v946, %v1075
    %v1077 = vpop.f32.mrf.mxu0
    %1078 = vmatprep.mubr.f32.mxu0 0.0
    %v1079 = vand.u32 %v665, 4294901760
    %v1080 = vsub.f32 %v665, %v1079
    %1081 = vmatmul.mubr.f32.gmra.mxu0 %v1080
    %v1082 = vpop.f32.mrf.mxu0
    %v1083 = vadd.f32 %v952, %v1082
    %v1084 = vpop.f32.mrf.mxu0
    %1085 = vmatprep.mubr.f32.mxu0 0.0
    %v1086 = vand.u32 %v668, 4294901760
    %v1087 = vsub.f32 %v668, %v1086
    %1088 = vmatmul.mubr.f32.gmra.mxu0 %v1087
    %v1089 = vpop.f32.mrf.mxu0
    %v1090 = vadd.f32 %v958, %v1089
    %v1091 = vpop.f32.mrf.mxu0
    %1092 = vmatprep.mubr.f32.mxu0 0.0
    %v1093 = vand.u32 %v671, 4294901760
    %v1094 = vsub.f32 %v671, %v1093
    %1095 = vmatmul.mubr.f32.gmra.mxu0 %v1094
    %v1096 = vpop.f32.mrf.mxu0
    %v1097 = vadd.f32 %v964, %v1096
    %v1098 = vpop.f32.mrf.mxu0
    %1099 = vmatprep.mubr.f32.mxu0 0.0
    %v1100 = vand.u32 %v674, 4294901760
    %v1101 = vsub.f32 %v674, %v1100
    %1102 = vmatmul.mubr.f32.gmra.mxu0 %v1101
    %v1103 = vpop.f32.mrf.mxu0
    %v1104 = vadd.f32 %v970, %v1103
    %v1105 = vpop.f32.mrf.mxu0
    %1106 = vmatprep.mubr.f32.mxu0 0.0
    %v1107 = vand.u32 %v677, 4294901760
    %v1108 = vsub.f32 %v677, %v1107
    %1109 = vmatmul.mubr.f32.gmra.mxu0 %v1108
    %v1110 = vpop.f32.mrf.mxu0
    %v1111 = vadd.f32 %v976, %v1110
    %v1112 = vpop.f32.mrf.mxu0
    %1113 = vmatprep.mubr.f32.mxu0 0.0
    %v1114 = vand.u32 %v680, 4294901760
    %v1115 = vsub.f32 %v680, %v1114
    %1116 = vmatmul.mubr.f32.gmra.mxu0 %v1115
    %v1117 = vpop.f32.mrf.mxu0
    %v1118 = vadd.f32 %v982, %v1117
    %v1119 = vpop.f32.mrf.mxu0
    %1120 = vmatprep.mubr.f32.mxu0 0.0
    %v1121 = vand.u32 %v683, 4294901760
    %v1122 = vsub.f32 %v683, %v1121
    %1123 = vmatmul.mubr.f32.gmra.mxu0 %v1122
    %v1124 = vpop.f32.mrf.mxu0
    %v1125 = vadd.f32 %v988, %v1124
    %v1126 = vpop.f32.mrf.mxu0
    %1127 = vdwg.mxu0
    %1128 = vmatprep.subr.mxu0 0.0
    %1129 = vmatpush1.msra.mxu0 0.0
    %1130 = vmatprep.subr.mxu0 0.0
    %1131 = vmatpush1.msra.mxu0 0.0
    %1132 = vmatprep.subr.mxu0 0.0
    %1133 = vmatpush1.msra.mxu0 0.0
    %1134 = vmatprep.subr.mxu0 0.0
    %1135 = vmatpush1.msra.mxu0 0.0
    %1136 = vmatprep.subr.mxu0 0.0
    %1137 = vmatpush1.msra.mxu0 0.0
    %1138 = vmatprep.subr.mxu0 0.0
    %1139 = vmatpush1.msra.mxu0 0.0
    %1140 = vmatprep.subr.mxu0 0.0
    %1141 = vmatpush1.msra.mxu0 0.0
    %1142 = vmatprep.subr.mxu0 0.0
    %1143 = vmatpush1.msra.mxu0 0.0
    %1144 = vmatprep.subr.mxu0 0.0
    %v1145 = vand.u32 %v660, 4294901760
    %1146 = vmatpush1.msra.mxu0 %v1145
    %1147 = vmatprep.subr.mxu0 0.0
    %v1148 = vand.u32 %v659, 4294901760
    %1149 = vmatpush1.msra.mxu0 %v1148
    %1150 = vmatprep.subr.mxu0 0.0
    %v1151 = vand.u32 %v658, 4294901760
    %1152 = vmatpush1.msra.mxu0 %v1151
    %1153 = vmatprep.subr.mxu0 0.0
    %v1154 = vand.u32 %v657, 4294901760
    %1155 = vmatpush1.msra.mxu0 %v1154
    %1156 = vmatprep.subr.mxu0 0.0
    %v1157 = vand.u32 %v656, 4294901760
    %1158 = vmatpush1.msra.mxu0 %v1157
    %1159 = vmatprep.subr.mxu0 0.0
    %v1160 = vand.u32 %v655, 4294901760
    %1161 = vmatpush1.msra.mxu0 %v1160
    %1162 = vmatprep.subr.mxu0 0.0
    %v1163 = vand.u32 %v654, 4294901760
    %1164 = vmatpush1.msra.mxu0 %v1163
    %1165 = vmatprep.subr.mxu0 0.0
    %v1166 = vand.u32 %v653, 4294901760
    %1167 = vmatpush1.msra.mxu0 %v1166
    %1168 = vmatprep.subr.mxu0 0.0
    %1169 = vmatpush2.msra.mxu0 0.0
    %1170 = vmatprep.subr.mxu0 0.0
    %1171 = vmatpush2.msra.mxu0 0.0
    %1172 = vmatprep.subr.mxu0 0.0
    %1173 = vmatpush2.msra.mxu0 0.0
    %1174 = vmatprep.subr.mxu0 0.0
    %1175 = vmatpush2.msra.mxu0 0.0
    %1176 = vmatprep.subr.mxu0 0.0
    %1177 = vmatpush2.msra.mxu0 0.0
    %1178 = vmatprep.subr.mxu0 0.0
    %1179 = vmatpush2.msra.mxu0 0.0
    %1180 = vmatprep.subr.mxu0 0.0
    %1181 = vmatpush2.msra.mxu0 0.0
    %1182 = vmatprep.subr.mxu0 0.0
    %1183 = vmatpush2.msra.mxu0 0.0
    %1184 = vmatprep.subr.mxu0 0.0
    %1185 = vmatpush2.msra.mxu0 0.0
    %1186 = vmatprep.subr.mxu0 0.0
    %1187 = vmatpush2.msra.mxu0 0.0
    %1188 = vmatprep.subr.mxu0 0.0
    %1189 = vmatpush2.msra.mxu0 0.0
    %1190 = vmatprep.subr.mxu0 0.0
    %1191 = vmatpush2.msra.mxu0 0.0
    %1192 = vmatprep.subr.mxu0 0.0
    %1193 = vmatpush2.msra.mxu0 0.0
    %1194 = vmatprep.subr.mxu0 0.0
    %1195 = vmatpush2.msra.mxu0 0.0
    %1196 = vmatprep.subr.mxu0 0.0
    %1197 = vmatpush2.msra.mxu0 0.0
    %1198 = vmatprep.subr.mxu0 0.0
    %1199 = vmatpush2.msra.mxu0 0.0
    %1200 = vmatprep.mubr.f32.mxu0 0.0
    %v1201 = vand.u32 %v662, 4294901760
    %v1202 = vsub.f32 %v662, %v1201
    %v1203 = vand.u32 %v1202, 4294901760
    %1204 = vmatmul.mubr.f32.gmra.mxu0 %v1203
    %v1205 = vpop.f32.mrf.mxu0
    %v1206 = vadd.f32 %v1076, %v1205
    %v1207 = vpop.f32.mrf.mxu0
    %1208 = vmatprep.mubr.f32.mxu0 0.0
    %v1209 = vand.u32 %v665, 4294901760
    %v1210 = vsub.f32 %v665, %v1209
    %v1211 = vand.u32 %v1210, 4294901760
    %1212 = vmatmul.mubr.f32.gmra.mxu0 %v1211
    %v1213 = vpop.f32.mrf.mxu0
    %v1214 = vadd.f32 %v1083, %v1213
    %v1215 = vpop.f32.mrf.mxu0
    %1216 = vmatprep.mubr.f32.mxu0 0.0
    %v1217 = vand.u32 %v668, 4294901760
    %v1218 = vsub.f32 %v668, %v1217
    %v1219 = vand.u32 %v1218, 4294901760
    %1220 = vmatmul.mubr.f32.gmra.mxu0 %v1219
    %v1221 = vpop.f32.mrf.mxu0
    %v1222 = vadd.f32 %v1090, %v1221
    %v1223 = vpop.f32.mrf.mxu0
    %1224 = vmatprep.mubr.f32.mxu0 0.0
    %v1225 = vand.u32 %v671, 4294901760
    %v1226 = vsub.f32 %v671, %v1225
    %v1227 = vand.u32 %v1226, 4294901760
    %1228 = vmatmul.mubr.f32.gmra.mxu0 %v1227
    %v1229 = vpop.f32.mrf.mxu0
    %v1230 = vadd.f32 %v1097, %v1229
    %v1231 = vpop.f32.mrf.mxu0
    %1232 = vmatprep.mubr.f32.mxu0 0.0
    %v1233 = vand.u32 %v674, 4294901760
    %v1234 = vsub.f32 %v674, %v1233
    %v1235 = vand.u32 %v1234, 4294901760
    %1236 = vmatmul.mubr.f32.gmra.mxu0 %v1235
    %v1237 = vpop.f32.mrf.mxu0
    %v1238 = vadd.f32 %v1104, %v1237
    %v1239 = vpop.f32.mrf.mxu0
    %1240 = vmatprep.mubr.f32.mxu0 0.0
    %v1241 = vand.u32 %v677, 4294901760
    %v1242 = vsub.f32 %v677, %v1241
    %v1243 = vand.u32 %v1242, 4294901760
    %1244 = vmatmul.mubr.f32.gmra.mxu0 %v1243
    %v1245 = vpop.f32.mrf.mxu0
    %v1246 = vadd.f32 %v1111, %v1245
    %v1247 = vpop.f32.mrf.mxu0
    %1248 = vmatprep.mubr.f32.mxu0 0.0
    %v1249 = vand.u32 %v680, 4294901760
    %v1250 = vsub.f32 %v680, %v1249
    %v1251 = vand.u32 %v1250, 4294901760
    %1252 = vmatmul.mubr.f32.gmra.mxu0 %v1251
    %v1253 = vpop.f32.mrf.mxu0
    %v1254 = vadd.f32 %v1118, %v1253
    %v1255 = vpop.f32.mrf.mxu0
    %1256 = vmatprep.mubr.f32.mxu0 0.0
    %v1257 = vand.u32 %v683, 4294901760
    %v1258 = vsub.f32 %v683, %v1257
    %v1259 = vand.u32 %v1258, 4294901760
    %1260 = vmatmul.mubr.f32.gmra.mxu0 %v1259
    %v1261 = vpop.f32.mrf.mxu0
    %v1262 = vadd.f32 %v1125, %v1261
    %v1263 = vpop.f32.mrf.mxu0
    %1264 = vdwg.mxu0
    %1265 = vmatprep.subr.mxu0 0.0
    %1266 = vmatpush1.msra.mxu0 0.0
    %1267 = vmatprep.subr.mxu0 0.0
    %1268 = vmatpush1.msra.mxu0 0.0
    %1269 = vmatprep.subr.mxu0 0.0
    %1270 = vmatpush1.msra.mxu0 0.0
    %1271 = vmatprep.subr.mxu0 0.0
    %1272 = vmatpush1.msra.mxu0 0.0
    %1273 = vmatprep.subr.mxu0 0.0
    %1274 = vmatpush1.msra.mxu0 0.0
    %1275 = vmatprep.subr.mxu0 0.0
    %1276 = vmatpush1.msra.mxu0 0.0
    %1277 = vmatprep.subr.mxu0 0.0
    %1278 = vmatpush1.msra.mxu0 0.0
    %1279 = vmatprep.subr.mxu0 0.0
    %1280 = vmatpush1.msra.mxu0 0.0
    %1281 = vmatprep.subr.mxu0 0.0
    %v1282 = vand.u32 %v660, 4294901760
    %v1283 = vsub.f32 %v660, %v1282
    %v1284 = vand.u32 %v1283, 4294901760
    %1285 = vmatpush1.msra.mxu0 %v1284
    %1286 = vmatprep.subr.mxu0 0.0
    %v1287 = vand.u32 %v659, 4294901760
    %v1288 = vsub.f32 %v659, %v1287
    %v1289 = vand.u32 %v1288, 4294901760
    %1290 = vmatpush1.msra.mxu0 %v1289
    %1291 = vmatprep.subr.mxu0 0.0
    %v1292 = vand.u32 %v658, 4294901760
    %v1293 = vsub.f32 %v658, %v1292
    %v1294 = vand.u32 %v1293, 4294901760
    %1295 = vmatpush1.msra.mxu0 %v1294
    %1296 = vmatprep.subr.mxu0 0.0
    %v1297 = vand.u32 %v657, 4294901760
    %v1298 = vsub.f32 %v657, %v1297
    %v1299 = vand.u32 %v1298, 4294901760
    %1300 = vmatpush1.msra.mxu0 %v1299
    %1301 = vmatprep.subr.mxu0 0.0
    %v1302 = vand.u32 %v656, 4294901760
    %v1303 = vsub.f32 %v656, %v1302
    %v1304 = vand.u32 %v1303, 4294901760
    %1305 = vmatpush1.msra.mxu0 %v1304
    %1306 = vmatprep.subr.mxu0 0.0
    %v1307 = vand.u32 %v655, 4294901760
    %v1308 = vsub.f32 %v655, %v1307
    %v1309 = vand.u32 %v1308, 4294901760
    %1310 = vmatpush1.msra.mxu0 %v1309
    %1311 = vmatprep.subr.mxu0 0.0
    %v1312 = vand.u32 %v654, 4294901760
    %v1313 = vsub.f32 %v654, %v1312
    %v1314 = vand.u32 %v1313, 4294901760
    %1315 = vmatpush1.msra.mxu0 %v1314
    %1316 = vmatprep.subr.mxu0 0.0
    %v1317 = vand.u32 %v653, 4294901760
    %v1318 = vsub.f32 %v653, %v1317
    %v1319 = vand.u32 %v1318, 4294901760
    %1320 = vmatpush1.msra.mxu0 %v1319
    %1321 = vmatprep.subr.mxu0 0.0
    %1322 = vmatpush2.msra.mxu0 0.0
    %1323 = vmatprep.subr.mxu0 0.0
    %1324 = vmatpush2.msra.mxu0 0.0
    %1325 = vmatprep.subr.mxu0 0.0
    %1326 = vmatpush2.msra.mxu0 0.0
    %1327 = vmatprep.subr.mxu0 0.0
    %1328 = vmatpush2.msra.mxu0 0.0
    %1329 = vmatprep.subr.mxu0 0.0
    %1330 = vmatpush2.msra.mxu0 0.0
    %1331 = vmatprep.subr.mxu0 0.0
    %1332 = vmatpush2.msra.mxu0 0.0
    %1333 = vmatprep.subr.mxu0 0.0
    %1334 = vmatpush2.msra.mxu0 0.0
    %1335 = vmatprep.subr.mxu0 0.0
    %1336 = vmatpush2.msra.mxu0 0.0
    %1337 = vmatprep.subr.mxu0 0.0
    %1338 = vmatpush2.msra.mxu0 0.0
    %1339 = vmatprep.subr.mxu0 0.0
    %1340 = vmatpush2.msra.mxu0 0.0
    %1341 = vmatprep.subr.mxu0 0.0
    %1342 = vmatpush2.msra.mxu0 0.0
    %1343 = vmatprep.subr.mxu0 0.0
    %1344 = vmatpush2.msra.mxu0 0.0
    %1345 = vmatprep.subr.mxu0 0.0
    %1346 = vmatpush2.msra.mxu0 0.0
    %1347 = vmatprep.subr.mxu0 0.0
    %1348 = vmatpush2.msra.mxu0 0.0
    %1349 = vmatprep.subr.mxu0 0.0
    %1350 = vmatpush2.msra.mxu0 0.0
    %1351 = vmatprep.subr.mxu0 0.0
    %1352 = vmatpush2.msra.mxu0 0.0
    %1353 = vmatprep.mubr.f32.mxu0 0.0
    %v1354 = vand.u32 %v662, 4294901760
    %1355 = vmatmul.mubr.f32.gmra.mxu0 %v1354
    %v1356 = vpop.f32.mrf.mxu0
    %v1357 = vadd.f32 %v1206, %v1356
    %v1358 = vpop.f32.mrf.mxu0
    %1359 = vmatprep.mubr.f32.mxu0 0.0
    %v1360 = vand.u32 %v665, 4294901760
    %1361 = vmatmul.mubr.f32.gmra.mxu0 %v1360
    %v1362 = vpop.f32.mrf.mxu0
    %v1363 = vadd.f32 %v1214, %v1362
    %v1364 = vpop.f32.mrf.mxu0
    %1365 = vmatprep.mubr.f32.mxu0 0.0
    %v1366 = vand.u32 %v668, 4294901760
    %1367 = vmatmul.mubr.f32.gmra.mxu0 %v1366
    %v1368 = vpop.f32.mrf.mxu0
    %v1369 = vadd.f32 %v1222, %v1368
    %v1370 = vpop.f32.mrf.mxu0
    %1371 = vmatprep.mubr.f32.mxu0 0.0
    %v1372 = vand.u32 %v671, 4294901760
    %1373 = vmatmul.mubr.f32.gmra.mxu0 %v1372
    %v1374 = vpop.f32.mrf.mxu0
    %v1375 = vadd.f32 %v1230, %v1374
    %v1376 = vpop.f32.mrf.mxu0
    %1377 = vmatprep.mubr.f32.mxu0 0.0
    %v1378 = vand.u32 %v674, 4294901760
    %1379 = vmatmul.mubr.f32.gmra.mxu0 %v1378
    %v1380 = vpop.f32.mrf.mxu0
    %v1381 = vadd.f32 %v1238, %v1380
    %v1382 = vpop.f32.mrf.mxu0
    %1383 = vmatprep.mubr.f32.mxu0 0.0
    %v1384 = vand.u32 %v677, 4294901760
    %1385 = vmatmul.mubr.f32.gmra.mxu0 %v1384
    %v1386 = vpop.f32.mrf.mxu0
    %v1387 = vadd.f32 %v1246, %v1386
    %v1388 = vpop.f32.mrf.mxu0
    %1389 = vmatprep.mubr.f32.mxu0 0.0
    %v1390 = vand.u32 %v680, 4294901760
    %1391 = vmatmul.mubr.f32.gmra.mxu0 %v1390
    %v1392 = vpop.f32.mrf.mxu0
    %v1393 = vadd.f32 %v1254, %v1392
    %v1394 = vpop.f32.mrf.mxu0
    %1395 = vmatprep.mubr.f32.mxu0 0.0
    %v1396 = vand.u32 %v683, 4294901760
    %1397 = vmatmul.mubr.f32.gmra.mxu0 %v1396
    %v1398 = vpop.f32.mrf.mxu0
    %v1399 = vadd.f32 %v1262, %v1398
    %v1400 = vpop.f32.mrf.mxu0
    %1401 = vdwg.mxu0
    %1402 = vmatprep.subr.mxu0 0.0
    %1403 = vmatpush1.msra.mxu0 0.0
    %1404 = vmatprep.subr.mxu0 0.0
    %1405 = vmatpush1.msra.mxu0 0.0
    %1406 = vmatprep.subr.mxu0 0.0
    %1407 = vmatpush1.msra.mxu0 0.0
    %1408 = vmatprep.subr.mxu0 0.0
    %1409 = vmatpush1.msra.mxu0 0.0
    %1410 = vmatprep.subr.mxu0 0.0
    %1411 = vmatpush1.msra.mxu0 0.0
    %1412 = vmatprep.subr.mxu0 0.0
    %1413 = vmatpush1.msra.mxu0 0.0
    %1414 = vmatprep.subr.mxu0 0.0
    %1415 = vmatpush1.msra.mxu0 0.0
    %1416 = vmatprep.subr.mxu0 0.0
    %1417 = vmatpush1.msra.mxu0 0.0
    %1418 = vmatprep.subr.mxu0 0.0
    %v1419 = vand.u32 %v660, 4294901760
    %1420 = vmatpush1.msra.mxu0 %v1419
    %1421 = vmatprep.subr.mxu0 0.0
    %v1422 = vand.u32 %v659, 4294901760
    %1423 = vmatpush1.msra.mxu0 %v1422
    %1424 = vmatprep.subr.mxu0 0.0
    %v1425 = vand.u32 %v658, 4294901760
    %1426 = vmatpush1.msra.mxu0 %v1425
    %1427 = vmatprep.subr.mxu0 0.0
    %v1428 = vand.u32 %v657, 4294901760
    %1429 = vmatpush1.msra.mxu0 %v1428
    %1430 = vmatprep.subr.mxu0 0.0
    %v1431 = vand.u32 %v656, 4294901760
    %1432 = vmatpush1.msra.mxu0 %v1431
    %1433 = vmatprep.subr.mxu0 0.0
    %v1434 = vand.u32 %v655, 4294901760
    %1435 = vmatpush1.msra.mxu0 %v1434
    %1436 = vmatprep.subr.mxu0 0.0
    %v1437 = vand.u32 %v654, 4294901760
    %1438 = vmatpush1.msra.mxu0 %v1437
    %1439 = vmatprep.subr.mxu0 0.0
    %v1440 = vand.u32 %v653, 4294901760
    %1441 = vmatpush1.msra.mxu0 %v1440
    %1442 = vmatprep.subr.mxu0 0.0
    %1443 = vmatpush2.msra.mxu0 0.0
    %1444 = vmatprep.subr.mxu0 0.0
    %1445 = vmatpush2.msra.mxu0 0.0
    %1446 = vmatprep.subr.mxu0 0.0
    %1447 = vmatpush2.msra.mxu0 0.0
    %1448 = vmatprep.subr.mxu0 0.0
    %1449 = vmatpush2.msra.mxu0 0.0
    %1450 = vmatprep.subr.mxu0 0.0
    %1451 = vmatpush2.msra.mxu0 0.0
    %1452 = vmatprep.subr.mxu0 0.0
    %1453 = vmatpush2.msra.mxu0 0.0
    %1454 = vmatprep.subr.mxu0 0.0
    %1455 = vmatpush2.msra.mxu0 0.0
    %1456 = vmatprep.subr.mxu0 0.0
    %1457 = vmatpush2.msra.mxu0 0.0
    %1458 = vmatprep.subr.mxu0 0.0
    %1459 = vmatpush2.msra.mxu0 0.0
    %1460 = vmatprep.subr.mxu0 0.0
    %1461 = vmatpush2.msra.mxu0 0.0
    %1462 = vmatprep.subr.mxu0 0.0
    %1463 = vmatpush2.msra.mxu0 0.0
    %1464 = vmatprep.subr.mxu0 0.0
    %1465 = vmatpush2.msra.mxu0 0.0
    %1466 = vmatprep.subr.mxu0 0.0
    %1467 = vmatpush2.msra.mxu0 0.0
    %1468 = vmatprep.subr.mxu0 0.0
    %1469 = vmatpush2.msra.mxu0 0.0
    %1470 = vmatprep.subr.mxu0 0.0
    %1471 = vmatpush2.msra.mxu0 0.0
    %1472 = vmatprep.subr.mxu0 0.0
    %1473 = vmatpush2.msra.mxu0 0.0
    %1474 = vmatprep.mubr.f32.mxu0 0.0
    %v1475 = vand.u32 %v662, 4294901760
    %1476 = vmatmul.mubr.f32.gmra.mxu0 %v1475
    %v1477 = vpop.f32.mrf.mxu0
    %v1478 = vadd.f32 %v1357, %v1477
    %v1479 = vpop.f32.mrf.mxu0
    %1480 = vmatprep.mubr.f32.mxu0 0.0
    %v1481 = vand.u32 %v665, 4294901760
    %1482 = vmatmul.mubr.f32.gmra.mxu0 %v1481
    %v1483 = vpop.f32.mrf.mxu0
    %v1484 = vadd.f32 %v1363, %v1483
    %v1485 = vpop.f32.mrf.mxu0
    %1486 = vmatprep.mubr.f32.mxu0 0.0
    %v1487 = vand.u32 %v668, 4294901760
    %1488 = vmatmul.mubr.f32.gmra.mxu0 %v1487
    %v1489 = vpop.f32.mrf.mxu0
    %v1490 = vadd.f32 %v1369, %v1489
    %v1491 = vpop.f32.mrf.mxu0
    %1492 = vmatprep.mubr.f32.mxu0 0.0
    %v1493 = vand.u32 %v671, 4294901760
    %1494 = vmatmul.mubr.f32.gmra.mxu0 %v1493
    %v1495 = vpop.f32.mrf.mxu0
    %v1496 = vadd.f32 %v1375, %v1495
    %v1497 = vpop.f32.mrf.mxu0
    %1498 = vmatprep.mubr.f32.mxu0 0.0
    %v1499 = vand.u32 %v674, 4294901760
    %1500 = vmatmul.mubr.f32.gmra.mxu0 %v1499
    %v1501 = vpop.f32.mrf.mxu0
    %v1502 = vadd.f32 %v1381, %v1501
    %v1503 = vpop.f32.mrf.mxu0
    %1504 = vmatprep.mubr.f32.mxu0 0.0
    %v1505 = vand.u32 %v677, 4294901760
    %1506 = vmatmul.mubr.f32.gmra.mxu0 %v1505
    %v1507 = vpop.f32.mrf.mxu0
    %v1508 = vadd.f32 %v1387, %v1507
    %v1509 = vpop.f32.mrf.mxu0
    %1510 = vmatprep.mubr.f32.mxu0 0.0
    %v1511 = vand.u32 %v680, 4294901760
    %1512 = vmatmul.mubr.f32.gmra.mxu0 %v1511
    %v1513 = vpop.f32.mrf.mxu0
    %v1514 = vadd.f32 %v1393, %v1513
    %v1515 = vpop.f32.mrf.mxu0
    %1516 = vmatprep.mubr.f32.mxu0 0.0
    %v1517 = vand.u32 %v683, 4294901760
    %1518 = vmatmul.mubr.f32.gmra.mxu0 %v1517
    %v1519 = vpop.f32.mrf.mxu0
    %v1520 = vadd.f32 %v1399, %v1519
    %v1521 = vpop.f32.mrf.mxu0
    %1522 = vdwg.mxu0
    %v1524 = vsel %vm209, %v1478, 0
    %v1527 = vsel %vm209, %v1484, 0
    %v1530 = vsel %vm209, %v1490, 0
    %v1533 = vsel %vm209, %v1496, 0
    %v1536 = vsel %vm209, %v1502, 0
    %v1539 = vsel %vm209, %v1508, 0
    %v1542 = vsel %vm209, %v1514, 0
    %v1545 = vsel %vm209, %v1520, 0
    %1547 = vmatprep.subr.mxu0 0.0
    %1548 = vmatpush1.msra.mxu0 0.0
    %1549 = vmatprep.subr.mxu0 0.0
    %1550 = vmatpush1.msra.mxu0 0.0
    %1551 = vmatprep.subr.mxu0 0.0
    %1552 = vmatpush1.msra.mxu0 0.0
    %1553 = vmatprep.subr.mxu0 0.0
    %1554 = vmatpush1.msra.mxu0 0.0
    %1555 = vmatprep.subr.mxu0 0.0
    %1556 = vmatpush1.msra.mxu0 0.0
    %1557 = vmatprep.subr.mxu0 0.0
    %1558 = vmatpush1.msra.mxu0 0.0
    %1559 = vmatprep.subr.mxu0 0.0
    %1560 = vmatpush1.msra.mxu0 0.0
    %1561 = vmatprep.subr.mxu0 0.0
    %1562 = vmatpush1.msra.mxu0 0.0
    %1563 = vmatprep.subr.mxu0 0.0
    %v1564 = vand.u32 %v1520, 4294901760
    %1565 = vmatpush1.msra.mxu0 %v1564
    %1566 = vmatprep.subr.mxu0 0.0
    %v1567 = vand.u32 %v1514, 4294901760
    %1568 = vmatpush1.msra.mxu0 %v1567
    %1569 = vmatprep.subr.mxu0 0.0
    %v1570 = vand.u32 %v1508, 4294901760
    %1571 = vmatpush1.msra.mxu0 %v1570
    %1572 = vmatprep.subr.mxu0 0.0
    %v1573 = vand.u32 %v1502, 4294901760
    %1574 = vmatpush1.msra.mxu0 %v1573
    %1575 = vmatprep.subr.mxu0 0.0
    %v1576 = vand.u32 %v1496, 4294901760
    %1577 = vmatpush1.msra.mxu0 %v1576
    %1578 = vmatprep.subr.mxu0 0.0
    %v1579 = vand.u32 %v1490, 4294901760
    %1580 = vmatpush1.msra.mxu0 %v1579
    %1581 = vmatprep.subr.mxu0 0.0
    %v1582 = vand.u32 %v1484, 4294901760
    %1583 = vmatpush1.msra.mxu0 %v1582
    %1584 = vmatprep.subr.mxu0 0.0
    %v1585 = vand.u32 %v1478, 4294901760
    %1586 = vmatpush1.msra.mxu0 %v1585
    %1587 = vmatprep.subr.mxu0 0.0
    %1588 = vmatpush2.msra.mxu0 0.0
    %1589 = vmatprep.subr.mxu0 0.0
    %1590 = vmatpush2.msra.mxu0 0.0
    %1591 = vmatprep.subr.mxu0 0.0
    %1592 = vmatpush2.msra.mxu0 0.0
    %1593 = vmatprep.subr.mxu0 0.0
    %1594 = vmatpush2.msra.mxu0 0.0
    %1595 = vmatprep.subr.mxu0 0.0
    %1596 = vmatpush2.msra.mxu0 0.0
    %1597 = vmatprep.subr.mxu0 0.0
    %1598 = vmatpush2.msra.mxu0 0.0
    %1599 = vmatprep.subr.mxu0 0.0
    %1600 = vmatpush2.msra.mxu0 0.0
    %1601 = vmatprep.subr.mxu0 0.0
    %1602 = vmatpush2.msra.mxu0 0.0
    %1603 = vmatprep.subr.mxu0 0.0
    %1604 = vmatpush2.msra.mxu0 0.0
    %1605 = vmatprep.subr.mxu0 0.0
    %1606 = vmatpush2.msra.mxu0 0.0
    %1607 = vmatprep.subr.mxu0 0.0
    %1608 = vmatpush2.msra.mxu0 0.0
    %1609 = vmatprep.subr.mxu0 0.0
    %1610 = vmatpush2.msra.mxu0 0.0
    %1611 = vmatprep.subr.mxu0 0.0
    %1612 = vmatpush2.msra.mxu0 0.0
    %1613 = vmatprep.subr.mxu0 0.0
    %1614 = vmatpush2.msra.mxu0 0.0
    %1615 = vmatprep.subr.mxu0 0.0
    %1616 = vmatpush2.msra.mxu0 0.0
    %1617 = vmatprep.subr.mxu0 0.0
    %1618 = vmatpush2.msra.mxu0 0.0
    %1619 = vmatprep.mubr.f32.mxu0 0.0
    %v1620 = vand.u32 %v1524, 4294901760
    %v1621 = vsub.f32 %v1524, %v1620
    %v1622 = vand.u32 %v1621, 4294901760
    %v1623 = vsub.f32 %v1621, %v1622
    %v1624 = vand.u32 %v1623, 4294901760
    %1625 = vmatmul.mubr.f32.gmra.mxu0 %v1624
    %v1626 = vpop.f32.mrf.mxu0
    %v1627 = vadd.f32 0.0, %v1626
    %v1628 = vpop.f32.mrf.mxu0
    %1629 = vmatprep.mubr.f32.mxu0 0.0
    %v1630 = vand.u32 %v1527, 4294901760
    %v1631 = vsub.f32 %v1527, %v1630
    %v1632 = vand.u32 %v1631, 4294901760
    %v1633 = vsub.f32 %v1631, %v1632
    %v1634 = vand.u32 %v1633, 4294901760
    %1635 = vmatmul.mubr.f32.gmra.mxu0 %v1634
    %v1636 = vpop.f32.mrf.mxu0
    %v1637 = vadd.f32 0.0, %v1636
    %v1638 = vpop.f32.mrf.mxu0
    %1639 = vmatprep.mubr.f32.mxu0 0.0
    %v1640 = vand.u32 %v1530, 4294901760
    %v1641 = vsub.f32 %v1530, %v1640
    %v1642 = vand.u32 %v1641, 4294901760
    %v1643 = vsub.f32 %v1641, %v1642
    %v1644 = vand.u32 %v1643, 4294901760
    %1645 = vmatmul.mubr.f32.gmra.mxu0 %v1644
    %v1646 = vpop.f32.mrf.mxu0
    %v1647 = vadd.f32 0.0, %v1646
    %v1648 = vpop.f32.mrf.mxu0
    %1649 = vmatprep.mubr.f32.mxu0 0.0
    %v1650 = vand.u32 %v1533, 4294901760
    %v1651 = vsub.f32 %v1533, %v1650
    %v1652 = vand.u32 %v1651, 4294901760
    %v1653 = vsub.f32 %v1651, %v1652
    %v1654 = vand.u32 %v1653, 4294901760
    %1655 = vmatmul.mubr.f32.gmra.mxu0 %v1654
    %v1656 = vpop.f32.mrf.mxu0
    %v1657 = vadd.f32 0.0, %v1656
    %v1658 = vpop.f32.mrf.mxu0
    %1659 = vmatprep.mubr.f32.mxu0 0.0
    %v1660 = vand.u32 %v1536, 4294901760
    %v1661 = vsub.f32 %v1536, %v1660
    %v1662 = vand.u32 %v1661, 4294901760
    %v1663 = vsub.f32 %v1661, %v1662
    %v1664 = vand.u32 %v1663, 4294901760
    %1665 = vmatmul.mubr.f32.gmra.mxu0 %v1664
    %v1666 = vpop.f32.mrf.mxu0
    %v1667 = vadd.f32 0.0, %v1666
    %v1668 = vpop.f32.mrf.mxu0
    %1669 = vmatprep.mubr.f32.mxu0 0.0
    %v1670 = vand.u32 %v1539, 4294901760
    %v1671 = vsub.f32 %v1539, %v1670
    %v1672 = vand.u32 %v1671, 4294901760
    %v1673 = vsub.f32 %v1671, %v1672
    %v1674 = vand.u32 %v1673, 4294901760
    %1675 = vmatmul.mubr.f32.gmra.mxu0 %v1674
    %v1676 = vpop.f32.mrf.mxu0
    %v1677 = vadd.f32 0.0, %v1676
    %v1678 = vpop.f32.mrf.mxu0
    %1679 = vmatprep.mubr.f32.mxu0 0.0
    %v1680 = vand.u32 %v1542, 4294901760
    %v1681 = vsub.f32 %v1542, %v1680
    %v1682 = vand.u32 %v1681, 4294901760
    %v1683 = vsub.f32 %v1681, %v1682
    %v1684 = vand.u32 %v1683, 4294901760
    %1685 = vmatmul.mubr.f32.gmra.mxu0 %v1684
    %v1686 = vpop.f32.mrf.mxu0
    %v1687 = vadd.f32 0.0, %v1686
    %v1688 = vpop.f32.mrf.mxu0
    %1689 = vmatprep.mubr.f32.mxu0 0.0
    %v1690 = vand.u32 %v1545, 4294901760
    %v1691 = vsub.f32 %v1545, %v1690
    %v1692 = vand.u32 %v1691, 4294901760
    %v1693 = vsub.f32 %v1691, %v1692
    %v1694 = vand.u32 %v1693, 4294901760
    %1695 = vmatmul.mubr.f32.gmra.mxu0 %v1694
    %v1696 = vpop.f32.mrf.mxu0
    %v1697 = vadd.f32 0.0, %v1696
    %v1698 = vpop.f32.mrf.mxu0
    %1699 = vdwg.mxu0
    %1700 = vmatprep.subr.mxu0 0.0
    %1701 = vmatpush1.msra.mxu0 0.0
    %1702 = vmatprep.subr.mxu0 0.0
    %1703 = vmatpush1.msra.mxu0 0.0
    %1704 = vmatprep.subr.mxu0 0.0
    %1705 = vmatpush1.msra.mxu0 0.0
    %1706 = vmatprep.subr.mxu0 0.0
    %1707 = vmatpush1.msra.mxu0 0.0
    %1708 = vmatprep.subr.mxu0 0.0
    %1709 = vmatpush1.msra.mxu0 0.0
    %1710 = vmatprep.subr.mxu0 0.0
    %1711 = vmatpush1.msra.mxu0 0.0
    %1712 = vmatprep.subr.mxu0 0.0
    %1713 = vmatpush1.msra.mxu0 0.0
    %1714 = vmatprep.subr.mxu0 0.0
    %1715 = vmatpush1.msra.mxu0 0.0
    %1716 = vmatprep.subr.mxu0 0.0
    %v1717 = vand.u32 %v1520, 4294901760
    %v1718 = vsub.f32 %v1520, %v1717
    %v1719 = vand.u32 %v1718, 4294901760
    %v1720 = vsub.f32 %v1718, %v1719
    %v1721 = vand.u32 %v1720, 4294901760
    %1722 = vmatpush1.msra.mxu0 %v1721
    %1723 = vmatprep.subr.mxu0 0.0
    %v1724 = vand.u32 %v1514, 4294901760
    %v1725 = vsub.f32 %v1514, %v1724
    %v1726 = vand.u32 %v1725, 4294901760
    %v1727 = vsub.f32 %v1725, %v1726
    %v1728 = vand.u32 %v1727, 4294901760
    %1729 = vmatpush1.msra.mxu0 %v1728
    %1730 = vmatprep.subr.mxu0 0.0
    %v1731 = vand.u32 %v1508, 4294901760
    %v1732 = vsub.f32 %v1508, %v1731
    %v1733 = vand.u32 %v1732, 4294901760
    %v1734 = vsub.f32 %v1732, %v1733
    %v1735 = vand.u32 %v1734, 4294901760
    %1736 = vmatpush1.msra.mxu0 %v1735
    %1737 = vmatprep.subr.mxu0 0.0
    %v1738 = vand.u32 %v1502, 4294901760
    %v1739 = vsub.f32 %v1502, %v1738
    %v1740 = vand.u32 %v1739, 4294901760
    %v1741 = vsub.f32 %v1739, %v1740
    %v1742 = vand.u32 %v1741, 4294901760
    %1743 = vmatpush1.msra.mxu0 %v1742
    %1744 = vmatprep.subr.mxu0 0.0
    %v1745 = vand.u32 %v1496, 4294901760
    %v1746 = vsub.f32 %v1496, %v1745
    %v1747 = vand.u32 %v1746, 4294901760
    %v1748 = vsub.f32 %v1746, %v1747
    %v1749 = vand.u32 %v1748, 4294901760
    %1750 = vmatpush1.msra.mxu0 %v1749
    %1751 = vmatprep.subr.mxu0 0.0
    %v1752 = vand.u32 %v1490, 4294901760
    %v1753 = vsub.f32 %v1490, %v1752
    %v1754 = vand.u32 %v1753, 4294901760
    %v1755 = vsub.f32 %v1753, %v1754
    %v1756 = vand.u32 %v1755, 4294901760
    %1757 = vmatpush1.msra.mxu0 %v1756
    %1758 = vmatprep.subr.mxu0 0.0
    %v1759 = vand.u32 %v1484, 4294901760
    %v1760 = vsub.f32 %v1484, %v1759
    %v1761 = vand.u32 %v1760, 4294901760
    %v1762 = vsub.f32 %v1760, %v1761
    %v1763 = vand.u32 %v1762, 4294901760
    %1764 = vmatpush1.msra.mxu0 %v1763
    %1765 = vmatprep.subr.mxu0 0.0
    %v1766 = vand.u32 %v1478, 4294901760
    %v1767 = vsub.f32 %v1478, %v1766
    %v1768 = vand.u32 %v1767, 4294901760
    %v1769 = vsub.f32 %v1767, %v1768
    %v1770 = vand.u32 %v1769, 4294901760
    %1771 = vmatpush1.msra.mxu0 %v1770
    %1772 = vmatprep.subr.mxu0 0.0
    %1773 = vmatpush2.msra.mxu0 0.0
    %1774 = vmatprep.subr.mxu0 0.0
    %1775 = vmatpush2.msra.mxu0 0.0
    %1776 = vmatprep.subr.mxu0 0.0
    %1777 = vmatpush2.msra.mxu0 0.0
    %1778 = vmatprep.subr.mxu0 0.0
    %1779 = vmatpush2.msra.mxu0 0.0
    %1780 = vmatprep.subr.mxu0 0.0
    %1781 = vmatpush2.msra.mxu0 0.0
    %1782 = vmatprep.subr.mxu0 0.0
    %1783 = vmatpush2.msra.mxu0 0.0
    %1784 = vmatprep.subr.mxu0 0.0
    %1785 = vmatpush2.msra.mxu0 0.0
    %1786 = vmatprep.subr.mxu0 0.0
    %1787 = vmatpush2.msra.mxu0 0.0
    %1788 = vmatprep.subr.mxu0 0.0
    %1789 = vmatpush2.msra.mxu0 0.0
    %1790 = vmatprep.subr.mxu0 0.0
    %1791 = vmatpush2.msra.mxu0 0.0
    %1792 = vmatprep.subr.mxu0 0.0
    %1793 = vmatpush2.msra.mxu0 0.0
    %1794 = vmatprep.subr.mxu0 0.0
    %1795 = vmatpush2.msra.mxu0 0.0
    %1796 = vmatprep.subr.mxu0 0.0
    %1797 = vmatpush2.msra.mxu0 0.0
    %1798 = vmatprep.subr.mxu0 0.0
    %1799 = vmatpush2.msra.mxu0 0.0
    %1800 = vmatprep.subr.mxu0 0.0
    %1801 = vmatpush2.msra.mxu0 0.0
    %1802 = vmatprep.subr.mxu0 0.0
    %1803 = vmatpush2.msra.mxu0 0.0
    %1804 = vmatprep.mubr.f32.mxu0 0.0
    %v1805 = vand.u32 %v1524, 4294901760
    %1806 = vmatmul.mubr.f32.gmra.mxu0 %v1805
    %v1807 = vpop.f32.mrf.mxu0
    %v1808 = vadd.f32 %v1627, %v1807
    %v1809 = vpop.f32.mrf.mxu0
    %1810 = vmatprep.mubr.f32.mxu0 0.0
    %v1811 = vand.u32 %v1527, 4294901760
    %1812 = vmatmul.mubr.f32.gmra.mxu0 %v1811
    %v1813 = vpop.f32.mrf.mxu0
    %v1814 = vadd.f32 %v1637, %v1813
    %v1815 = vpop.f32.mrf.mxu0
    %1816 = vmatprep.mubr.f32.mxu0 0.0
    %v1817 = vand.u32 %v1530, 4294901760
    %1818 = vmatmul.mubr.f32.gmra.mxu0 %v1817
    %v1819 = vpop.f32.mrf.mxu0
    %v1820 = vadd.f32 %v1647, %v1819
    %v1821 = vpop.f32.mrf.mxu0
    %1822 = vmatprep.mubr.f32.mxu0 0.0
    %v1823 = vand.u32 %v1533, 4294901760
    %1824 = vmatmul.mubr.f32.gmra.mxu0 %v1823
    %v1825 = vpop.f32.mrf.mxu0
    %v1826 = vadd.f32 %v1657, %v1825
    %v1827 = vpop.f32.mrf.mxu0
    %1828 = vmatprep.mubr.f32.mxu0 0.0
    %v1829 = vand.u32 %v1536, 4294901760
    %1830 = vmatmul.mubr.f32.gmra.mxu0 %v1829
    %v1831 = vpop.f32.mrf.mxu0
    %v1832 = vadd.f32 %v1667, %v1831
    %v1833 = vpop.f32.mrf.mxu0
    %1834 = vmatprep.mubr.f32.mxu0 0.0
    %v1835 = vand.u32 %v1539, 4294901760
    %1836 = vmatmul.mubr.f32.gmra.mxu0 %v1835
    %v1837 = vpop.f32.mrf.mxu0
    %v1838 = vadd.f32 %v1677, %v1837
    %v1839 = vpop.f32.mrf.mxu0
    %1840 = vmatprep.mubr.f32.mxu0 0.0
    %v1841 = vand.u32 %v1542, 4294901760
    %1842 = vmatmul.mubr.f32.gmra.mxu0 %v1841
    %v1843 = vpop.f32.mrf.mxu0
    %v1844 = vadd.f32 %v1687, %v1843
    %v1845 = vpop.f32.mrf.mxu0
    %1846 = vmatprep.mubr.f32.mxu0 0.0
    %v1847 = vand.u32 %v1545, 4294901760
    %1848 = vmatmul.mubr.f32.gmra.mxu0 %v1847
    %v1849 = vpop.f32.mrf.mxu0
    %v1850 = vadd.f32 %v1697, %v1849
    %v1851 = vpop.f32.mrf.mxu0
    %1852 = vdwg.mxu0
    %1853 = vmatprep.subr.mxu0 0.0
    %1854 = vmatpush1.msra.mxu0 0.0
    %1855 = vmatprep.subr.mxu0 0.0
    %1856 = vmatpush1.msra.mxu0 0.0
    %1857 = vmatprep.subr.mxu0 0.0
    %1858 = vmatpush1.msra.mxu0 0.0
    %1859 = vmatprep.subr.mxu0 0.0
    %1860 = vmatpush1.msra.mxu0 0.0
    %1861 = vmatprep.subr.mxu0 0.0
    %1862 = vmatpush1.msra.mxu0 0.0
    %1863 = vmatprep.subr.mxu0 0.0
    %1864 = vmatpush1.msra.mxu0 0.0
    %1865 = vmatprep.subr.mxu0 0.0
    %1866 = vmatpush1.msra.mxu0 0.0
    %1867 = vmatprep.subr.mxu0 0.0
    %1868 = vmatpush1.msra.mxu0 0.0
    %1869 = vmatprep.subr.mxu0 0.0
    %v1870 = vand.u32 %v1520, 4294901760
    %v1871 = vsub.f32 %v1520, %v1870
    %1872 = vmatpush1.msra.mxu0 %v1871
    %1873 = vmatprep.subr.mxu0 0.0
    %v1874 = vand.u32 %v1514, 4294901760
    %v1875 = vsub.f32 %v1514, %v1874
    %1876 = vmatpush1.msra.mxu0 %v1875
    %1877 = vmatprep.subr.mxu0 0.0
    %v1878 = vand.u32 %v1508, 4294901760
    %v1879 = vsub.f32 %v1508, %v1878
    %1880 = vmatpush1.msra.mxu0 %v1879
    %1881 = vmatprep.subr.mxu0 0.0
    %v1882 = vand.u32 %v1502, 4294901760
    %v1883 = vsub.f32 %v1502, %v1882
    %1884 = vmatpush1.msra.mxu0 %v1883
    %1885 = vmatprep.subr.mxu0 0.0
    %v1886 = vand.u32 %v1496, 4294901760
    %v1887 = vsub.f32 %v1496, %v1886
    %1888 = vmatpush1.msra.mxu0 %v1887
    %1889 = vmatprep.subr.mxu0 0.0
    %v1890 = vand.u32 %v1490, 4294901760
    %v1891 = vsub.f32 %v1490, %v1890
    %1892 = vmatpush1.msra.mxu0 %v1891
    %1893 = vmatprep.subr.mxu0 0.0
    %v1894 = vand.u32 %v1484, 4294901760
    %v1895 = vsub.f32 %v1484, %v1894
    %1896 = vmatpush1.msra.mxu0 %v1895
    %1897 = vmatprep.subr.mxu0 0.0
    %v1898 = vand.u32 %v1478, 4294901760
    %v1899 = vsub.f32 %v1478, %v1898
    %1900 = vmatpush1.msra.mxu0 %v1899
    %1901 = vmatprep.subr.mxu0 0.0
    %1902 = vmatpush2.msra.mxu0 0.0
    %1903 = vmatprep.subr.mxu0 0.0
    %1904 = vmatpush2.msra.mxu0 0.0
    %1905 = vmatprep.subr.mxu0 0.0
    %1906 = vmatpush2.msra.mxu0 0.0
    %1907 = vmatprep.subr.mxu0 0.0
    %1908 = vmatpush2.msra.mxu0 0.0
    %1909 = vmatprep.subr.mxu0 0.0
    %1910 = vmatpush2.msra.mxu0 0.0
    %1911 = vmatprep.subr.mxu0 0.0
    %1912 = vmatpush2.msra.mxu0 0.0
    %1913 = vmatprep.subr.mxu0 0.0
    %1914 = vmatpush2.msra.mxu0 0.0
    %1915 = vmatprep.subr.mxu0 0.0
    %1916 = vmatpush2.msra.mxu0 0.0
    %1917 = vmatprep.subr.mxu0 0.0
    %1918 = vmatpush2.msra.mxu0 0.0
    %1919 = vmatprep.subr.mxu0 0.0
    %1920 = vmatpush2.msra.mxu0 0.0
    %1921 = vmatprep.subr.mxu0 0.0
    %1922 = vmatpush2.msra.mxu0 0.0
    %1923 = vmatprep.subr.mxu0 0.0
    %1924 = vmatpush2.msra.mxu0 0.0
    %1925 = vmatprep.subr.mxu0 0.0
    %1926 = vmatpush2.msra.mxu0 0.0
    %1927 = vmatprep.subr.mxu0 0.0
    %1928 = vmatpush2.msra.mxu0 0.0
    %1929 = vmatprep.subr.mxu0 0.0
    %1930 = vmatpush2.msra.mxu0 0.0
    %1931 = vmatprep.subr.mxu0 0.0
    %1932 = vmatpush2.msra.mxu0 0.0
    %1933 = vmatprep.mubr.f32.mxu0 0.0
    %v1934 = vand.u32 %v1524, 4294901760
    %v1935 = vsub.f32 %v1524, %v1934
    %1936 = vmatmul.mubr.f32.gmra.mxu0 %v1935
    %v1937 = vpop.f32.mrf.mxu0
    %v1938 = vadd.f32 %v1808, %v1937
    %v1939 = vpop.f32.mrf.mxu0
    %1940 = vmatprep.mubr.f32.mxu0 0.0
    %v1941 = vand.u32 %v1527, 4294901760
    %v1942 = vsub.f32 %v1527, %v1941
    %1943 = vmatmul.mubr.f32.gmra.mxu0 %v1942
    %v1944 = vpop.f32.mrf.mxu0
    %v1945 = vadd.f32 %v1814, %v1944
    %v1946 = vpop.f32.mrf.mxu0
    %1947 = vmatprep.mubr.f32.mxu0 0.0
    %v1948 = vand.u32 %v1530, 4294901760
    %v1949 = vsub.f32 %v1530, %v1948
    %1950 = vmatmul.mubr.f32.gmra.mxu0 %v1949
    %v1951 = vpop.f32.mrf.mxu0
    %v1952 = vadd.f32 %v1820, %v1951
    %v1953 = vpop.f32.mrf.mxu0
    %1954 = vmatprep.mubr.f32.mxu0 0.0
    %v1955 = vand.u32 %v1533, 4294901760
    %v1956 = vsub.f32 %v1533, %v1955
    %1957 = vmatmul.mubr.f32.gmra.mxu0 %v1956
    %v1958 = vpop.f32.mrf.mxu0
    %v1959 = vadd.f32 %v1826, %v1958
    %v1960 = vpop.f32.mrf.mxu0
    %1961 = vmatprep.mubr.f32.mxu0 0.0
    %v1962 = vand.u32 %v1536, 4294901760
    %v1963 = vsub.f32 %v1536, %v1962
    %1964 = vmatmul.mubr.f32.gmra.mxu0 %v1963
    %v1965 = vpop.f32.mrf.mxu0
    %v1966 = vadd.f32 %v1832, %v1965
    %v1967 = vpop.f32.mrf.mxu0
    %1968 = vmatprep.mubr.f32.mxu0 0.0
    %v1969 = vand.u32 %v1539, 4294901760
    %v1970 = vsub.f32 %v1539, %v1969
    %1971 = vmatmul.mubr.f32.gmra.mxu0 %v1970
    %v1972 = vpop.f32.mrf.mxu0
    %v1973 = vadd.f32 %v1838, %v1972
    %v1974 = vpop.f32.mrf.mxu0
    %1975 = vmatprep.mubr.f32.mxu0 0.0
    %v1976 = vand.u32 %v1542, 4294901760
    %v1977 = vsub.f32 %v1542, %v1976
    %1978 = vmatmul.mubr.f32.gmra.mxu0 %v1977
    %v1979 = vpop.f32.mrf.mxu0
    %v1980 = vadd.f32 %v1844, %v1979
    %v1981 = vpop.f32.mrf.mxu0
    %1982 = vmatprep.mubr.f32.mxu0 0.0
    %v1983 = vand.u32 %v1545, 4294901760
    %v1984 = vsub.f32 %v1545, %v1983
    %1985 = vmatmul.mubr.f32.gmra.mxu0 %v1984
    %v1986 = vpop.f32.mrf.mxu0
    %v1987 = vadd.f32 %v1850, %v1986
    %v1988 = vpop.f32.mrf.mxu0
    %1989 = vdwg.mxu0
    %1990 = vmatprep.subr.mxu0 0.0
    %1991 = vmatpush1.msra.mxu0 0.0
    %1992 = vmatprep.subr.mxu0 0.0
    %1993 = vmatpush1.msra.mxu0 0.0
    %1994 = vmatprep.subr.mxu0 0.0
    %1995 = vmatpush1.msra.mxu0 0.0
    %1996 = vmatprep.subr.mxu0 0.0
    %1997 = vmatpush1.msra.mxu0 0.0
    %1998 = vmatprep.subr.mxu0 0.0
    %1999 = vmatpush1.msra.mxu0 0.0
    %2000 = vmatprep.subr.mxu0 0.0
    %2001 = vmatpush1.msra.mxu0 0.0
    %2002 = vmatprep.subr.mxu0 0.0
    %2003 = vmatpush1.msra.mxu0 0.0
    %2004 = vmatprep.subr.mxu0 0.0
    %2005 = vmatpush1.msra.mxu0 0.0
    %2006 = vmatprep.subr.mxu0 0.0
    %v2007 = vand.u32 %v1520, 4294901760
    %2008 = vmatpush1.msra.mxu0 %v2007
    %2009 = vmatprep.subr.mxu0 0.0
    %v2010 = vand.u32 %v1514, 4294901760
    %2011 = vmatpush1.msra.mxu0 %v2010
    %2012 = vmatprep.subr.mxu0 0.0
    %v2013 = vand.u32 %v1508, 4294901760
    %2014 = vmatpush1.msra.mxu0 %v2013
    %2015 = vmatprep.subr.mxu0 0.0
    %v2016 = vand.u32 %v1502, 4294901760
    %2017 = vmatpush1.msra.mxu0 %v2016
    %2018 = vmatprep.subr.mxu0 0.0
    %v2019 = vand.u32 %v1496, 4294901760
    %2020 = vmatpush1.msra.mxu0 %v2019
    %2021 = vmatprep.subr.mxu0 0.0
    %v2022 = vand.u32 %v1490, 4294901760
    %2023 = vmatpush1.msra.mxu0 %v2022
    %2024 = vmatprep.subr.mxu0 0.0
    %v2025 = vand.u32 %v1484, 4294901760
    %2026 = vmatpush1.msra.mxu0 %v2025
    %2027 = vmatprep.subr.mxu0 0.0
    %v2028 = vand.u32 %v1478, 4294901760
    %2029 = vmatpush1.msra.mxu0 %v2028
    %2030 = vmatprep.subr.mxu0 0.0
    %2031 = vmatpush2.msra.mxu0 0.0
    %2032 = vmatprep.subr.mxu0 0.0
    %2033 = vmatpush2.msra.mxu0 0.0
    %2034 = vmatprep.subr.mxu0 0.0
    %2035 = vmatpush2.msra.mxu0 0.0
    %2036 = vmatprep.subr.mxu0 0.0
    %2037 = vmatpush2.msra.mxu0 0.0
    %2038 = vmatprep.subr.mxu0 0.0
    %2039 = vmatpush2.msra.mxu0 0.0
    %2040 = vmatprep.subr.mxu0 0.0
    %2041 = vmatpush2.msra.mxu0 0.0
    %2042 = vmatprep.subr.mxu0 0.0
    %2043 = vmatpush2.msra.mxu0 0.0
    %2044 = vmatprep.subr.mxu0 0.0
    %2045 = vmatpush2.msra.mxu0 0.0
    %2046 = vmatprep.subr.mxu0 0.0
    %2047 = vmatpush2.msra.mxu0 0.0
    %2048 = vmatprep.subr.mxu0 0.0
    %2049 = vmatpush2.msra.mxu0 0.0
    %2050 = vmatprep.subr.mxu0 0.0
    %2051 = vmatpush2.msra.mxu0 0.0
    %2052 = vmatprep.subr.mxu0 0.0
    %2053 = vmatpush2.msra.mxu0 0.0
    %2054 = vmatprep.subr.mxu0 0.0
    %2055 = vmatpush2.msra.mxu0 0.0
    %2056 = vmatprep.subr.mxu0 0.0
    %2057 = vmatpush2.msra.mxu0 0.0
    %2058 = vmatprep.subr.mxu0 0.0
    %2059 = vmatpush2.msra.mxu0 0.0
    %2060 = vmatprep.subr.mxu0 0.0
    %2061 = vmatpush2.msra.mxu0 0.0
    %2062 = vmatprep.mubr.f32.mxu0 0.0
    %v2063 = vand.u32 %v1524, 4294901760
    %v2064 = vsub.f32 %v1524, %v2063
    %v2065 = vand.u32 %v2064, 4294901760
    %2066 = vmatmul.mubr.f32.gmra.mxu0 %v2065
    %v2067 = vpop.f32.mrf.mxu0
    %v2068 = vadd.f32 %v1938, %v2067
    %v2069 = vpop.f32.mrf.mxu0
    %2070 = vmatprep.mubr.f32.mxu0 0.0
    %v2071 = vand.u32 %v1527, 4294901760
    %v2072 = vsub.f32 %v1527, %v2071
    %v2073 = vand.u32 %v2072, 4294901760
    %2074 = vmatmul.mubr.f32.gmra.mxu0 %v2073
    %v2075 = vpop.f32.mrf.mxu0
    %v2076 = vadd.f32 %v1945, %v2075
    %v2077 = vpop.f32.mrf.mxu0
    %2078 = vmatprep.mubr.f32.mxu0 0.0
    %v2079 = vand.u32 %v1530, 4294901760
    %v2080 = vsub.f32 %v1530, %v2079
    %v2081 = vand.u32 %v2080, 4294901760
    %2082 = vmatmul.mubr.f32.gmra.mxu0 %v2081
    %v2083 = vpop.f32.mrf.mxu0
    %v2084 = vadd.f32 %v1952, %v2083
    %v2085 = vpop.f32.mrf.mxu0
    %2086 = vmatprep.mubr.f32.mxu0 0.0
    %v2087 = vand.u32 %v1533, 4294901760
    %v2088 = vsub.f32 %v1533, %v2087
    %v2089 = vand.u32 %v2088, 4294901760
    %2090 = vmatmul.mubr.f32.gmra.mxu0 %v2089
    %v2091 = vpop.f32.mrf.mxu0
    %v2092 = vadd.f32 %v1959, %v2091
    %v2093 = vpop.f32.mrf.mxu0
    %2094 = vmatprep.mubr.f32.mxu0 0.0
    %v2095 = vand.u32 %v1536, 4294901760
    %v2096 = vsub.f32 %v1536, %v2095
    %v2097 = vand.u32 %v2096, 4294901760
    %2098 = vmatmul.mubr.f32.gmra.mxu0 %v2097
    %v2099 = vpop.f32.mrf.mxu0
    %v2100 = vadd.f32 %v1966, %v2099
    %v2101 = vpop.f32.mrf.mxu0
    %2102 = vmatprep.mubr.f32.mxu0 0.0
    %v2103 = vand.u32 %v1539, 4294901760
    %v2104 = vsub.f32 %v1539, %v2103
    %v2105 = vand.u32 %v2104, 4294901760
    %2106 = vmatmul.mubr.f32.gmra.mxu0 %v2105
    %v2107 = vpop.f32.mrf.mxu0
    %v2108 = vadd.f32 %v1973, %v2107
    %v2109 = vpop.f32.mrf.mxu0
    %2110 = vmatprep.mubr.f32.mxu0 0.0
    %v2111 = vand.u32 %v1542, 4294901760
    %v2112 = vsub.f32 %v1542, %v2111
    %v2113 = vand.u32 %v2112, 4294901760
    %2114 = vmatmul.mubr.f32.gmra.mxu0 %v2113
    %v2115 = vpop.f32.mrf.mxu0
    %v2116 = vadd.f32 %v1980, %v2115
    %v2117 = vpop.f32.mrf.mxu0
    %2118 = vmatprep.mubr.f32.mxu0 0.0
    %v2119 = vand.u32 %v1545, 4294901760
    %v2120 = vsub.f32 %v1545, %v2119
    %v2121 = vand.u32 %v2120, 4294901760
    %2122 = vmatmul.mubr.f32.gmra.mxu0 %v2121
    %v2123 = vpop.f32.mrf.mxu0
    %v2124 = vadd.f32 %v1987, %v2123
    %v2125 = vpop.f32.mrf.mxu0
    %2126 = vdwg.mxu0
    %2127 = vmatprep.subr.mxu0 0.0
    %2128 = vmatpush1.msra.mxu0 0.0
    %2129 = vmatprep.subr.mxu0 0.0
    %2130 = vmatpush1.msra.mxu0 0.0
    %2131 = vmatprep.subr.mxu0 0.0
    %2132 = vmatpush1.msra.mxu0 0.0
    %2133 = vmatprep.subr.mxu0 0.0
    %2134 = vmatpush1.msra.mxu0 0.0
    %2135 = vmatprep.subr.mxu0 0.0
    %2136 = vmatpush1.msra.mxu0 0.0
    %2137 = vmatprep.subr.mxu0 0.0
    %2138 = vmatpush1.msra.mxu0 0.0
    %2139 = vmatprep.subr.mxu0 0.0
    %2140 = vmatpush1.msra.mxu0 0.0
    %2141 = vmatprep.subr.mxu0 0.0
    %2142 = vmatpush1.msra.mxu0 0.0
    %2143 = vmatprep.subr.mxu0 0.0
    %v2144 = vand.u32 %v1520, 4294901760
    %v2145 = vsub.f32 %v1520, %v2144
    %v2146 = vand.u32 %v2145, 4294901760
    %2147 = vmatpush1.msra.mxu0 %v2146
    %2148 = vmatprep.subr.mxu0 0.0
    %v2149 = vand.u32 %v1514, 4294901760
    %v2150 = vsub.f32 %v1514, %v2149
    %v2151 = vand.u32 %v2150, 4294901760
    %2152 = vmatpush1.msra.mxu0 %v2151
    %2153 = vmatprep.subr.mxu0 0.0
    %v2154 = vand.u32 %v1508, 4294901760
    %v2155 = vsub.f32 %v1508, %v2154
    %v2156 = vand.u32 %v2155, 4294901760
    %2157 = vmatpush1.msra.mxu0 %v2156
    %2158 = vmatprep.subr.mxu0 0.0
    %v2159 = vand.u32 %v1502, 4294901760
    %v2160 = vsub.f32 %v1502, %v2159
    %v2161 = vand.u32 %v2160, 4294901760
    %2162 = vmatpush1.msra.mxu0 %v2161
    %2163 = vmatprep.subr.mxu0 0.0
    %v2164 = vand.u32 %v1496, 4294901760
    %v2165 = vsub.f32 %v1496, %v2164
    %v2166 = vand.u32 %v2165, 4294901760
    %2167 = vmatpush1.msra.mxu0 %v2166
    %2168 = vmatprep.subr.mxu0 0.0
    %v2169 = vand.u32 %v1490, 4294901760
    %v2170 = vsub.f32 %v1490, %v2169
    %v2171 = vand.u32 %v2170, 4294901760
    %2172 = vmatpush1.msra.mxu0 %v2171
    %2173 = vmatprep.subr.mxu0 0.0
    %v2174 = vand.u32 %v1484, 4294901760
    %v2175 = vsub.f32 %v1484, %v2174
    %v2176 = vand.u32 %v2175, 4294901760
    %2177 = vmatpush1.msra.mxu0 %v2176
    %2178 = vmatprep.subr.mxu0 0.0
    %v2179 = vand.u32 %v1478, 4294901760
    %v2180 = vsub.f32 %v1478, %v2179
    %v2181 = vand.u32 %v2180, 4294901760
    %2182 = vmatpush1.msra.mxu0 %v2181
    %2183 = vmatprep.subr.mxu0 0.0
    %2184 = vmatpush2.msra.mxu0 0.0
    %2185 = vmatprep.subr.mxu0 0.0
    %2186 = vmatpush2.msra.mxu0 0.0
    %2187 = vmatprep.subr.mxu0 0.0
    %2188 = vmatpush2.msra.mxu0 0.0
    %2189 = vmatprep.subr.mxu0 0.0
    %2190 = vmatpush2.msra.mxu0 0.0
    %2191 = vmatprep.subr.mxu0 0.0
    %2192 = vmatpush2.msra.mxu0 0.0
    %2193 = vmatprep.subr.mxu0 0.0
    %2194 = vmatpush2.msra.mxu0 0.0
    %2195 = vmatprep.subr.mxu0 0.0
    %2196 = vmatpush2.msra.mxu0 0.0
    %2197 = vmatprep.subr.mxu0 0.0
    %2198 = vmatpush2.msra.mxu0 0.0
    %2199 = vmatprep.subr.mxu0 0.0
    %2200 = vmatpush2.msra.mxu0 0.0
    %2201 = vmatprep.subr.mxu0 0.0
    %2202 = vmatpush2.msra.mxu0 0.0
    %2203 = vmatprep.subr.mxu0 0.0
    %2204 = vmatpush2.msra.mxu0 0.0
    %2205 = vmatprep.subr.mxu0 0.0
    %2206 = vmatpush2.msra.mxu0 0.0
    %2207 = vmatprep.subr.mxu0 0.0
    %2208 = vmatpush2.msra.mxu0 0.0
    %2209 = vmatprep.subr.mxu0 0.0
    %2210 = vmatpush2.msra.mxu0 0.0
    %2211 = vmatprep.subr.mxu0 0.0
    %2212 = vmatpush2.msra.mxu0 0.0
    %2213 = vmatprep.subr.mxu0 0.0
    %2214 = vmatpush2.msra.mxu0 0.0
    %2215 = vmatprep.mubr.f32.mxu0 0.0
    %v2216 = vand.u32 %v1524, 4294901760
    %2217 = vmatmul.mubr.f32.gmra.mxu0 %v2216
    %v2218 = vpop.f32.mrf.mxu0
    %v2219 = vadd.f32 %v2068, %v2218
    %v2220 = vpop.f32.mrf.mxu0
    %2221 = vmatprep.mubr.f32.mxu0 0.0
    %v2222 = vand.u32 %v1527, 4294901760
    %2223 = vmatmul.mubr.f32.gmra.mxu0 %v2222
    %v2224 = vpop.f32.mrf.mxu0
    %v2225 = vadd.f32 %v2076, %v2224
    %v2226 = vpop.f32.mrf.mxu0
    %2227 = vmatprep.mubr.f32.mxu0 0.0
    %v2228 = vand.u32 %v1530, 4294901760
    %2229 = vmatmul.mubr.f32.gmra.mxu0 %v2228
    %v2230 = vpop.f32.mrf.mxu0
    %v2231 = vadd.f32 %v2084, %v2230
    %v2232 = vpop.f32.mrf.mxu0
    %2233 = vmatprep.mubr.f32.mxu0 0.0
    %v2234 = vand.u32 %v1533, 4294901760
    %2235 = vmatmul.mubr.f32.gmra.mxu0 %v2234
    %v2236 = vpop.f32.mrf.mxu0
    %v2237 = vadd.f32 %v2092, %v2236
    %v2238 = vpop.f32.mrf.mxu0
    %2239 = vmatprep.mubr.f32.mxu0 0.0
    %v2240 = vand.u32 %v1536, 4294901760
    %2241 = vmatmul.mubr.f32.gmra.mxu0 %v2240
    %v2242 = vpop.f32.mrf.mxu0
    %v2243 = vadd.f32 %v2100, %v2242
    %v2244 = vpop.f32.mrf.mxu0
    %2245 = vmatprep.mubr.f32.mxu0 0.0
    %v2246 = vand.u32 %v1539, 4294901760
    %2247 = vmatmul.mubr.f32.gmra.mxu0 %v2246
    %v2248 = vpop.f32.mrf.mxu0
    %v2249 = vadd.f32 %v2108, %v2248
    %v2250 = vpop.f32.mrf.mxu0
    %2251 = vmatprep.mubr.f32.mxu0 0.0
    %v2252 = vand.u32 %v1542, 4294901760
    %2253 = vmatmul.mubr.f32.gmra.mxu0 %v2252
    %v2254 = vpop.f32.mrf.mxu0
    %v2255 = vadd.f32 %v2116, %v2254
    %v2256 = vpop.f32.mrf.mxu0
    %2257 = vmatprep.mubr.f32.mxu0 0.0
    %v2258 = vand.u32 %v1545, 4294901760
    %2259 = vmatmul.mubr.f32.gmra.mxu0 %v2258
    %v2260 = vpop.f32.mrf.mxu0
    %v2261 = vadd.f32 %v2124, %v2260
    %v2262 = vpop.f32.mrf.mxu0
    %2263 = vdwg.mxu0
    %2264 = vmatprep.subr.mxu0 0.0
    %2265 = vmatpush1.msra.mxu0 0.0
    %2266 = vmatprep.subr.mxu0 0.0
    %2267 = vmatpush1.msra.mxu0 0.0
    %2268 = vmatprep.subr.mxu0 0.0
    %2269 = vmatpush1.msra.mxu0 0.0
    %2270 = vmatprep.subr.mxu0 0.0
    %2271 = vmatpush1.msra.mxu0 0.0
    %2272 = vmatprep.subr.mxu0 0.0
    %2273 = vmatpush1.msra.mxu0 0.0
    %2274 = vmatprep.subr.mxu0 0.0
    %2275 = vmatpush1.msra.mxu0 0.0
    %2276 = vmatprep.subr.mxu0 0.0
    %2277 = vmatpush1.msra.mxu0 0.0
    %2278 = vmatprep.subr.mxu0 0.0
    %2279 = vmatpush1.msra.mxu0 0.0
    %2280 = vmatprep.subr.mxu0 0.0
    %v2281 = vand.u32 %v1520, 4294901760
    %2282 = vmatpush1.msra.mxu0 %v2281
    %2283 = vmatprep.subr.mxu0 0.0
    %v2284 = vand.u32 %v1514, 4294901760
    %2285 = vmatpush1.msra.mxu0 %v2284
    %2286 = vmatprep.subr.mxu0 0.0
    %v2287 = vand.u32 %v1508, 4294901760
    %2288 = vmatpush1.msra.mxu0 %v2287
    %2289 = vmatprep.subr.mxu0 0.0
    %v2290 = vand.u32 %v1502, 4294901760
    %2291 = vmatpush1.msra.mxu0 %v2290
    %2292 = vmatprep.subr.mxu0 0.0
    %v2293 = vand.u32 %v1496, 4294901760
    %2294 = vmatpush1.msra.mxu0 %v2293
    %2295 = vmatprep.subr.mxu0 0.0
    %v2296 = vand.u32 %v1490, 4294901760
    %2297 = vmatpush1.msra.mxu0 %v2296
    %2298 = vmatprep.subr.mxu0 0.0
    %v2299 = vand.u32 %v1484, 4294901760
    %2300 = vmatpush1.msra.mxu0 %v2299
    %2301 = vmatprep.subr.mxu0 0.0
    %v2302 = vand.u32 %v1478, 4294901760
    %2303 = vmatpush1.msra.mxu0 %v2302
    %2304 = vmatprep.subr.mxu0 0.0
    %2305 = vmatpush2.msra.mxu0 0.0
    %2306 = vmatprep.subr.mxu0 0.0
    %2307 = vmatpush2.msra.mxu0 0.0
    %2308 = vmatprep.subr.mxu0 0.0
    %2309 = vmatpush2.msra.mxu0 0.0
    %2310 = vmatprep.subr.mxu0 0.0
    %2311 = vmatpush2.msra.mxu0 0.0
    %2312 = vmatprep.subr.mxu0 0.0
    %2313 = vmatpush2.msra.mxu0 0.0
    %2314 = vmatprep.subr.mxu0 0.0
    %2315 = vmatpush2.msra.mxu0 0.0
    %2316 = vmatprep.subr.mxu0 0.0
    %2317 = vmatpush2.msra.mxu0 0.0
    %2318 = vmatprep.subr.mxu0 0.0
    %2319 = vmatpush2.msra.mxu0 0.0
    %2320 = vmatprep.subr.mxu0 0.0
    %2321 = vmatpush2.msra.mxu0 0.0
    %2322 = vmatprep.subr.mxu0 0.0
    %2323 = vmatpush2.msra.mxu0 0.0
    %2324 = vmatprep.subr.mxu0 0.0
    %2325 = vmatpush2.msra.mxu0 0.0
    %2326 = vmatprep.subr.mxu0 0.0
    %2327 = vmatpush2.msra.mxu0 0.0
    %2328 = vmatprep.subr.mxu0 0.0
    %2329 = vmatpush2.msra.mxu0 0.0
    %2330 = vmatprep.subr.mxu0 0.0
    %2331 = vmatpush2.msra.mxu0 0.0
    %2332 = vmatprep.subr.mxu0 0.0
    %2333 = vmatpush2.msra.mxu0 0.0
    %2334 = vmatprep.subr.mxu0 0.0
    %2335 = vmatpush2.msra.mxu0 0.0
    %2336 = vmatprep.mubr.f32.mxu0 0.0
    %v2337 = vand.u32 %v1524, 4294901760
    %2338 = vmatmul.mubr.f32.gmra.mxu0 %v2337
    %v2339 = vpop.f32.mrf.mxu0
    %v2340 = vadd.f32 %v2219, %v2339
    %v2341 = vpop.f32.mrf.mxu0
    %2342 = vmatprep.mubr.f32.mxu0 0.0
    %v2343 = vand.u32 %v1527, 4294901760
    %2344 = vmatmul.mubr.f32.gmra.mxu0 %v2343
    %v2345 = vpop.f32.mrf.mxu0
    %v2346 = vadd.f32 %v2225, %v2345
    %v2347 = vpop.f32.mrf.mxu0
    %2348 = vmatprep.mubr.f32.mxu0 0.0
    %v2349 = vand.u32 %v1530, 4294901760
    %2350 = vmatmul.mubr.f32.gmra.mxu0 %v2349
    %v2351 = vpop.f32.mrf.mxu0
    %v2352 = vadd.f32 %v2231, %v2351
    %v2353 = vpop.f32.mrf.mxu0
    %2354 = vmatprep.mubr.f32.mxu0 0.0
    %v2355 = vand.u32 %v1533, 4294901760
    %2356 = vmatmul.mubr.f32.gmra.mxu0 %v2355
    %v2357 = vpop.f32.mrf.mxu0
    %v2358 = vadd.f32 %v2237, %v2357
    %v2359 = vpop.f32.mrf.mxu0
    %2360 = vmatprep.mubr.f32.mxu0 0.0
    %v2361 = vand.u32 %v1536, 4294901760
    %2362 = vmatmul.mubr.f32.gmra.mxu0 %v2361
    %v2363 = vpop.f32.mrf.mxu0
    %v2364 = vadd.f32 %v2243, %v2363
    %v2365 = vpop.f32.mrf.mxu0
    %2366 = vmatprep.mubr.f32.mxu0 0.0
    %v2367 = vand.u32 %v1539, 4294901760
    %2368 = vmatmul.mubr.f32.gmra.mxu0 %v2367
    %v2369 = vpop.f32.mrf.mxu0
    %v2370 = vadd.f32 %v2249, %v2369
    %v2371 = vpop.f32.mrf.mxu0
    %2372 = vmatprep.mubr.f32.mxu0 0.0
    %v2373 = vand.u32 %v1542, 4294901760
    %2374 = vmatmul.mubr.f32.gmra.mxu0 %v2373
    %v2375 = vpop.f32.mrf.mxu0
    %v2376 = vadd.f32 %v2255, %v2375
    %v2377 = vpop.f32.mrf.mxu0
    %2378 = vmatprep.mubr.f32.mxu0 0.0
    %v2379 = vand.u32 %v1545, 4294901760
    %2380 = vmatmul.mubr.f32.gmra.mxu0 %v2379
    %v2381 = vpop.f32.mrf.mxu0
    %v2382 = vadd.f32 %v2261, %v2381
    %v2383 = vpop.f32.mrf.mxu0
    %2384 = vdwg.mxu0
    %v2386 = vsel %vm209, %v2340, 0
    %v2389 = vsel %vm209, %v2346, 0
    %v2392 = vsel %vm209, %v2352, 0
    %v2395 = vsel %vm209, %v2358, 0
    %v2398 = vsel %vm209, %v2364, 0
    %v2401 = vsel %vm209, %v2370, 0
    %v2404 = vsel %vm209, %v2376, 0
    %v2407 = vsel %vm209, %v2382, 0
    %2409 = vmatprep.subr.mxu0 0.0
    %2410 = vmatpush1.msra.mxu0 0.0
    %2411 = vmatprep.subr.mxu0 0.0
    %2412 = vmatpush1.msra.mxu0 0.0
    %2413 = vmatprep.subr.mxu0 0.0
    %2414 = vmatpush1.msra.mxu0 0.0
    %2415 = vmatprep.subr.mxu0 0.0
    %2416 = vmatpush1.msra.mxu0 0.0
    %2417 = vmatprep.subr.mxu0 0.0
    %2418 = vmatpush1.msra.mxu0 0.0
    %2419 = vmatprep.subr.mxu0 0.0
    %2420 = vmatpush1.msra.mxu0 0.0
    %2421 = vmatprep.subr.mxu0 0.0
    %2422 = vmatpush1.msra.mxu0 0.0
    %2423 = vmatprep.subr.mxu0 0.0
    %2424 = vmatpush1.msra.mxu0 0.0
    %2425 = vmatprep.subr.mxu0 0.0
    %v2426 = vand.u32 %v2382, 4294901760
    %2427 = vmatpush1.msra.mxu0 %v2426
    %2428 = vmatprep.subr.mxu0 0.0
    %v2429 = vand.u32 %v2376, 4294901760
    %2430 = vmatpush1.msra.mxu0 %v2429
    %2431 = vmatprep.subr.mxu0 0.0
    %v2432 = vand.u32 %v2370, 4294901760
    %2433 = vmatpush1.msra.mxu0 %v2432
    %2434 = vmatprep.subr.mxu0 0.0
    %v2435 = vand.u32 %v2364, 4294901760
    %2436 = vmatpush1.msra.mxu0 %v2435
    %2437 = vmatprep.subr.mxu0 0.0
    %v2438 = vand.u32 %v2358, 4294901760
    %2439 = vmatpush1.msra.mxu0 %v2438
    %2440 = vmatprep.subr.mxu0 0.0
    %v2441 = vand.u32 %v2352, 4294901760
    %2442 = vmatpush1.msra.mxu0 %v2441
    %2443 = vmatprep.subr.mxu0 0.0
    %v2444 = vand.u32 %v2346, 4294901760
    %2445 = vmatpush1.msra.mxu0 %v2444
    %2446 = vmatprep.subr.mxu0 0.0
    %v2447 = vand.u32 %v2340, 4294901760
    %2448 = vmatpush1.msra.mxu0 %v2447
    %2449 = vmatprep.subr.mxu0 0.0
    %2450 = vmatpush2.msra.mxu0 0.0
    %2451 = vmatprep.subr.mxu0 0.0
    %2452 = vmatpush2.msra.mxu0 0.0
    %2453 = vmatprep.subr.mxu0 0.0
    %2454 = vmatpush2.msra.mxu0 0.0
    %2455 = vmatprep.subr.mxu0 0.0
    %2456 = vmatpush2.msra.mxu0 0.0
    %2457 = vmatprep.subr.mxu0 0.0
    %2458 = vmatpush2.msra.mxu0 0.0
    %2459 = vmatprep.subr.mxu0 0.0
    %2460 = vmatpush2.msra.mxu0 0.0
    %2461 = vmatprep.subr.mxu0 0.0
    %2462 = vmatpush2.msra.mxu0 0.0
    %2463 = vmatprep.subr.mxu0 0.0
    %2464 = vmatpush2.msra.mxu0 0.0
    %2465 = vmatprep.subr.mxu0 0.0
    %2466 = vmatpush2.msra.mxu0 0.0
    %2467 = vmatprep.subr.mxu0 0.0
    %2468 = vmatpush2.msra.mxu0 0.0
    %2469 = vmatprep.subr.mxu0 0.0
    %2470 = vmatpush2.msra.mxu0 0.0
    %2471 = vmatprep.subr.mxu0 0.0
    %2472 = vmatpush2.msra.mxu0 0.0
    %2473 = vmatprep.subr.mxu0 0.0
    %2474 = vmatpush2.msra.mxu0 0.0
    %2475 = vmatprep.subr.mxu0 0.0
    %2476 = vmatpush2.msra.mxu0 0.0
    %2477 = vmatprep.subr.mxu0 0.0
    %2478 = vmatpush2.msra.mxu0 0.0
    %2479 = vmatprep.subr.mxu0 0.0
    %2480 = vmatpush2.msra.mxu0 0.0
    %2481 = vmatprep.mubr.f32.mxu0 0.0
    %v2482 = vand.u32 %v2386, 4294901760
    %v2483 = vsub.f32 %v2386, %v2482
    %v2484 = vand.u32 %v2483, 4294901760
    %v2485 = vsub.f32 %v2483, %v2484
    %v2486 = vand.u32 %v2485, 4294901760
    %2487 = vmatmul.mubr.f32.gmra.mxu0 %v2486
    %v2488 = vpop.f32.mrf.mxu0
    %v2489 = vadd.f32 0.0, %v2488
    %v2490 = vpop.f32.mrf.mxu0
    %2491 = vmatprep.mubr.f32.mxu0 0.0
    %v2492 = vand.u32 %v2389, 4294901760
    %v2493 = vsub.f32 %v2389, %v2492
    %v2494 = vand.u32 %v2493, 4294901760
    %v2495 = vsub.f32 %v2493, %v2494
    %v2496 = vand.u32 %v2495, 4294901760
    %2497 = vmatmul.mubr.f32.gmra.mxu0 %v2496
    %v2498 = vpop.f32.mrf.mxu0
    %v2499 = vadd.f32 0.0, %v2498
    %v2500 = vpop.f32.mrf.mxu0
    %2501 = vmatprep.mubr.f32.mxu0 0.0
    %v2502 = vand.u32 %v2392, 4294901760
    %v2503 = vsub.f32 %v2392, %v2502
    %v2504 = vand.u32 %v2503, 4294901760
    %v2505 = vsub.f32 %v2503, %v2504
    %v2506 = vand.u32 %v2505, 4294901760
    %2507 = vmatmul.mubr.f32.gmra.mxu0 %v2506
    %v2508 = vpop.f32.mrf.mxu0
    %v2509 = vadd.f32 0.0, %v2508
    %v2510 = vpop.f32.mrf.mxu0
    %2511 = vmatprep.mubr.f32.mxu0 0.0
    %v2512 = vand.u32 %v2395, 4294901760
    %v2513 = vsub.f32 %v2395, %v2512
    %v2514 = vand.u32 %v2513, 4294901760
    %v2515 = vsub.f32 %v2513, %v2514
    %v2516 = vand.u32 %v2515, 4294901760
    %2517 = vmatmul.mubr.f32.gmra.mxu0 %v2516
    %v2518 = vpop.f32.mrf.mxu0
    %v2519 = vadd.f32 0.0, %v2518
    %v2520 = vpop.f32.mrf.mxu0
    %2521 = vmatprep.mubr.f32.mxu0 0.0
    %v2522 = vand.u32 %v2398, 4294901760
    %v2523 = vsub.f32 %v2398, %v2522
    %v2524 = vand.u32 %v2523, 4294901760
    %v2525 = vsub.f32 %v2523, %v2524
    %v2526 = vand.u32 %v2525, 4294901760
    %2527 = vmatmul.mubr.f32.gmra.mxu0 %v2526
    %v2528 = vpop.f32.mrf.mxu0
    %v2529 = vadd.f32 0.0, %v2528
    %v2530 = vpop.f32.mrf.mxu0
    %2531 = vmatprep.mubr.f32.mxu0 0.0
    %v2532 = vand.u32 %v2401, 4294901760
    %v2533 = vsub.f32 %v2401, %v2532
    %v2534 = vand.u32 %v2533, 4294901760
    %v2535 = vsub.f32 %v2533, %v2534
    %v2536 = vand.u32 %v2535, 4294901760
    %2537 = vmatmul.mubr.f32.gmra.mxu0 %v2536
    %v2538 = vpop.f32.mrf.mxu0
    %v2539 = vadd.f32 0.0, %v2538
    %v2540 = vpop.f32.mrf.mxu0
    %2541 = vmatprep.mubr.f32.mxu0 0.0
    %v2542 = vand.u32 %v2404, 4294901760
    %v2543 = vsub.f32 %v2404, %v2542
    %v2544 = vand.u32 %v2543, 4294901760
    %v2545 = vsub.f32 %v2543, %v2544
    %v2546 = vand.u32 %v2545, 4294901760
    %2547 = vmatmul.mubr.f32.gmra.mxu0 %v2546
    %v2548 = vpop.f32.mrf.mxu0
    %v2549 = vadd.f32 0.0, %v2548
    %v2550 = vpop.f32.mrf.mxu0
    %2551 = vmatprep.mubr.f32.mxu0 0.0
    %v2552 = vand.u32 %v2407, 4294901760
    %v2553 = vsub.f32 %v2407, %v2552
    %v2554 = vand.u32 %v2553, 4294901760
    %v2555 = vsub.f32 %v2553, %v2554
    %v2556 = vand.u32 %v2555, 4294901760
    %2557 = vmatmul.mubr.f32.gmra.mxu0 %v2556
    %v2558 = vpop.f32.mrf.mxu0
    %v2559 = vadd.f32 0.0, %v2558
    %v2560 = vpop.f32.mrf.mxu0
    %2561 = vdwg.mxu0
    %2562 = vmatprep.subr.mxu0 0.0
    %2563 = vmatpush1.msra.mxu0 0.0
    %2564 = vmatprep.subr.mxu0 0.0
    %2565 = vmatpush1.msra.mxu0 0.0
    %2566 = vmatprep.subr.mxu0 0.0
    %2567 = vmatpush1.msra.mxu0 0.0
    %2568 = vmatprep.subr.mxu0 0.0
    %2569 = vmatpush1.msra.mxu0 0.0
    %2570 = vmatprep.subr.mxu0 0.0
    %2571 = vmatpush1.msra.mxu0 0.0
    %2572 = vmatprep.subr.mxu0 0.0
    %2573 = vmatpush1.msra.mxu0 0.0
    %2574 = vmatprep.subr.mxu0 0.0
    %2575 = vmatpush1.msra.mxu0 0.0
    %2576 = vmatprep.subr.mxu0 0.0
    %2577 = vmatpush1.msra.mxu0 0.0
    %2578 = vmatprep.subr.mxu0 0.0
    %v2579 = vand.u32 %v2382, 4294901760
    %v2580 = vsub.f32 %v2382, %v2579
    %v2581 = vand.u32 %v2580, 4294901760
    %v2582 = vsub.f32 %v2580, %v2581
    %v2583 = vand.u32 %v2582, 4294901760
    %2584 = vmatpush1.msra.mxu0 %v2583
    %2585 = vmatprep.subr.mxu0 0.0
    %v2586 = vand.u32 %v2376, 4294901760
    %v2587 = vsub.f32 %v2376, %v2586
    %v2588 = vand.u32 %v2587, 4294901760
    %v2589 = vsub.f32 %v2587, %v2588
    %v2590 = vand.u32 %v2589, 4294901760
    %2591 = vmatpush1.msra.mxu0 %v2590
    %2592 = vmatprep.subr.mxu0 0.0
    %v2593 = vand.u32 %v2370, 4294901760
    %v2594 = vsub.f32 %v2370, %v2593
    %v2595 = vand.u32 %v2594, 4294901760
    %v2596 = vsub.f32 %v2594, %v2595
    %v2597 = vand.u32 %v2596, 4294901760
    %2598 = vmatpush1.msra.mxu0 %v2597
    %2599 = vmatprep.subr.mxu0 0.0
    %v2600 = vand.u32 %v2364, 4294901760
    %v2601 = vsub.f32 %v2364, %v2600
    %v2602 = vand.u32 %v2601, 4294901760
    %v2603 = vsub.f32 %v2601, %v2602
    %v2604 = vand.u32 %v2603, 4294901760
    %2605 = vmatpush1.msra.mxu0 %v2604
    %2606 = vmatprep.subr.mxu0 0.0
    %v2607 = vand.u32 %v2358, 4294901760
    %v2608 = vsub.f32 %v2358, %v2607
    %v2609 = vand.u32 %v2608, 4294901760
    %v2610 = vsub.f32 %v2608, %v2609
    %v2611 = vand.u32 %v2610, 4294901760
    %2612 = vmatpush1.msra.mxu0 %v2611
    %2613 = vmatprep.subr.mxu0 0.0
    %v2614 = vand.u32 %v2352, 4294901760
    %v2615 = vsub.f32 %v2352, %v2614
    %v2616 = vand.u32 %v2615, 4294901760
    %v2617 = vsub.f32 %v2615, %v2616
    %v2618 = vand.u32 %v2617, 4294901760
    %2619 = vmatpush1.msra.mxu0 %v2618
    %2620 = vmatprep.subr.mxu0 0.0
    %v2621 = vand.u32 %v2346, 4294901760
    %v2622 = vsub.f32 %v2346, %v2621
    %v2623 = vand.u32 %v2622, 4294901760
    %v2624 = vsub.f32 %v2622, %v2623
    %v2625 = vand.u32 %v2624, 4294901760
    %2626 = vmatpush1.msra.mxu0 %v2625
    %2627 = vmatprep.subr.mxu0 0.0
    %v2628 = vand.u32 %v2340, 4294901760
    %v2629 = vsub.f32 %v2340, %v2628
    %v2630 = vand.u32 %v2629, 4294901760
    %v2631 = vsub.f32 %v2629, %v2630
    %v2632 = vand.u32 %v2631, 4294901760
    %2633 = vmatpush1.msra.mxu0 %v2632
    %2634 = vmatprep.subr.mxu0 0.0
    %2635 = vmatpush2.msra.mxu0 0.0
    %2636 = vmatprep.subr.mxu0 0.0
    %2637 = vmatpush2.msra.mxu0 0.0
    %2638 = vmatprep.subr.mxu0 0.0
    %2639 = vmatpush2.msra.mxu0 0.0
    %2640 = vmatprep.subr.mxu0 0.0
    %2641 = vmatpush2.msra.mxu0 0.0
    %2642 = vmatprep.subr.mxu0 0.0
    %2643 = vmatpush2.msra.mxu0 0.0
    %2644 = vmatprep.subr.mxu0 0.0
    %2645 = vmatpush2.msra.mxu0 0.0
    %2646 = vmatprep.subr.mxu0 0.0
    %2647 = vmatpush2.msra.mxu0 0.0
    %2648 = vmatprep.subr.mxu0 0.0
    %2649 = vmatpush2.msra.mxu0 0.0
    %2650 = vmatprep.subr.mxu0 0.0
    %2651 = vmatpush2.msra.mxu0 0.0
    %2652 = vmatprep.subr.mxu0 0.0
    %2653 = vmatpush2.msra.mxu0 0.0
    %2654 = vmatprep.subr.mxu0 0.0
    %2655 = vmatpush2.msra.mxu0 0.0
    %2656 = vmatprep.subr.mxu0 0.0
    %2657 = vmatpush2.msra.mxu0 0.0
    %2658 = vmatprep.subr.mxu0 0.0
    %2659 = vmatpush2.msra.mxu0 0.0
    %2660 = vmatprep.subr.mxu0 0.0
    %2661 = vmatpush2.msra.mxu0 0.0
    %2662 = vmatprep.subr.mxu0 0.0
    %2663 = vmatpush2.msra.mxu0 0.0
    %2664 = vmatprep.subr.mxu0 0.0
    %2665 = vmatpush2.msra.mxu0 0.0
    %2666 = vmatprep.mubr.f32.mxu0 0.0
    %v2667 = vand.u32 %v2386, 4294901760
    %2668 = vmatmul.mubr.f32.gmra.mxu0 %v2667
    %v2669 = vpop.f32.mrf.mxu0
    %v2670 = vadd.f32 %v2489, %v2669
    %v2671 = vpop.f32.mrf.mxu0
    %2672 = vmatprep.mubr.f32.mxu0 0.0
    %v2673 = vand.u32 %v2389, 4294901760
    %2674 = vmatmul.mubr.f32.gmra.mxu0 %v2673
    %v2675 = vpop.f32.mrf.mxu0
    %v2676 = vadd.f32 %v2499, %v2675
    %v2677 = vpop.f32.mrf.mxu0
    %2678 = vmatprep.mubr.f32.mxu0 0.0
    %v2679 = vand.u32 %v2392, 4294901760
    %2680 = vmatmul.mubr.f32.gmra.mxu0 %v2679
    %v2681 = vpop.f32.mrf.mxu0
    %v2682 = vadd.f32 %v2509, %v2681
    %v2683 = vpop.f32.mrf.mxu0
    %2684 = vmatprep.mubr.f32.mxu0 0.0
    %v2685 = vand.u32 %v2395, 4294901760
    %2686 = vmatmul.mubr.f32.gmra.mxu0 %v2685
    %v2687 = vpop.f32.mrf.mxu0
    %v2688 = vadd.f32 %v2519, %v2687
    %v2689 = vpop.f32.mrf.mxu0
    %2690 = vmatprep.mubr.f32.mxu0 0.0
    %v2691 = vand.u32 %v2398, 4294901760
    %2692 = vmatmul.mubr.f32.gmra.mxu0 %v2691
    %v2693 = vpop.f32.mrf.mxu0
    %v2694 = vadd.f32 %v2529, %v2693
    %v2695 = vpop.f32.mrf.mxu0
    %2696 = vmatprep.mubr.f32.mxu0 0.0
    %v2697 = vand.u32 %v2401, 4294901760
    %2698 = vmatmul.mubr.f32.gmra.mxu0 %v2697
    %v2699 = vpop.f32.mrf.mxu0
    %v2700 = vadd.f32 %v2539, %v2699
    %v2701 = vpop.f32.mrf.mxu0
    %2702 = vmatprep.mubr.f32.mxu0 0.0
    %v2703 = vand.u32 %v2404, 4294901760
    %2704 = vmatmul.mubr.f32.gmra.mxu0 %v2703
    %v2705 = vpop.f32.mrf.mxu0
    %v2706 = vadd.f32 %v2549, %v2705
    %v2707 = vpop.f32.mrf.mxu0
    %2708 = vmatprep.mubr.f32.mxu0 0.0
    %v2709 = vand.u32 %v2407, 4294901760
    %2710 = vmatmul.mubr.f32.gmra.mxu0 %v2709
    %v2711 = vpop.f32.mrf.mxu0
    %v2712 = vadd.f32 %v2559, %v2711
    %v2713 = vpop.f32.mrf.mxu0
    %2714 = vdwg.mxu0
    %2715 = vmatprep.subr.mxu0 0.0
    %2716 = vmatpush1.msra.mxu0 0.0
    %2717 = vmatprep.subr.mxu0 0.0
    %2718 = vmatpush1.msra.mxu0 0.0
    %2719 = vmatprep.subr.mxu0 0.0
    %2720 = vmatpush1.msra.mxu0 0.0
    %2721 = vmatprep.subr.mxu0 0.0
    %2722 = vmatpush1.msra.mxu0 0.0
    %2723 = vmatprep.subr.mxu0 0.0
    %2724 = vmatpush1.msra.mxu0 0.0
    %2725 = vmatprep.subr.mxu0 0.0
    %2726 = vmatpush1.msra.mxu0 0.0
    %2727 = vmatprep.subr.mxu0 0.0
    %2728 = vmatpush1.msra.mxu0 0.0
    %2729 = vmatprep.subr.mxu0 0.0
    %2730 = vmatpush1.msra.mxu0 0.0
    %2731 = vmatprep.subr.mxu0 0.0
    %v2732 = vand.u32 %v2382, 4294901760
    %v2733 = vsub.f32 %v2382, %v2732
    %2734 = vmatpush1.msra.mxu0 %v2733
    %2735 = vmatprep.subr.mxu0 0.0
    %v2736 = vand.u32 %v2376, 4294901760
    %v2737 = vsub.f32 %v2376, %v2736
    %2738 = vmatpush1.msra.mxu0 %v2737
    %2739 = vmatprep.subr.mxu0 0.0
    %v2740 = vand.u32 %v2370, 4294901760
    %v2741 = vsub.f32 %v2370, %v2740
    %2742 = vmatpush1.msra.mxu0 %v2741
    %2743 = vmatprep.subr.mxu0 0.0
    %v2744 = vand.u32 %v2364, 4294901760
    %v2745 = vsub.f32 %v2364, %v2744
    %2746 = vmatpush1.msra.mxu0 %v2745
    %2747 = vmatprep.subr.mxu0 0.0
    %v2748 = vand.u32 %v2358, 4294901760
    %v2749 = vsub.f32 %v2358, %v2748
    %2750 = vmatpush1.msra.mxu0 %v2749
    %2751 = vmatprep.subr.mxu0 0.0
    %v2752 = vand.u32 %v2352, 4294901760
    %v2753 = vsub.f32 %v2352, %v2752
    %2754 = vmatpush1.msra.mxu0 %v2753
    %2755 = vmatprep.subr.mxu0 0.0
    %v2756 = vand.u32 %v2346, 4294901760
    %v2757 = vsub.f32 %v2346, %v2756
    %2758 = vmatpush1.msra.mxu0 %v2757
    %2759 = vmatprep.subr.mxu0 0.0
    %v2760 = vand.u32 %v2340, 4294901760
    %v2761 = vsub.f32 %v2340, %v2760
    %2762 = vmatpush1.msra.mxu0 %v2761
    %2763 = vmatprep.subr.mxu0 0.0
    %2764 = vmatpush2.msra.mxu0 0.0
    %2765 = vmatprep.subr.mxu0 0.0
    %2766 = vmatpush2.msra.mxu0 0.0
    %2767 = vmatprep.subr.mxu0 0.0
    %2768 = vmatpush2.msra.mxu0 0.0
    %2769 = vmatprep.subr.mxu0 0.0
    %2770 = vmatpush2.msra.mxu0 0.0
    %2771 = vmatprep.subr.mxu0 0.0
    %2772 = vmatpush2.msra.mxu0 0.0
    %2773 = vmatprep.subr.mxu0 0.0
    %2774 = vmatpush2.msra.mxu0 0.0
    %2775 = vmatprep.subr.mxu0 0.0
    %2776 = vmatpush2.msra.mxu0 0.0
    %2777 = vmatprep.subr.mxu0 0.0
    %2778 = vmatpush2.msra.mxu0 0.0
    %2779 = vmatprep.subr.mxu0 0.0
    %2780 = vmatpush2.msra.mxu0 0.0
    %2781 = vmatprep.subr.mxu0 0.0
    %2782 = vmatpush2.msra.mxu0 0.0
    %2783 = vmatprep.subr.mxu0 0.0
    %2784 = vmatpush2.msra.mxu0 0.0
    %2785 = vmatprep.subr.mxu0 0.0
    %2786 = vmatpush2.msra.mxu0 0.0
    %2787 = vmatprep.subr.mxu0 0.0
    %2788 = vmatpush2.msra.mxu0 0.0
    %2789 = vmatprep.subr.mxu0 0.0
    %2790 = vmatpush2.msra.mxu0 0.0
    %2791 = vmatprep.subr.mxu0 0.0
    %2792 = vmatpush2.msra.mxu0 0.0
    %2793 = vmatprep.subr.mxu0 0.0
    %2794 = vmatpush2.msra.mxu0 0.0
    %2795 = vmatprep.mubr.f32.mxu0 0.0
    %v2796 = vand.u32 %v2386, 4294901760
    %v2797 = vsub.f32 %v2386, %v2796
    %2798 = vmatmul.mubr.f32.gmra.mxu0 %v2797
    %v2799 = vpop.f32.mrf.mxu0
    %v2800 = vadd.f32 %v2670, %v2799
    %v2801 = vpop.f32.mrf.mxu0
    %2802 = vmatprep.mubr.f32.mxu0 0.0
    %v2803 = vand.u32 %v2389, 4294901760
    %v2804 = vsub.f32 %v2389, %v2803
    %2805 = vmatmul.mubr.f32.gmra.mxu0 %v2804
    %v2806 = vpop.f32.mrf.mxu0
    %v2807 = vadd.f32 %v2676, %v2806
    %v2808 = vpop.f32.mrf.mxu0
    %2809 = vmatprep.mubr.f32.mxu0 0.0
    %v2810 = vand.u32 %v2392, 4294901760
    %v2811 = vsub.f32 %v2392, %v2810
    %2812 = vmatmul.mubr.f32.gmra.mxu0 %v2811
    %v2813 = vpop.f32.mrf.mxu0
    %v2814 = vadd.f32 %v2682, %v2813
    %v2815 = vpop.f32.mrf.mxu0
    %2816 = vmatprep.mubr.f32.mxu0 0.0
    %v2817 = vand.u32 %v2395, 4294901760
    %v2818 = vsub.f32 %v2395, %v2817
    %2819 = vmatmul.mubr.f32.gmra.mxu0 %v2818
    %v2820 = vpop.f32.mrf.mxu0
    %v2821 = vadd.f32 %v2688, %v2820
    %v2822 = vpop.f32.mrf.mxu0
    %2823 = vmatprep.mubr.f32.mxu0 0.0
    %v2824 = vand.u32 %v2398, 4294901760
    %v2825 = vsub.f32 %v2398, %v2824
    %2826 = vmatmul.mubr.f32.gmra.mxu0 %v2825
    %v2827 = vpop.f32.mrf.mxu0
    %v2828 = vadd.f32 %v2694, %v2827
    %v2829 = vpop.f32.mrf.mxu0
    %2830 = vmatprep.mubr.f32.mxu0 0.0
    %v2831 = vand.u32 %v2401, 4294901760
    %v2832 = vsub.f32 %v2401, %v2831
    %2833 = vmatmul.mubr.f32.gmra.mxu0 %v2832
    %v2834 = vpop.f32.mrf.mxu0
    %v2835 = vadd.f32 %v2700, %v2834
    %v2836 = vpop.f32.mrf.mxu0
    %2837 = vmatprep.mubr.f32.mxu0 0.0
    %v2838 = vand.u32 %v2404, 4294901760
    %v2839 = vsub.f32 %v2404, %v2838
    %2840 = vmatmul.mubr.f32.gmra.mxu0 %v2839
    %v2841 = vpop.f32.mrf.mxu0
    %v2842 = vadd.f32 %v2706, %v2841
    %v2843 = vpop.f32.mrf.mxu0
    %2844 = vmatprep.mubr.f32.mxu0 0.0
    %v2845 = vand.u32 %v2407, 4294901760
    %v2846 = vsub.f32 %v2407, %v2845
    %2847 = vmatmul.mubr.f32.gmra.mxu0 %v2846
    %v2848 = vpop.f32.mrf.mxu0
    %v2849 = vadd.f32 %v2712, %v2848
    %v2850 = vpop.f32.mrf.mxu0
    %2851 = vdwg.mxu0
    %2852 = vmatprep.subr.mxu0 0.0
    %2853 = vmatpush1.msra.mxu0 0.0
    %2854 = vmatprep.subr.mxu0 0.0
    %2855 = vmatpush1.msra.mxu0 0.0
    %2856 = vmatprep.subr.mxu0 0.0
    %2857 = vmatpush1.msra.mxu0 0.0
    %2858 = vmatprep.subr.mxu0 0.0
    %2859 = vmatpush1.msra.mxu0 0.0
    %2860 = vmatprep.subr.mxu0 0.0
    %2861 = vmatpush1.msra.mxu0 0.0
    %2862 = vmatprep.subr.mxu0 0.0
    %2863 = vmatpush1.msra.mxu0 0.0
    %2864 = vmatprep.subr.mxu0 0.0
    %2865 = vmatpush1.msra.mxu0 0.0
    %2866 = vmatprep.subr.mxu0 0.0
    %2867 = vmatpush1.msra.mxu0 0.0
    %2868 = vmatprep.subr.mxu0 0.0
    %v2869 = vand.u32 %v2382, 4294901760
    %2870 = vmatpush1.msra.mxu0 %v2869
    %2871 = vmatprep.subr.mxu0 0.0
    %v2872 = vand.u32 %v2376, 4294901760
    %2873 = vmatpush1.msra.mxu0 %v2872
    %2874 = vmatprep.subr.mxu0 0.0
    %v2875 = vand.u32 %v2370, 4294901760
    %2876 = vmatpush1.msra.mxu0 %v2875
    %2877 = vmatprep.subr.mxu0 0.0
    %v2878 = vand.u32 %v2364, 4294901760
    %2879 = vmatpush1.msra.mxu0 %v2878
    %2880 = vmatprep.subr.mxu0 0.0
    %v2881 = vand.u32 %v2358, 4294901760
    %2882 = vmatpush1.msra.mxu0 %v2881
    %2883 = vmatprep.subr.mxu0 0.0
    %v2884 = vand.u32 %v2352, 4294901760
    %2885 = vmatpush1.msra.mxu0 %v2884
    %2886 = vmatprep.subr.mxu0 0.0
    %v2887 = vand.u32 %v2346, 4294901760
    %2888 = vmatpush1.msra.mxu0 %v2887
    %2889 = vmatprep.subr.mxu0 0.0
    %v2890 = vand.u32 %v2340, 4294901760
    %2891 = vmatpush1.msra.mxu0 %v2890
    %2892 = vmatprep.subr.mxu0 0.0
    %2893 = vmatpush2.msra.mxu0 0.0
    %2894 = vmatprep.subr.mxu0 0.0
    %2895 = vmatpush2.msra.mxu0 0.0
    %2896 = vmatprep.subr.mxu0 0.0
    %2897 = vmatpush2.msra.mxu0 0.0
    %2898 = vmatprep.subr.mxu0 0.0
    %2899 = vmatpush2.msra.mxu0 0.0
    %2900 = vmatprep.subr.mxu0 0.0
    %2901 = vmatpush2.msra.mxu0 0.0
    %2902 = vmatprep.subr.mxu0 0.0
    %2903 = vmatpush2.msra.mxu0 0.0
    %2904 = vmatprep.subr.mxu0 0.0
    %2905 = vmatpush2.msra.mxu0 0.0
    %2906 = vmatprep.subr.mxu0 0.0
    %2907 = vmatpush2.msra.mxu0 0.0
    %2908 = vmatprep.subr.mxu0 0.0
    %2909 = vmatpush2.msra.mxu0 0.0
    %2910 = vmatprep.subr.mxu0 0.0
    %2911 = vmatpush2.msra.mxu0 0.0
    %2912 = vmatprep.subr.mxu0 0.0
    %2913 = vmatpush2.msra.mxu0 0.0
    %2914 = vmatprep.subr.mxu0 0.0
    %2915 = vmatpush2.msra.mxu0 0.0
    %2916 = vmatprep.subr.mxu0 0.0
    %2917 = vmatpush2.msra.mxu0 0.0
    %2918 = vmatprep.subr.mxu0 0.0
    %2919 = vmatpush2.msra.mxu0 0.0
    %2920 = vmatprep.subr.mxu0 0.0
    %2921 = vmatpush2.msra.mxu0 0.0
    %2922 = vmatprep.subr.mxu0 0.0
    %2923 = vmatpush2.msra.mxu0 0.0
    %2924 = vmatprep.mubr.f32.mxu0 0.0
    %v2925 = vand.u32 %v2386, 4294901760
    %v2926 = vsub.f32 %v2386, %v2925
    %v2927 = vand.u32 %v2926, 4294901760
    %2928 = vmatmul.mubr.f32.gmra.mxu0 %v2927
    %v2929 = vpop.f32.mrf.mxu0
    %v2930 = vadd.f32 %v2800, %v2929
    %v2931 = vpop.f32.mrf.mxu0
    %2932 = vmatprep.mubr.f32.mxu0 0.0
    %v2933 = vand.u32 %v2389, 4294901760
    %v2934 = vsub.f32 %v2389, %v2933
    %v2935 = vand.u32 %v2934, 4294901760
    %2936 = vmatmul.mubr.f32.gmra.mxu0 %v2935
    %v2937 = vpop.f32.mrf.mxu0
    %v2938 = vadd.f32 %v2807, %v2937
    %v2939 = vpop.f32.mrf.mxu0
    %2940 = vmatprep.mubr.f32.mxu0 0.0
    %v2941 = vand.u32 %v2392, 4294901760
    %v2942 = vsub.f32 %v2392, %v2941
    %v2943 = vand.u32 %v2942, 4294901760
    %2944 = vmatmul.mubr.f32.gmra.mxu0 %v2943
    %v2945 = vpop.f32.mrf.mxu0
    %v2946 = vadd.f32 %v2814, %v2945
    %v2947 = vpop.f32.mrf.mxu0
    %2948 = vmatprep.mubr.f32.mxu0 0.0
    %v2949 = vand.u32 %v2395, 4294901760
    %v2950 = vsub.f32 %v2395, %v2949
    %v2951 = vand.u32 %v2950, 4294901760
    %2952 = vmatmul.mubr.f32.gmra.mxu0 %v2951
    %v2953 = vpop.f32.mrf.mxu0
    %v2954 = vadd.f32 %v2821, %v2953
    %v2955 = vpop.f32.mrf.mxu0
    %2956 = vmatprep.mubr.f32.mxu0 0.0
    %v2957 = vand.u32 %v2398, 4294901760
    %v2958 = vsub.f32 %v2398, %v2957
    %v2959 = vand.u32 %v2958, 4294901760
    %2960 = vmatmul.mubr.f32.gmra.mxu0 %v2959
    %v2961 = vpop.f32.mrf.mxu0
    %v2962 = vadd.f32 %v2828, %v2961
    %v2963 = vpop.f32.mrf.mxu0
    %2964 = vmatprep.mubr.f32.mxu0 0.0
    %v2965 = vand.u32 %v2401, 4294901760
    %v2966 = vsub.f32 %v2401, %v2965
    %v2967 = vand.u32 %v2966, 4294901760
    %2968 = vmatmul.mubr.f32.gmra.mxu0 %v2967
    %v2969 = vpop.f32.mrf.mxu0
    %v2970 = vadd.f32 %v2835, %v2969
    %v2971 = vpop.f32.mrf.mxu0
    %2972 = vmatprep.mubr.f32.mxu0 0.0
    %v2973 = vand.u32 %v2404, 4294901760
    %v2974 = vsub.f32 %v2404, %v2973
    %v2975 = vand.u32 %v2974, 4294901760
    %2976 = vmatmul.mubr.f32.gmra.mxu0 %v2975
    %v2977 = vpop.f32.mrf.mxu0
    %v2978 = vadd.f32 %v2842, %v2977
    %v2979 = vpop.f32.mrf.mxu0
    %2980 = vmatprep.mubr.f32.mxu0 0.0
    %v2981 = vand.u32 %v2407, 4294901760
    %v2982 = vsub.f32 %v2407, %v2981
    %v2983 = vand.u32 %v2982, 4294901760
    %2984 = vmatmul.mubr.f32.gmra.mxu0 %v2983
    %v2985 = vpop.f32.mrf.mxu0
    %v2986 = vadd.f32 %v2849, %v2985
    %v2987 = vpop.f32.mrf.mxu0
    %2988 = vdwg.mxu0
    %2989 = vmatprep.subr.mxu0 0.0
    %2990 = vmatpush1.msra.mxu0 0.0
    %2991 = vmatprep.subr.mxu0 0.0
    %2992 = vmatpush1.msra.mxu0 0.0
    %2993 = vmatprep.subr.mxu0 0.0
    %2994 = vmatpush1.msra.mxu0 0.0
    %2995 = vmatprep.subr.mxu0 0.0
    %2996 = vmatpush1.msra.mxu0 0.0
    %2997 = vmatprep.subr.mxu0 0.0
    %2998 = vmatpush1.msra.mxu0 0.0
    %2999 = vmatprep.subr.mxu0 0.0
    %3000 = vmatpush1.msra.mxu0 0.0
    %3001 = vmatprep.subr.mxu0 0.0
    %3002 = vmatpush1.msra.mxu0 0.0
    %3003 = vmatprep.subr.mxu0 0.0
    %3004 = vmatpush1.msra.mxu0 0.0
    %3005 = vmatprep.subr.mxu0 0.0
    %v3006 = vand.u32 %v2382, 4294901760
    %v3007 = vsub.f32 %v2382, %v3006
    %v3008 = vand.u32 %v3007, 4294901760
    %3009 = vmatpush1.msra.mxu0 %v3008
    %3010 = vmatprep.subr.mxu0 0.0
    %v3011 = vand.u32 %v2376, 4294901760
    %v3012 = vsub.f32 %v2376, %v3011
    %v3013 = vand.u32 %v3012, 4294901760
    %3014 = vmatpush1.msra.mxu0 %v3013
    %3015 = vmatprep.subr.mxu0 0.0
    %v3016 = vand.u32 %v2370, 4294901760
    %v3017 = vsub.f32 %v2370, %v3016
    %v3018 = vand.u32 %v3017, 4294901760
    %3019 = vmatpush1.msra.mxu0 %v3018
    %3020 = vmatprep.subr.mxu0 0.0
    %v3021 = vand.u32 %v2364, 4294901760
    %v3022 = vsub.f32 %v2364, %v3021
    %v3023 = vand.u32 %v3022, 4294901760
    %3024 = vmatpush1.msra.mxu0 %v3023
    %3025 = vmatprep.subr.mxu0 0.0
    %v3026 = vand.u32 %v2358, 4294901760
    %v3027 = vsub.f32 %v2358, %v3026
    %v3028 = vand.u32 %v3027, 4294901760
    %3029 = vmatpush1.msra.mxu0 %v3028
    %3030 = vmatprep.subr.mxu0 0.0
    %v3031 = vand.u32 %v2352, 4294901760
    %v3032 = vsub.f32 %v2352, %v3031
    %v3033 = vand.u32 %v3032, 4294901760
    %3034 = vmatpush1.msra.mxu0 %v3033
    %3035 = vmatprep.subr.mxu0 0.0
    %v3036 = vand.u32 %v2346, 4294901760
    %v3037 = vsub.f32 %v2346, %v3036
    %v3038 = vand.u32 %v3037, 4294901760
    %3039 = vmatpush1.msra.mxu0 %v3038
    %3040 = vmatprep.subr.mxu0 0.0
    %v3041 = vand.u32 %v2340, 4294901760
    %v3042 = vsub.f32 %v2340, %v3041
    %v3043 = vand.u32 %v3042, 4294901760
    %3044 = vmatpush1.msra.mxu0 %v3043
    %3045 = vmatprep.subr.mxu0 0.0
    %3046 = vmatpush2.msra.mxu0 0.0
    %3047 = vmatprep.subr.mxu0 0.0
    %3048 = vmatpush2.msra.mxu0 0.0
    %3049 = vmatprep.subr.mxu0 0.0
    %3050 = vmatpush2.msra.mxu0 0.0
    %3051 = vmatprep.subr.mxu0 0.0
    %3052 = vmatpush2.msra.mxu0 0.0
    %3053 = vmatprep.subr.mxu0 0.0
    %3054 = vmatpush2.msra.mxu0 0.0
    %3055 = vmatprep.subr.mxu0 0.0
    %3056 = vmatpush2.msra.mxu0 0.0
    %3057 = vmatprep.subr.mxu0 0.0
    %3058 = vmatpush2.msra.mxu0 0.0
    %3059 = vmatprep.subr.mxu0 0.0
    %3060 = vmatpush2.msra.mxu0 0.0
    %3061 = vmatprep.subr.mxu0 0.0
    %3062 = vmatpush2.msra.mxu0 0.0
    %3063 = vmatprep.subr.mxu0 0.0
    %3064 = vmatpush2.msra.mxu0 0.0
    %3065 = vmatprep.subr.mxu0 0.0
    %3066 = vmatpush2.msra.mxu0 0.0
    %3067 = vmatprep.subr.mxu0 0.0
    %3068 = vmatpush2.msra.mxu0 0.0
    %3069 = vmatprep.subr.mxu0 0.0
    %3070 = vmatpush2.msra.mxu0 0.0
    %3071 = vmatprep.subr.mxu0 0.0
    %3072 = vmatpush2.msra.mxu0 0.0
    %3073 = vmatprep.subr.mxu0 0.0
    %3074 = vmatpush2.msra.mxu0 0.0
    %3075 = vmatprep.subr.mxu0 0.0
    %3076 = vmatpush2.msra.mxu0 0.0
    %3077 = vmatprep.mubr.f32.mxu0 0.0
    %v3078 = vand.u32 %v2386, 4294901760
    %3079 = vmatmul.mubr.f32.gmra.mxu0 %v3078
    %v3080 = vpop.f32.mrf.mxu0
    %v3081 = vadd.f32 %v2930, %v3080
    %v3082 = vpop.f32.mrf.mxu0
    %3083 = vmatprep.mubr.f32.mxu0 0.0
    %v3084 = vand.u32 %v2389, 4294901760
    %3085 = vmatmul.mubr.f32.gmra.mxu0 %v3084
    %v3086 = vpop.f32.mrf.mxu0
    %v3087 = vadd.f32 %v2938, %v3086
    %v3088 = vpop.f32.mrf.mxu0
    %3089 = vmatprep.mubr.f32.mxu0 0.0
    %v3090 = vand.u32 %v2392, 4294901760
    %3091 = vmatmul.mubr.f32.gmra.mxu0 %v3090
    %v3092 = vpop.f32.mrf.mxu0
    %v3093 = vadd.f32 %v2946, %v3092
    %v3094 = vpop.f32.mrf.mxu0
    %3095 = vmatprep.mubr.f32.mxu0 0.0
    %v3096 = vand.u32 %v2395, 4294901760
    %3097 = vmatmul.mubr.f32.gmra.mxu0 %v3096
    %v3098 = vpop.f32.mrf.mxu0
    %v3099 = vadd.f32 %v2954, %v3098
    %v3100 = vpop.f32.mrf.mxu0
    %3101 = vmatprep.mubr.f32.mxu0 0.0
    %v3102 = vand.u32 %v2398, 4294901760
    %3103 = vmatmul.mubr.f32.gmra.mxu0 %v3102
    %v3104 = vpop.f32.mrf.mxu0
    %v3105 = vadd.f32 %v2962, %v3104
    %v3106 = vpop.f32.mrf.mxu0
    %3107 = vmatprep.mubr.f32.mxu0 0.0
    %v3108 = vand.u32 %v2401, 4294901760
    %3109 = vmatmul.mubr.f32.gmra.mxu0 %v3108
    %v3110 = vpop.f32.mrf.mxu0
    %v3111 = vadd.f32 %v2970, %v3110
    %v3112 = vpop.f32.mrf.mxu0
    %3113 = vmatprep.mubr.f32.mxu0 0.0
    %v3114 = vand.u32 %v2404, 4294901760
    %3115 = vmatmul.mubr.f32.gmra.mxu0 %v3114
    %v3116 = vpop.f32.mrf.mxu0
    %v3117 = vadd.f32 %v2978, %v3116
    %v3118 = vpop.f32.mrf.mxu0
    %3119 = vmatprep.mubr.f32.mxu0 0.0
    %v3120 = vand.u32 %v2407, 4294901760
    %3121 = vmatmul.mubr.f32.gmra.mxu0 %v3120
    %v3122 = vpop.f32.mrf.mxu0
    %v3123 = vadd.f32 %v2986, %v3122
    %v3124 = vpop.f32.mrf.mxu0
    %3125 = vdwg.mxu0
    %3126 = vmatprep.subr.mxu0 0.0
    %3127 = vmatpush1.msra.mxu0 0.0
    %3128 = vmatprep.subr.mxu0 0.0
    %3129 = vmatpush1.msra.mxu0 0.0
    %3130 = vmatprep.subr.mxu0 0.0
    %3131 = vmatpush1.msra.mxu0 0.0
    %3132 = vmatprep.subr.mxu0 0.0
    %3133 = vmatpush1.msra.mxu0 0.0
    %3134 = vmatprep.subr.mxu0 0.0
    %3135 = vmatpush1.msra.mxu0 0.0
    %3136 = vmatprep.subr.mxu0 0.0
    %3137 = vmatpush1.msra.mxu0 0.0
    %3138 = vmatprep.subr.mxu0 0.0
    %3139 = vmatpush1.msra.mxu0 0.0
    %3140 = vmatprep.subr.mxu0 0.0
    %3141 = vmatpush1.msra.mxu0 0.0
    %3142 = vmatprep.subr.mxu0 0.0
    %v3143 = vand.u32 %v2382, 4294901760
    %3144 = vmatpush1.msra.mxu0 %v3143
    %3145 = vmatprep.subr.mxu0 0.0
    %v3146 = vand.u32 %v2376, 4294901760
    %3147 = vmatpush1.msra.mxu0 %v3146
    %3148 = vmatprep.subr.mxu0 0.0
    %v3149 = vand.u32 %v2370, 4294901760
    %3150 = vmatpush1.msra.mxu0 %v3149
    %3151 = vmatprep.subr.mxu0 0.0
    %v3152 = vand.u32 %v2364, 4294901760
    %3153 = vmatpush1.msra.mxu0 %v3152
    %3154 = vmatprep.subr.mxu0 0.0
    %v3155 = vand.u32 %v2358, 4294901760
    %3156 = vmatpush1.msra.mxu0 %v3155
    %3157 = vmatprep.subr.mxu0 0.0
    %v3158 = vand.u32 %v2352, 4294901760
    %3159 = vmatpush1.msra.mxu0 %v3158
    %3160 = vmatprep.subr.mxu0 0.0
    %v3161 = vand.u32 %v2346, 4294901760
    %3162 = vmatpush1.msra.mxu0 %v3161
    %3163 = vmatprep.subr.mxu0 0.0
    %v3164 = vand.u32 %v2340, 4294901760
    %3165 = vmatpush1.msra.mxu0 %v3164
    %3166 = vmatprep.subr.mxu0 0.0
    %3167 = vmatpush2.msra.mxu0 0.0
    %3168 = vmatprep.subr.mxu0 0.0
    %3169 = vmatpush2.msra.mxu0 0.0
    %3170 = vmatprep.subr.mxu0 0.0
    %3171 = vmatpush2.msra.mxu0 0.0
    %3172 = vmatprep.subr.mxu0 0.0
    %3173 = vmatpush2.msra.mxu0 0.0
    %3174 = vmatprep.subr.mxu0 0.0
    %3175 = vmatpush2.msra.mxu0 0.0
    %3176 = vmatprep.subr.mxu0 0.0
    %3177 = vmatpush2.msra.mxu0 0.0
    %3178 = vmatprep.subr.mxu0 0.0
    %3179 = vmatpush2.msra.mxu0 0.0
    %3180 = vmatprep.subr.mxu0 0.0
    %3181 = vmatpush2.msra.mxu0 0.0
    %3182 = vmatprep.subr.mxu0 0.0
    %3183 = vmatpush2.msra.mxu0 0.0
    %3184 = vmatprep.subr.mxu0 0.0
    %3185 = vmatpush2.msra.mxu0 0.0
    %3186 = vmatprep.subr.mxu0 0.0
    %3187 = vmatpush2.msra.mxu0 0.0
    %3188 = vmatprep.subr.mxu0 0.0
    %3189 = vmatpush2.msra.mxu0 0.0
    %3190 = vmatprep.subr.mxu0 0.0
    %3191 = vmatpush2.msra.mxu0 0.0
    %3192 = vmatprep.subr.mxu0 0.0
    %3193 = vmatpush2.msra.mxu0 0.0
    %3194 = vmatprep.subr.mxu0 0.0
    %3195 = vmatpush2.msra.mxu0 0.0
    %3196 = vmatprep.subr.mxu0 0.0
    %3197 = vmatpush2.msra.mxu0 0.0
    %3198 = vmatprep.mubr.f32.mxu0 0.0
    %v3199 = vand.u32 %v2386, 4294901760
    %3200 = vmatmul.mubr.f32.gmra.mxu0 %v3199
    %v3201 = vpop.f32.mrf.mxu0
    %v3202 = vadd.f32 %v3081, %v3201
    %v3203 = vpop.f32.mrf.mxu0
    %3204 = vmatprep.mubr.f32.mxu0 0.0
    %v3205 = vand.u32 %v2389, 4294901760
    %3206 = vmatmul.mubr.f32.gmra.mxu0 %v3205
    %v3207 = vpop.f32.mrf.mxu0
    %v3208 = vadd.f32 %v3087, %v3207
    %v3209 = vpop.f32.mrf.mxu0
    %3210 = vmatprep.mubr.f32.mxu0 0.0
    %v3211 = vand.u32 %v2392, 4294901760
    %3212 = vmatmul.mubr.f32.gmra.mxu0 %v3211
    %v3213 = vpop.f32.mrf.mxu0
    %v3214 = vadd.f32 %v3093, %v3213
    %v3215 = vpop.f32.mrf.mxu0
    %3216 = vmatprep.mubr.f32.mxu0 0.0
    %v3217 = vand.u32 %v2395, 4294901760
    %3218 = vmatmul.mubr.f32.gmra.mxu0 %v3217
    %v3219 = vpop.f32.mrf.mxu0
    %v3220 = vadd.f32 %v3099, %v3219
    %v3221 = vpop.f32.mrf.mxu0
    %3222 = vmatprep.mubr.f32.mxu0 0.0
    %v3223 = vand.u32 %v2398, 4294901760
    %3224 = vmatmul.mubr.f32.gmra.mxu0 %v3223
    %v3225 = vpop.f32.mrf.mxu0
    %v3226 = vadd.f32 %v3105, %v3225
    %v3227 = vpop.f32.mrf.mxu0
    %3228 = vmatprep.mubr.f32.mxu0 0.0
    %v3229 = vand.u32 %v2401, 4294901760
    %3230 = vmatmul.mubr.f32.gmra.mxu0 %v3229
    %v3231 = vpop.f32.mrf.mxu0
    %v3232 = vadd.f32 %v3111, %v3231
    %v3233 = vpop.f32.mrf.mxu0
    %3234 = vmatprep.mubr.f32.mxu0 0.0
    %v3235 = vand.u32 %v2404, 4294901760
    %3236 = vmatmul.mubr.f32.gmra.mxu0 %v3235
    %v3237 = vpop.f32.mrf.mxu0
    %v3238 = vadd.f32 %v3117, %v3237
    %v3239 = vpop.f32.mrf.mxu0
    %3240 = vmatprep.mubr.f32.mxu0 0.0
    %v3241 = vand.u32 %v2407, 4294901760
    %3242 = vmatmul.mubr.f32.gmra.mxu0 %v3241
    %v3243 = vpop.f32.mrf.mxu0
    %v3244 = vadd.f32 %v3123, %v3243
    %v3245 = vpop.f32.mrf.mxu0
    %3246 = vdwg.mxu0
    %v3247 = vmul.f32 %v3202, %v49
    %v3248 = vmul.f32 %v3208, %v50
    %v3249 = vmul.f32 %v3214, %v51
    %v3250 = vmul.f32 %v3220, %v52
    %v3251 = vmul.f32 %v3226, %v53
    %v3252 = vmul.f32 %v3232, %v54
    %v3253 = vmul.f32 %v3238, %v55
    %v3254 = vmul.f32 %v3244, %v56
    %v3255 = vsel %vm209, %v3247, 0.0
    %3256 = vadd.xlane.f32.xlu0 %v3255
    %v3257 = vpop.xlane.xlu0 %3256
    %v3258 = vsel %vm209, %v3248, 0.0
    %3259 = vadd.xlane.f32.xlu0 %v3258
    %v3260 = vpop.xlane.xlu0 %3259
    %v3261 = vsel %vm209, %v3249, 0.0
    %3262 = vadd.xlane.f32.xlu0 %v3261
    %v3263 = vpop.xlane.xlu0 %3262
    %v3264 = vsel %vm209, %v3250, 0.0
    %3265 = vadd.xlane.f32.xlu0 %v3264
    %v3266 = vpop.xlane.xlu0 %3265
    %v3267 = vsel %vm209, %v3251, 0.0
    %3268 = vadd.xlane.f32.xlu0 %v3267
    %v3269 = vpop.xlane.xlu0 %3268
    %v3270 = vsel %vm209, %v3252, 0.0
    %3271 = vadd.xlane.f32.xlu0 %v3270
    %v3272 = vpop.xlane.xlu0 %3271
    %v3273 = vsel %vm209, %v3253, 0.0
    %3274 = vadd.xlane.f32.xlu0 %v3273
    %v3275 = vpop.xlane.xlu0 %3274
    %v3276 = vsel %vm209, %v3254, 0.0
    %3277 = vadd.xlane.f32.xlu0 %v3276
    %v3278 = vpop.xlane.xlu0 %3277
    %v3279 = vmul.f32 %v3202, %v3202
    %v3280 = vmul.f32 %v3208, %v3208
    %v3281 = vmul.f32 %v3214, %v3214
    %v3282 = vmul.f32 %v3220, %v3220
    %v3283 = vmul.f32 %v3226, %v3226
    %v3284 = vmul.f32 %v3232, %v3232
    %v3285 = vmul.f32 %v3238, %v3238
    %v3286 = vmul.f32 %v3244, %v3244
    %v3287 = vsel %vm209, %v3279, 0.0
    %3288 = vadd.xlane.f32.xlu0 %v3287
    %v3289 = vpop.xlane.xlu0 %3288
    %v3290 = vsel %vm209, %v3280, 0.0
    %3291 = vadd.xlane.f32.xlu0 %v3290
    %v3292 = vpop.xlane.xlu0 %3291
    %v3293 = vsel %vm209, %v3281, 0.0
    %3294 = vadd.xlane.f32.xlu0 %v3293
    %v3295 = vpop.xlane.xlu0 %3294
    %v3296 = vsel %vm209, %v3282, 0.0
    %3297 = vadd.xlane.f32.xlu0 %v3296
    %v3298 = vpop.xlane.xlu0 %3297
    %v3299 = vsel %vm209, %v3283, 0.0
    %3300 = vadd.xlane.f32.xlu0 %v3299
    %v3301 = vpop.xlane.xlu0 %3300
    %v3302 = vsel %vm209, %v3284, 0.0
    %3303 = vadd.xlane.f32.xlu0 %v3302
    %v3304 = vpop.xlane.xlu0 %3303
    %v3305 = vsel %vm209, %v3285, 0.0
    %3306 = vadd.xlane.f32.xlu0 %v3305
    %v3307 = vpop.xlane.xlu0 %3306
    %v3308 = vsel %vm209, %v3286, 0.0
    %3309 = vadd.xlane.f32.xlu0 %v3308
    %v3310 = vpop.xlane.xlu0 %3309
    %vm3311 = vcmask 7168
    %v3312 = vsel %vm3311, %v3257, %v3289
    %v3313 = vsel %vm3311, %v3260, %v3292
    %v3314 = vsel %vm3311, %v3263, %v3295
    %v3315 = vsel %vm3311, %v3266, %v3298
    %v3316 = vsel %vm3311, %v3269, %v3301
    %v3317 = vsel %vm3311, %v3272, %v3304
    %v3318 = vsel %vm3311, %v3275, %v3307
    %v3319 = vsel %vm3311, %v3278, %v3310
    %v3321 = vsel %vm209, %v57, 0
    %3323 = vmatprep.subr.mxu0 0.0
    %3324 = vmatpush1.msra.mxu0 0.0
    %3325 = vmatprep.subr.mxu0 0.0
    %3326 = vmatpush1.msra.mxu0 0.0
    %3327 = vmatprep.subr.mxu0 0.0
    %3328 = vmatpush1.msra.mxu0 0.0
    %3329 = vmatprep.subr.mxu0 0.0
    %3330 = vmatpush1.msra.mxu0 0.0
    %3331 = vmatprep.subr.mxu0 0.0
    %3332 = vmatpush1.msra.mxu0 0.0
    %3333 = vmatprep.subr.mxu0 0.0
    %3334 = vmatpush1.msra.mxu0 0.0
    %3335 = vmatprep.subr.mxu0 0.0
    %3336 = vmatpush1.msra.mxu0 0.0
    %3337 = vmatprep.subr.mxu0 0.0
    %3338 = vmatpush1.msra.mxu0 0.0
    %3339 = vmatprep.subr.mxu0 0.0
    %v3340 = vand.u32 %v3319, 4294901760
    %3341 = vmatpush1.msra.mxu0 %v3340
    %3342 = vmatprep.subr.mxu0 0.0
    %v3343 = vand.u32 %v3318, 4294901760
    %3344 = vmatpush1.msra.mxu0 %v3343
    %3345 = vmatprep.subr.mxu0 0.0
    %v3346 = vand.u32 %v3317, 4294901760
    %3347 = vmatpush1.msra.mxu0 %v3346
    %3348 = vmatprep.subr.mxu0 0.0
    %v3349 = vand.u32 %v3316, 4294901760
    %3350 = vmatpush1.msra.mxu0 %v3349
    %3351 = vmatprep.subr.mxu0 0.0
    %v3352 = vand.u32 %v3315, 4294901760
    %3353 = vmatpush1.msra.mxu0 %v3352
    %3354 = vmatprep.subr.mxu0 0.0
    %v3355 = vand.u32 %v3314, 4294901760
    %3356 = vmatpush1.msra.mxu0 %v3355
    %3357 = vmatprep.subr.mxu0 0.0
    %v3358 = vand.u32 %v3313, 4294901760
    %3359 = vmatpush1.msra.mxu0 %v3358
    %3360 = vmatprep.subr.mxu0 0.0
    %v3361 = vand.u32 %v3312, 4294901760
    %3362 = vmatpush1.msra.mxu0 %v3361
    %3363 = vmatprep.subr.mxu0 0.0
    %3364 = vmatpush2.msra.mxu0 0.0
    %3365 = vmatprep.subr.mxu0 0.0
    %3366 = vmatpush2.msra.mxu0 0.0
    %3367 = vmatprep.subr.mxu0 0.0
    %3368 = vmatpush2.msra.mxu0 0.0
    %3369 = vmatprep.subr.mxu0 0.0
    %3370 = vmatpush2.msra.mxu0 0.0
    %3371 = vmatprep.subr.mxu0 0.0
    %3372 = vmatpush2.msra.mxu0 0.0
    %3373 = vmatprep.subr.mxu0 0.0
    %3374 = vmatpush2.msra.mxu0 0.0
    %3375 = vmatprep.subr.mxu0 0.0
    %3376 = vmatpush2.msra.mxu0 0.0
    %3377 = vmatprep.subr.mxu0 0.0
    %3378 = vmatpush2.msra.mxu0 0.0
    %3379 = vmatprep.subr.mxu0 0.0
    %3380 = vmatpush2.msra.mxu0 0.0
    %3381 = vmatprep.subr.mxu0 0.0
    %3382 = vmatpush2.msra.mxu0 0.0
    %3383 = vmatprep.subr.mxu0 0.0
    %3384 = vmatpush2.msra.mxu0 0.0
    %3385 = vmatprep.subr.mxu0 0.0
    %3386 = vmatpush2.msra.mxu0 0.0
    %3387 = vmatprep.subr.mxu0 0.0
    %3388 = vmatpush2.msra.mxu0 0.0
    %3389 = vmatprep.subr.mxu0 0.0
    %3390 = vmatpush2.msra.mxu0 0.0
    %3391 = vmatprep.subr.mxu0 0.0
    %3392 = vmatpush2.msra.mxu0 0.0
    %3393 = vmatprep.subr.mxu0 0.0
    %3394 = vmatpush2.msra.mxu0 0.0
    %3395 = vmatprep.mubr.f32.mxu0 0.0
    %v3396 = vand.u32 %v3321, 4294901760
    %v3397 = vsub.f32 %v3321, %v3396
    %v3398 = vand.u32 %v3397, 4294901760
    %v3399 = vsub.f32 %v3397, %v3398
    %v3400 = vand.u32 %v3399, 4294901760
    %3401 = vmatmul.mubr.f32.gmra.mxu0 %v3400
    %v3402 = vpop.f32.mrf.mxu0
    %v3403 = vadd.f32 0.0, %v3402
    %v3404 = vpop.f32.mrf.mxu0
    %3405 = vdwg.mxu0
    %3406 = vmatprep.subr.mxu0 0.0
    %3407 = vmatpush1.msra.mxu0 0.0
    %3408 = vmatprep.subr.mxu0 0.0
    %3409 = vmatpush1.msra.mxu0 0.0
    %3410 = vmatprep.subr.mxu0 0.0
    %3411 = vmatpush1.msra.mxu0 0.0
    %3412 = vmatprep.subr.mxu0 0.0
    %3413 = vmatpush1.msra.mxu0 0.0
    %3414 = vmatprep.subr.mxu0 0.0
    %3415 = vmatpush1.msra.mxu0 0.0
    %3416 = vmatprep.subr.mxu0 0.0
    %3417 = vmatpush1.msra.mxu0 0.0
    %3418 = vmatprep.subr.mxu0 0.0
    %3419 = vmatpush1.msra.mxu0 0.0
    %3420 = vmatprep.subr.mxu0 0.0
    %3421 = vmatpush1.msra.mxu0 0.0
    %3422 = vmatprep.subr.mxu0 0.0
    %v3423 = vand.u32 %v3319, 4294901760
    %v3424 = vsub.f32 %v3319, %v3423
    %v3425 = vand.u32 %v3424, 4294901760
    %v3426 = vsub.f32 %v3424, %v3425
    %v3427 = vand.u32 %v3426, 4294901760
    %3428 = vmatpush1.msra.mxu0 %v3427
    %3429 = vmatprep.subr.mxu0 0.0
    %v3430 = vand.u32 %v3318, 4294901760
    %v3431 = vsub.f32 %v3318, %v3430
    %v3432 = vand.u32 %v3431, 4294901760
    %v3433 = vsub.f32 %v3431, %v3432
    %v3434 = vand.u32 %v3433, 4294901760
    %3435 = vmatpush1.msra.mxu0 %v3434
    %3436 = vmatprep.subr.mxu0 0.0
    %v3437 = vand.u32 %v3317, 4294901760
    %v3438 = vsub.f32 %v3317, %v3437
    %v3439 = vand.u32 %v3438, 4294901760
    %v3440 = vsub.f32 %v3438, %v3439
    %v3441 = vand.u32 %v3440, 4294901760
    %3442 = vmatpush1.msra.mxu0 %v3441
    %3443 = vmatprep.subr.mxu0 0.0
    %v3444 = vand.u32 %v3316, 4294901760
    %v3445 = vsub.f32 %v3316, %v3444
    %v3446 = vand.u32 %v3445, 4294901760
    %v3447 = vsub.f32 %v3445, %v3446
    %v3448 = vand.u32 %v3447, 4294901760
    %3449 = vmatpush1.msra.mxu0 %v3448
    %3450 = vmatprep.subr.mxu0 0.0
    %v3451 = vand.u32 %v3315, 4294901760
    %v3452 = vsub.f32 %v3315, %v3451
    %v3453 = vand.u32 %v3452, 4294901760
    %v3454 = vsub.f32 %v3452, %v3453
    %v3455 = vand.u32 %v3454, 4294901760
    %3456 = vmatpush1.msra.mxu0 %v3455
    %3457 = vmatprep.subr.mxu0 0.0
    %v3458 = vand.u32 %v3314, 4294901760
    %v3459 = vsub.f32 %v3314, %v3458
    %v3460 = vand.u32 %v3459, 4294901760
    %v3461 = vsub.f32 %v3459, %v3460
    %v3462 = vand.u32 %v3461, 4294901760
    %3463 = vmatpush1.msra.mxu0 %v3462
    %3464 = vmatprep.subr.mxu0 0.0
    %v3465 = vand.u32 %v3313, 4294901760
    %v3466 = vsub.f32 %v3313, %v3465
    %v3467 = vand.u32 %v3466, 4294901760
    %v3468 = vsub.f32 %v3466, %v3467
    %v3469 = vand.u32 %v3468, 4294901760
    %3470 = vmatpush1.msra.mxu0 %v3469
    %3471 = vmatprep.subr.mxu0 0.0
    %v3472 = vand.u32 %v3312, 4294901760
    %v3473 = vsub.f32 %v3312, %v3472
    %v3474 = vand.u32 %v3473, 4294901760
    %v3475 = vsub.f32 %v3473, %v3474
    %v3476 = vand.u32 %v3475, 4294901760
    %3477 = vmatpush1.msra.mxu0 %v3476
    %3478 = vmatprep.subr.mxu0 0.0
    %3479 = vmatpush2.msra.mxu0 0.0
    %3480 = vmatprep.subr.mxu0 0.0
    %3481 = vmatpush2.msra.mxu0 0.0
    %3482 = vmatprep.subr.mxu0 0.0
    %3483 = vmatpush2.msra.mxu0 0.0
    %3484 = vmatprep.subr.mxu0 0.0
    %3485 = vmatpush2.msra.mxu0 0.0
    %3486 = vmatprep.subr.mxu0 0.0
    %3487 = vmatpush2.msra.mxu0 0.0
    %3488 = vmatprep.subr.mxu0 0.0
    %3489 = vmatpush2.msra.mxu0 0.0
    %3490 = vmatprep.subr.mxu0 0.0
    %3491 = vmatpush2.msra.mxu0 0.0
    %3492 = vmatprep.subr.mxu0 0.0
    %3493 = vmatpush2.msra.mxu0 0.0
    %3494 = vmatprep.subr.mxu0 0.0
    %3495 = vmatpush2.msra.mxu0 0.0
    %3496 = vmatprep.subr.mxu0 0.0
    %3497 = vmatpush2.msra.mxu0 0.0
    %3498 = vmatprep.subr.mxu0 0.0
    %3499 = vmatpush2.msra.mxu0 0.0
    %3500 = vmatprep.subr.mxu0 0.0
    %3501 = vmatpush2.msra.mxu0 0.0
    %3502 = vmatprep.subr.mxu0 0.0
    %3503 = vmatpush2.msra.mxu0 0.0
    %3504 = vmatprep.subr.mxu0 0.0
    %3505 = vmatpush2.msra.mxu0 0.0
    %3506 = vmatprep.subr.mxu0 0.0
    %3507 = vmatpush2.msra.mxu0 0.0
    %3508 = vmatprep.subr.mxu0 0.0
    %3509 = vmatpush2.msra.mxu0 0.0
    %3510 = vmatprep.mubr.f32.mxu0 0.0
    %v3511 = vand.u32 %v3321, 4294901760
    %3512 = vmatmul.mubr.f32.gmra.mxu0 %v3511
    %v3513 = vpop.f32.mrf.mxu0
    %v3514 = vadd.f32 %v3403, %v3513
    %v3515 = vpop.f32.mrf.mxu0
    %3516 = vdwg.mxu0
    %3517 = vmatprep.subr.mxu0 0.0
    %3518 = vmatpush1.msra.mxu0 0.0
    %3519 = vmatprep.subr.mxu0 0.0
    %3520 = vmatpush1.msra.mxu0 0.0
    %3521 = vmatprep.subr.mxu0 0.0
    %3522 = vmatpush1.msra.mxu0 0.0
    %3523 = vmatprep.subr.mxu0 0.0
    %3524 = vmatpush1.msra.mxu0 0.0
    %3525 = vmatprep.subr.mxu0 0.0
    %3526 = vmatpush1.msra.mxu0 0.0
    %3527 = vmatprep.subr.mxu0 0.0
    %3528 = vmatpush1.msra.mxu0 0.0
    %3529 = vmatprep.subr.mxu0 0.0
    %3530 = vmatpush1.msra.mxu0 0.0
    %3531 = vmatprep.subr.mxu0 0.0
    %3532 = vmatpush1.msra.mxu0 0.0
    %3533 = vmatprep.subr.mxu0 0.0
    %v3534 = vand.u32 %v3319, 4294901760
    %v3535 = vsub.f32 %v3319, %v3534
    %3536 = vmatpush1.msra.mxu0 %v3535
    %3537 = vmatprep.subr.mxu0 0.0
    %v3538 = vand.u32 %v3318, 4294901760
    %v3539 = vsub.f32 %v3318, %v3538
    %3540 = vmatpush1.msra.mxu0 %v3539
    %3541 = vmatprep.subr.mxu0 0.0
    %v3542 = vand.u32 %v3317, 4294901760
    %v3543 = vsub.f32 %v3317, %v3542
    %3544 = vmatpush1.msra.mxu0 %v3543
    %3545 = vmatprep.subr.mxu0 0.0
    %v3546 = vand.u32 %v3316, 4294901760
    %v3547 = vsub.f32 %v3316, %v3546
    %3548 = vmatpush1.msra.mxu0 %v3547
    %3549 = vmatprep.subr.mxu0 0.0
    %v3550 = vand.u32 %v3315, 4294901760
    %v3551 = vsub.f32 %v3315, %v3550
    %3552 = vmatpush1.msra.mxu0 %v3551
    %3553 = vmatprep.subr.mxu0 0.0
    %v3554 = vand.u32 %v3314, 4294901760
    %v3555 = vsub.f32 %v3314, %v3554
    %3556 = vmatpush1.msra.mxu0 %v3555
    %3557 = vmatprep.subr.mxu0 0.0
    %v3558 = vand.u32 %v3313, 4294901760
    %v3559 = vsub.f32 %v3313, %v3558
    %3560 = vmatpush1.msra.mxu0 %v3559
    %3561 = vmatprep.subr.mxu0 0.0
    %v3562 = vand.u32 %v3312, 4294901760
    %v3563 = vsub.f32 %v3312, %v3562
    %3564 = vmatpush1.msra.mxu0 %v3563
    %3565 = vmatprep.subr.mxu0 0.0
    %3566 = vmatpush2.msra.mxu0 0.0
    %3567 = vmatprep.subr.mxu0 0.0
    %3568 = vmatpush2.msra.mxu0 0.0
    %3569 = vmatprep.subr.mxu0 0.0
    %3570 = vmatpush2.msra.mxu0 0.0
    %3571 = vmatprep.subr.mxu0 0.0
    %3572 = vmatpush2.msra.mxu0 0.0
    %3573 = vmatprep.subr.mxu0 0.0
    %3574 = vmatpush2.msra.mxu0 0.0
    %3575 = vmatprep.subr.mxu0 0.0
    %3576 = vmatpush2.msra.mxu0 0.0
    %3577 = vmatprep.subr.mxu0 0.0
    %3578 = vmatpush2.msra.mxu0 0.0
    %3579 = vmatprep.subr.mxu0 0.0
    %3580 = vmatpush2.msra.mxu0 0.0
    %3581 = vmatprep.subr.mxu0 0.0
    %3582 = vmatpush2.msra.mxu0 0.0
    %3583 = vmatprep.subr.mxu0 0.0
    %3584 = vmatpush2.msra.mxu0 0.0
    %3585 = vmatprep.subr.mxu0 0.0
    %3586 = vmatpush2.msra.mxu0 0.0
    %3587 = vmatprep.subr.mxu0 0.0
    %3588 = vmatpush2.msra.mxu0 0.0
    %3589 = vmatprep.subr.mxu0 0.0
    %3590 = vmatpush2.msra.mxu0 0.0
    %3591 = vmatprep.subr.mxu0 0.0
    %3592 = vmatpush2.msra.mxu0 0.0
    %3593 = vmatprep.subr.mxu0 0.0
    %3594 = vmatpush2.msra.mxu0 0.0
    %3595 = vmatprep.subr.mxu0 0.0
    %3596 = vmatpush2.msra.mxu0 0.0
    %3597 = vmatprep.mubr.f32.mxu0 0.0
    %v3598 = vand.u32 %v3321, 4294901760
    %v3599 = vsub.f32 %v3321, %v3598
    %3600 = vmatmul.mubr.f32.gmra.mxu0 %v3599
    %v3601 = vpop.f32.mrf.mxu0
    %v3602 = vadd.f32 %v3514, %v3601
    %v3603 = vpop.f32.mrf.mxu0
    %3604 = vdwg.mxu0
    %3605 = vmatprep.subr.mxu0 0.0
    %3606 = vmatpush1.msra.mxu0 0.0
    %3607 = vmatprep.subr.mxu0 0.0
    %3608 = vmatpush1.msra.mxu0 0.0
    %3609 = vmatprep.subr.mxu0 0.0
    %3610 = vmatpush1.msra.mxu0 0.0
    %3611 = vmatprep.subr.mxu0 0.0
    %3612 = vmatpush1.msra.mxu0 0.0
    %3613 = vmatprep.subr.mxu0 0.0
    %3614 = vmatpush1.msra.mxu0 0.0
    %3615 = vmatprep.subr.mxu0 0.0
    %3616 = vmatpush1.msra.mxu0 0.0
    %3617 = vmatprep.subr.mxu0 0.0
    %3618 = vmatpush1.msra.mxu0 0.0
    %3619 = vmatprep.subr.mxu0 0.0
    %3620 = vmatpush1.msra.mxu0 0.0
    %3621 = vmatprep.subr.mxu0 0.0
    %v3622 = vand.u32 %v3319, 4294901760
    %3623 = vmatpush1.msra.mxu0 %v3622
    %3624 = vmatprep.subr.mxu0 0.0
    %v3625 = vand.u32 %v3318, 4294901760
    %3626 = vmatpush1.msra.mxu0 %v3625
    %3627 = vmatprep.subr.mxu0 0.0
    %v3628 = vand.u32 %v3317, 4294901760
    %3629 = vmatpush1.msra.mxu0 %v3628
    %3630 = vmatprep.subr.mxu0 0.0
    %v3631 = vand.u32 %v3316, 4294901760
    %3632 = vmatpush1.msra.mxu0 %v3631
    %3633 = vmatprep.subr.mxu0 0.0
    %v3634 = vand.u32 %v3315, 4294901760
    %3635 = vmatpush1.msra.mxu0 %v3634
    %3636 = vmatprep.subr.mxu0 0.0
    %v3637 = vand.u32 %v3314, 4294901760
    %3638 = vmatpush1.msra.mxu0 %v3637
    %3639 = vmatprep.subr.mxu0 0.0
    %v3640 = vand.u32 %v3313, 4294901760
    %3641 = vmatpush1.msra.mxu0 %v3640
    %3642 = vmatprep.subr.mxu0 0.0
    %v3643 = vand.u32 %v3312, 4294901760
    %3644 = vmatpush1.msra.mxu0 %v3643
    %3645 = vmatprep.subr.mxu0 0.0
    %3646 = vmatpush2.msra.mxu0 0.0
    %3647 = vmatprep.subr.mxu0 0.0
    %3648 = vmatpush2.msra.mxu0 0.0
    %3649 = vmatprep.subr.mxu0 0.0
    %3650 = vmatpush2.msra.mxu0 0.0
    %3651 = vmatprep.subr.mxu0 0.0
    %3652 = vmatpush2.msra.mxu0 0.0
    %3653 = vmatprep.subr.mxu0 0.0
    %3654 = vmatpush2.msra.mxu0 0.0
    %3655 = vmatprep.subr.mxu0 0.0
    %3656 = vmatpush2.msra.mxu0 0.0
    %3657 = vmatprep.subr.mxu0 0.0
    %3658 = vmatpush2.msra.mxu0 0.0
    %3659 = vmatprep.subr.mxu0 0.0
    %3660 = vmatpush2.msra.mxu0 0.0
    %3661 = vmatprep.subr.mxu0 0.0
    %3662 = vmatpush2.msra.mxu0 0.0
    %3663 = vmatprep.subr.mxu0 0.0
    %3664 = vmatpush2.msra.mxu0 0.0
    %3665 = vmatprep.subr.mxu0 0.0
    %3666 = vmatpush2.msra.mxu0 0.0
    %3667 = vmatprep.subr.mxu0 0.0
    %3668 = vmatpush2.msra.mxu0 0.0
    %3669 = vmatprep.subr.mxu0 0.0
    %3670 = vmatpush2.msra.mxu0 0.0
    %3671 = vmatprep.subr.mxu0 0.0
    %3672 = vmatpush2.msra.mxu0 0.0
    %3673 = vmatprep.subr.mxu0 0.0
    %3674 = vmatpush2.msra.mxu0 0.0
    %3675 = vmatprep.subr.mxu0 0.0
    %3676 = vmatpush2.msra.mxu0 0.0
    %3677 = vmatprep.mubr.f32.mxu0 0.0
    %v3678 = vand.u32 %v3321, 4294901760
    %v3679 = vsub.f32 %v3321, %v3678
    %v3680 = vand.u32 %v3679, 4294901760
    %3681 = vmatmul.mubr.f32.gmra.mxu0 %v3680
    %v3682 = vpop.f32.mrf.mxu0
    %v3683 = vadd.f32 %v3602, %v3682
    %v3684 = vpop.f32.mrf.mxu0
    %3685 = vdwg.mxu0
    %3686 = vmatprep.subr.mxu0 0.0
    %3687 = vmatpush1.msra.mxu0 0.0
    %3688 = vmatprep.subr.mxu0 0.0
    %3689 = vmatpush1.msra.mxu0 0.0
    %3690 = vmatprep.subr.mxu0 0.0
    %3691 = vmatpush1.msra.mxu0 0.0
    %3692 = vmatprep.subr.mxu0 0.0
    %3693 = vmatpush1.msra.mxu0 0.0
    %3694 = vmatprep.subr.mxu0 0.0
    %3695 = vmatpush1.msra.mxu0 0.0
    %3696 = vmatprep.subr.mxu0 0.0
    %3697 = vmatpush1.msra.mxu0 0.0
    %3698 = vmatprep.subr.mxu0 0.0
    %3699 = vmatpush1.msra.mxu0 0.0
    %3700 = vmatprep.subr.mxu0 0.0
    %3701 = vmatpush1.msra.mxu0 0.0
    %3702 = vmatprep.subr.mxu0 0.0
    %v3703 = vand.u32 %v3319, 4294901760
    %v3704 = vsub.f32 %v3319, %v3703
    %v3705 = vand.u32 %v3704, 4294901760
    %3706 = vmatpush1.msra.mxu0 %v3705
    %3707 = vmatprep.subr.mxu0 0.0
    %v3708 = vand.u32 %v3318, 4294901760
    %v3709 = vsub.f32 %v3318, %v3708
    %v3710 = vand.u32 %v3709, 4294901760
    %3711 = vmatpush1.msra.mxu0 %v3710
    %3712 = vmatprep.subr.mxu0 0.0
    %v3713 = vand.u32 %v3317, 4294901760
    %v3714 = vsub.f32 %v3317, %v3713
    %v3715 = vand.u32 %v3714, 4294901760
    %3716 = vmatpush1.msra.mxu0 %v3715
    %3717 = vmatprep.subr.mxu0 0.0
    %v3718 = vand.u32 %v3316, 4294901760
    %v3719 = vsub.f32 %v3316, %v3718
    %v3720 = vand.u32 %v3719, 4294901760
    %3721 = vmatpush1.msra.mxu0 %v3720
    %3722 = vmatprep.subr.mxu0 0.0
    %v3723 = vand.u32 %v3315, 4294901760
    %v3724 = vsub.f32 %v3315, %v3723
    %v3725 = vand.u32 %v3724, 4294901760
    %3726 = vmatpush1.msra.mxu0 %v3725
    %3727 = vmatprep.subr.mxu0 0.0
    %v3728 = vand.u32 %v3314, 4294901760
    %v3729 = vsub.f32 %v3314, %v3728
    %v3730 = vand.u32 %v3729, 4294901760
    %3731 = vmatpush1.msra.mxu0 %v3730
    %3732 = vmatprep.subr.mxu0 0.0
    %v3733 = vand.u32 %v3313, 4294901760
    %v3734 = vsub.f32 %v3313, %v3733
    %v3735 = vand.u32 %v3734, 4294901760
    %3736 = vmatpush1.msra.mxu0 %v3735
    %3737 = vmatprep.subr.mxu0 0.0
    %v3738 = vand.u32 %v3312, 4294901760
    %v3739 = vsub.f32 %v3312, %v3738
    %v3740 = vand.u32 %v3739, 4294901760
    %3741 = vmatpush1.msra.mxu0 %v3740
    %3742 = vmatprep.subr.mxu0 0.0
    %3743 = vmatpush2.msra.mxu0 0.0
    %3744 = vmatprep.subr.mxu0 0.0
    %3745 = vmatpush2.msra.mxu0 0.0
    %3746 = vmatprep.subr.mxu0 0.0
    %3747 = vmatpush2.msra.mxu0 0.0
    %3748 = vmatprep.subr.mxu0 0.0
    %3749 = vmatpush2.msra.mxu0 0.0
    %3750 = vmatprep.subr.mxu0 0.0
    %3751 = vmatpush2.msra.mxu0 0.0
    %3752 = vmatprep.subr.mxu0 0.0
    %3753 = vmatpush2.msra.mxu0 0.0
    %3754 = vmatprep.subr.mxu0 0.0
    %3755 = vmatpush2.msra.mxu0 0.0
    %3756 = vmatprep.subr.mxu0 0.0
    %3757 = vmatpush2.msra.mxu0 0.0
    %3758 = vmatprep.subr.mxu0 0.0
    %3759 = vmatpush2.msra.mxu0 0.0
    %3760 = vmatprep.subr.mxu0 0.0
    %3761 = vmatpush2.msra.mxu0 0.0
    %3762 = vmatprep.subr.mxu0 0.0
    %3763 = vmatpush2.msra.mxu0 0.0
    %3764 = vmatprep.subr.mxu0 0.0
    %3765 = vmatpush2.msra.mxu0 0.0
    %3766 = vmatprep.subr.mxu0 0.0
    %3767 = vmatpush2.msra.mxu0 0.0
    %3768 = vmatprep.subr.mxu0 0.0
    %3769 = vmatpush2.msra.mxu0 0.0
    %3770 = vmatprep.subr.mxu0 0.0
    %3771 = vmatpush2.msra.mxu0 0.0
    %3772 = vmatprep.subr.mxu0 0.0
    %3773 = vmatpush2.msra.mxu0 0.0
    %3774 = vmatprep.mubr.f32.mxu0 0.0
    %v3775 = vand.u32 %v3321, 4294901760
    %3776 = vmatmul.mubr.f32.gmra.mxu0 %v3775
    %v3777 = vpop.f32.mrf.mxu0
    %v3778 = vadd.f32 %v3683, %v3777
    %v3779 = vpop.f32.mrf.mxu0
    %3780 = vdwg.mxu0
    %3781 = vmatprep.subr.mxu0 0.0
    %3782 = vmatpush1.msra.mxu0 0.0
    %3783 = vmatprep.subr.mxu0 0.0
    %3784 = vmatpush1.msra.mxu0 0.0
    %3785 = vmatprep.subr.mxu0 0.0
    %3786 = vmatpush1.msra.mxu0 0.0
    %3787 = vmatprep.subr.mxu0 0.0
    %3788 = vmatpush1.msra.mxu0 0.0
    %3789 = vmatprep.subr.mxu0 0.0
    %3790 = vmatpush1.msra.mxu0 0.0
    %3791 = vmatprep.subr.mxu0 0.0
    %3792 = vmatpush1.msra.mxu0 0.0
    %3793 = vmatprep.subr.mxu0 0.0
    %3794 = vmatpush1.msra.mxu0 0.0
    %3795 = vmatprep.subr.mxu0 0.0
    %3796 = vmatpush1.msra.mxu0 0.0
    %3797 = vmatprep.subr.mxu0 0.0
    %v3798 = vand.u32 %v3319, 4294901760
    %3799 = vmatpush1.msra.mxu0 %v3798
    %3800 = vmatprep.subr.mxu0 0.0
    %v3801 = vand.u32 %v3318, 4294901760
    %3802 = vmatpush1.msra.mxu0 %v3801
    %3803 = vmatprep.subr.mxu0 0.0
    %v3804 = vand.u32 %v3317, 4294901760
    %3805 = vmatpush1.msra.mxu0 %v3804
    %3806 = vmatprep.subr.mxu0 0.0
    %v3807 = vand.u32 %v3316, 4294901760
    %3808 = vmatpush1.msra.mxu0 %v3807
    %3809 = vmatprep.subr.mxu0 0.0
    %v3810 = vand.u32 %v3315, 4294901760
    %3811 = vmatpush1.msra.mxu0 %v3810
    %3812 = vmatprep.subr.mxu0 0.0
    %v3813 = vand.u32 %v3314, 4294901760
    %3814 = vmatpush1.msra.mxu0 %v3813
    %3815 = vmatprep.subr.mxu0 0.0
    %v3816 = vand.u32 %v3313, 4294901760
    %3817 = vmatpush1.msra.mxu0 %v3816
    %3818 = vmatprep.subr.mxu0 0.0
    %v3819 = vand.u32 %v3312, 4294901760
    %3820 = vmatpush1.msra.mxu0 %v3819
    %3821 = vmatprep.subr.mxu0 0.0
    %3822 = vmatpush2.msra.mxu0 0.0
    %3823 = vmatprep.subr.mxu0 0.0
    %3824 = vmatpush2.msra.mxu0 0.0
    %3825 = vmatprep.subr.mxu0 0.0
    %3826 = vmatpush2.msra.mxu0 0.0
    %3827 = vmatprep.subr.mxu0 0.0
    %3828 = vmatpush2.msra.mxu0 0.0
    %3829 = vmatprep.subr.mxu0 0.0
    %3830 = vmatpush2.msra.mxu0 0.0
    %3831 = vmatprep.subr.mxu0 0.0
    %3832 = vmatpush2.msra.mxu0 0.0
    %3833 = vmatprep.subr.mxu0 0.0
    %3834 = vmatpush2.msra.mxu0 0.0
    %3835 = vmatprep.subr.mxu0 0.0
    %3836 = vmatpush2.msra.mxu0 0.0
    %3837 = vmatprep.subr.mxu0 0.0
    %3838 = vmatpush2.msra.mxu0 0.0
    %3839 = vmatprep.subr.mxu0 0.0
    %3840 = vmatpush2.msra.mxu0 0.0
    %3841 = vmatprep.subr.mxu0 0.0
    %3842 = vmatpush2.msra.mxu0 0.0
    %3843 = vmatprep.subr.mxu0 0.0
    %3844 = vmatpush2.msra.mxu0 0.0
    %3845 = vmatprep.subr.mxu0 0.0
    %3846 = vmatpush2.msra.mxu0 0.0
    %3847 = vmatprep.subr.mxu0 0.0
    %3848 = vmatpush2.msra.mxu0 0.0
    %3849 = vmatprep.subr.mxu0 0.0
    %3850 = vmatpush2.msra.mxu0 0.0
    %3851 = vmatprep.subr.mxu0 0.0
    %3852 = vmatpush2.msra.mxu0 0.0
    %3853 = vmatprep.mubr.f32.mxu0 0.0
    %v3854 = vand.u32 %v3321, 4294901760
    %3855 = vmatmul.mubr.f32.gmra.mxu0 %v3854
    %v3856 = vpop.f32.mrf.mxu0
    %v3857 = vadd.f32 %v3778, %v3856
    %v3858 = vpop.f32.mrf.mxu0
    %3859 = vdwg.mxu0
    %s3860 = sld [smem:[#allocation2]]
    %v3861 = vstv %s3860
    %v3862 = vadd.f32 %v3857, %v3861
    %v3863 = vxor.u32 %v3862, 2147483648
    %v3864 = vmul.f32 %v3863, 1.442695
    %v3865 = vpow.pop %v3864
    %v3866 = vadd.f32 %v3865, 1.0
    %v3867 = vrcp.pop %v3866
    %v3868 = vmul.f32 1.0, %v3867
    %vm3869 = vcmp.eq.s32.totalorder %v172, 0
    %3871 = vset.pattern.permute.xlu0 0
    %3872 = vperm.xlu0 %3871, %v3868
    %v3873 = vpop.permute.xlu0 %3872
    %v3875 = vsel %vm3869, %v3873, 0.0
    %vm3876 = vcmp.eq.s32.totalorder %v172, 1
    %3878 = vset.pattern.permute.xlu0 1
    %3879 = vperm.xlu0 %3878, %v3857
    %v3880 = vpop.permute.xlu0 %3879
    %v3882 = vsel %vm3876, %v3880, 0.0
    %v3883 = vadd.f32 %v3875, %v3882
    %3884 = vst [vmem:[#allocation3] sm:$0xff] %v3883
    // Predicated region
    $region14: #{tpu_custom_call.1} parent=1 // pred_check
      _
    $region15: #{tpu_custom_call.1} parent=1 // pred_check_branch
      %3886 = sbr.rel (0) target = $region17
    $region16: #{tpu_custom_call.1} parent=1 // pred_region
      %s3888 = ssub.s32 128, 128
      %3889 = vsyncadd [#allocation4], %s3888
      %s3891 = sshll.u32 [#allocation3], 4
      %s3892 = int_to_ptr.vmem [resolvable:$true] %s3891
      %3894 = dma.vmem_to_hbm [thread:$0]  %s3892, 128, %s3, [#allocation4]
    $region17: #{tpu_custom_call.1} parent=1 // pred_fallthru
      _
    // Predicated region
    $region18: #{tpu_custom_call.1} parent=1 // pred_check
      _
    $region19: #{tpu_custom_call.1} parent=1 // pred_check_branch
      %3896 = sbr.rel (0) target = $region21
    $region20: #{tpu_custom_call.1} parent=1 // pred_region
      %3897 = dma.done [#allocation4], 128
    $region21: #{tpu_custom_call.1} parent=1 // pred_fallthru
      _
    %3898 = vsyncpa [#allocation4], 1

</llo_original>
